<compile_context>
chip_gen: v6e
topology: v6e:2x2x1
jax: 0.10.0
libtpu: 0.0.40
codegen_flags: <defaults>
</compile_context>

<pallas_src>
import functools

import jax
import jax.numpy as jnp
from jax import lax
from jax.experimental import pallas as pl
from jax.experimental.pallas import tpu as pltpu

# ---------------- model hyperparameters (small, consistent with the module) --
VOCAB_SIZE = 65     # e.g. tiny-shakespeare char vocab
V_PAD      = 128    # lane-dense padded vocab (embedding rows & lm_head cols)
N_EMBED    = 32
BLOCK_SIZE = 8      # max sequence length
N_HEAD     = 4
N_LAYER    = 2
LN_EPS     = 1e-5


def _layernorm(z, gamma, beta):
    mu = jnp.mean(z, axis=-1, keepdims=True)
    var = jnp.mean((z - mu) * (z - mu), axis=-1, keepdims=True)
    return (z - mu) * lax.rsqrt(var + LN_EPS) * gamma + beta


# ----------------------------- fused forward kernel --------------------------
def _fused_forward_kernel(idx_ref, tok_ref, pos_ref,
                          ln1g_ref, ln1b_ref, wqkv_ref, wo_ref, bo_ref,
                          ln2g_ref, ln2b_ref, w1_ref, b1_ref, w2_ref, b2_ref,
                          lnfg_ref, lnfb_ref, wh_ref, bh_ref,
                          out_ref, *, T, n_head, n_layer):
    """One grid step = one sequence of length T."""
    V_pad, C = tok_ref.shape
    hs = C // n_head
    scale = float(C) ** -0.5          # reference scales by n_embed, not head_size
    cdt = tok_ref.dtype               # matmul-operand dtype (bf16 on v6e/v7x)

    # --- token-embedding gather: lane-dense one-hot (T, 128) matmul + pos add
    ids = idx_ref[...]                                        # (T, 1) int32
    viota = lax.broadcasted_iota(jnp.int32, (T, V_pad), 1)
    onehot = (ids == viota).astype(cdt)                       # (T, V_pad)
    tok = jnp.dot(onehot, tok_ref[...], preferred_element_type=jnp.float32)
    x = tok + pos_ref[...]                                    # (T, C) f32

    # --- causal additive mask, built + broadcast ONCE (hoisted out of loops) --
    r = lax.broadcasted_iota(jnp.int32, (T, T), 0)
    c = lax.broadcasted_iota(jnp.int32, (T, T), 1)
    neg = jnp.where(r >= c, 0.0, -1e30).astype(jnp.float32)   # (T, T)
    neg_h = jnp.broadcast_to(neg[None], (n_head, T, T))       # (H, T, T)

    def split_heads(m):                                       # (T, C) -> (H, T, hs)
        return jnp.stack([m[:, h * hs:(h + 1) * hs] for h in range(n_head)],
                         axis=0)

    # --- unrolled transformer blocks -----------------------------------------
    for l in range(n_layer):
        # self-attention branch: x + proj(concat_heads(attn(ln1(x))))
        h1 = _layernorm(x, ln1g_ref[l:l + 1, :], ln1b_ref[l:l + 1, :]).astype(cdt)
        # fused QKV: one (T,C)x(C,3C) matmul per layer
        qkv = jnp.dot(h1, wqkv_ref[l], preferred_element_type=jnp.float32)  # (T, 3C)
        q_h = split_heads(qkv[:, :C]).astype(cdt)             # (H, T, hs)
        k_h = split_heads(qkv[:, C:2 * C]).astype(cdt)
        v_h = split_heads(qkv[:, 2 * C:]).astype(cdt)

        # head-batched scores + single masked softmax + batched P@V
        s = jnp.einsum('htd,hsd->hts', q_h, k_h,
                       preferred_element_type=jnp.float32) * scale + neg_h
        s = s - jnp.max(s, axis=-1, keepdims=True)
        e = jnp.exp(s)
        p = e / jnp.sum(e, axis=-1, keepdims=True)             # exact softmax
        o_h = jnp.einsum('hts,hsd->htd', p.astype(cdt), v_h,
                         preferred_element_type=jnp.float32)   # (H, T, hs)

        # merge heads + single output projection
        sa = jnp.concatenate([o_h[h] for h in range(n_head)], axis=-1).astype(cdt)
        x = x + jnp.dot(sa, wo_ref[l], preferred_element_type=jnp.float32) \
              + bo_ref[l:l + 1, :]

        # feed-forward branch: x + W2(relu(W1(ln2(x))))
        h2 = _layernorm(x, ln2g_ref[l:l + 1, :], ln2b_ref[l:l + 1, :]).astype(cdt)
        ff = jnp.dot(h2, w1_ref[l], preferred_element_type=jnp.float32) \
            + b1_ref[l:l + 1, :]
        ff = jnp.maximum(ff, 0.0).astype(cdt)
        x = x + jnp.dot(ff, w2_ref[l], preferred_element_type=jnp.float32) \
              + b2_ref[l:l + 1, :]

    # --- final LN + lm_head (lane-dense padded vocab output) -----------------
    hf = _layernorm(x, lnfg_ref[...], lnfb_ref[...]).astype(cdt)
    out_ref[...] = (jnp.dot(hf, wh_ref[...], preferred_element_type=jnp.float32)
                    + bh_ref[...])


def _full(a):
    nd = a.ndim
    return pl.BlockSpec(a.shape, lambda b, _nd=nd: (0,) * _nd)


def bigram_lm_forward(params, idx, matmul_dtype=jnp.bfloat16):
    """idx: (B, T) int32 token ids.  Returns logits (B, T, VOCAB_SIZE) f32.

    matmul_dtype=bfloat16 targets v6e/v7x MXUs; pass jnp.float32 for exact-f32
    math (e.g. v5e where elementwise bf16 casts cost VALU slots).
    """
    B, T = idx.shape
    assert T % 8 == 0 or B == 1, "per-sequence tiling needs T multiple of 8"
    idx_flat = idx.reshape(B * T, 1).astype(jnp.int32)
    md = matmul_dtype
    arrs = [
        params["tok_emb"].astype(md), params["pos_emb"][:T],
        params["ln1_g"], params["ln1_b"],
        params["wqkv"].astype(md), params["wo"].astype(md), params["bo"],
        params["ln2_g"], params["ln2_b"],
        params["w1"].astype(md), params["b1"],
        params["w2"].astype(md), params["b2"],
        params["lnf_g"], params["lnf_b"],
        params["w_head"].astype(md), params["b_head"],
    ]
    v_pad = params["w_head"].shape[1]
    out = pl.pallas_call(
        functools.partial(_fused_forward_kernel, T=T,
                          n_head=N_HEAD, n_layer=N_LAYER),
        out_shape=jax.ShapeDtypeStruct((B * T, v_pad), jnp.float32),
        grid=(B,),
        in_specs=[pl.BlockSpec((T, 1), lambda b: (b, 0))]
                 + [_full(a) for a in arrs],
        out_specs=pl.BlockSpec((T, v_pad), lambda b: (b, 0)),
        compiler_params=pltpu.CompilerParams(
            dimension_semantics=("parallel",),      # v7x: 2 TCs split the batch
            vmem_limit_bytes=4 * 1024 * 1024,       # right-sized (weights < 1 MiB)
        ),
    )(idx_flat, *arrs)
    return out.reshape(B, T, v_pad)[..., :VOCAB_SIZE]


# ----------------------------- parameter init --------------------------------
def init_params(key, *, vocab_size=VOCAB_SIZE, n_embed=N_EMBED,
                block_size=BLOCK_SIZE, n_head=N_HEAD, n_layer=N_LAYER,
                v_pad=V_PAD):
    ks = iter(jax.random.split(key, 12))
    nrm = lambda k, shape, scale=0.02: (scale * jax.random.normal(k, shape)
                                        ).astype(jnp.float32)
    tok_core = nrm(next(ks), (vocab_size, n_embed))
    tok_emb = jnp.zeros((v_pad, n_embed), jnp.float32).at[:vocab_size].set(tok_core)
    w_head_core = nrm(next(ks), (n_embed, vocab_size))
    w_head = jnp.zeros((n_embed, v_pad), jnp.float32).at[:, :vocab_size].set(
        w_head_core)
    b_head_core = nrm(next(ks), (vocab_size,))
    b_head = jnp.zeros((1, v_pad), jnp.float32).at[0, :vocab_size].set(b_head_core)
    return {
        "tok_emb": tok_emb,                     # (V_PAD, C), zero-padded rows
        "pos_emb": nrm(next(ks), (block_size, n_embed)),
        "ln1_g": jnp.ones((n_layer, n_embed), jnp.float32),
        "ln1_b": jnp.zeros((n_layer, n_embed), jnp.float32),
        "wqkv": nrm(next(ks), (n_layer, n_embed, 3 * n_embed)),  # [q|k|v] cols
        "wo": nrm(next(ks), (n_layer, n_embed, n_embed)),
        "bo": nrm(next(ks), (n_layer, n_embed)),
        "ln2_g": jnp.ones((n_layer, n_embed), jnp.float32),
        "ln2_b": jnp.zeros((n_layer, n_embed), jnp.float32),
        "w1": nrm(next(ks), (n_layer, n_embed, 4 * n_embed)),
        "b1": nrm(next(ks), (n_layer, 4 * n_embed)),
        "w2": nrm(next(ks), (n_layer, 4 * n_embed, n_embed)),
        "b2": nrm(next(ks), (n_layer, n_embed)),
        "lnf_g": jnp.ones((1, n_embed), jnp.float32),
        "lnf_b": jnp.zeros((1, n_embed), jnp.float32),
        "w_head": w_head,                       # (C, V_PAD), zero-padded cols
        "b_head": b_head,                       # (1, V_PAD), zero-padded cols
    }


# ----------------------------- pure-JAX reference (for sanity) ---------------
def _ref_forward(params, idx):
    B, T = idx.shape
    C = N_EMBED
    hs = C // N_HEAD
    x = jnp.take(params["tok_emb"], idx, axis=0) + params["pos_emb"][:T][None]
    mask = jnp.tril(jnp.ones((T, T), bool))
    for l in range(N_LAYER):
        h = _layernorm(x, params["ln1_g"][l], params["ln1_b"][l])
        qkv = h @ params["wqkv"][l]
        q, k, v = qkv[..., :C], qkv[..., C:2 * C], qkv[..., 2 * C:]
        outs = []
        for hd in range(N_HEAD):
            s = hd * hs
            w = (q[..., s:s + hs] @ jnp.swapaxes(k[..., s:s + hs], -1, -2)
                 ) * (C ** -0.5)
            w = jnp.where(mask, w, -jnp.inf)
            w = jax.nn.softmax(w, axis=-1)
            outs.append(w @ v[..., s:s + hs])
        x = x + jnp.concatenate(outs, -1) @ params["wo"][l] + params["bo"][l]
        h2 = _layernorm(x, params["ln2_g"][l], params["ln2_b"][l])
        x = x + jnp.maximum(h2 @ params["w1"][l] + params["b1"][l], 0.0) \
            @ params["w2"][l] + params["b2"][l]
    x = _layernorm(x, params["lnf_g"][0], params["lnf_b"][0])
    return x @ params["w_head"][:, :VOCAB_SIZE] + params["b_head"][0, :VOCAB_SIZE]


if __name__ == "__main__":
    key = jax.random.PRNGKey(0)
    pkey, ikey = jax.random.split(key)
    params = init_params(pkey)

    B, T = 2, BLOCK_SIZE
    idx = jax.random.randint(ikey, (B, T), 0, VOCAB_SIZE, dtype=jnp.int32)

    logits = jax.block_until_ready(bigram_lm_forward(params, idx))
    assert logits.shape == (B, T, VOCAB_SIZE) and logits.dtype == jnp.float32

    ref = _ref_forward(params, idx)
    # tolerance accounts for bf16 matmul operands (f32 accumulation); pass
    # matmul_dtype=jnp.float32 to bigram_lm_forward for tighter parity.
    assert jnp.allclose(logits, ref, atol=2e-2, rtol=2e-2), "mismatch vs reference"

    # targets=None path -> loss is None in the PyTorch module; logits only here.
    print("KERNEL_OK")
</pallas_src>

<mosaic_0001>
module attributes {stable_mosaic.version = 11 : i64} {
  func.func @_fused_forward_kernel(%arg0: i32, %arg1: memref<8x1xi32, #tpu.memory_space<vmem>>, %arg2: memref<128x32xbf16, #tpu.memory_space<vmem>>, %arg3: memref<8x32xf32, #tpu.memory_space<vmem>>, %arg4: memref<2x32xf32, #tpu.memory_space<vmem>>, %arg5: memref<2x32xf32, #tpu.memory_space<vmem>>, %arg6: memref<2x32x96xbf16, #tpu.memory_space<vmem>>, %arg7: memref<2x32x32xbf16, #tpu.memory_space<vmem>>, %arg8: memref<2x32xf32, #tpu.memory_space<vmem>>, %arg9: memref<2x32xf32, #tpu.memory_space<vmem>>, %arg10: memref<2x32xf32, #tpu.memory_space<vmem>>, %arg11: memref<2x32x128xbf16, #tpu.memory_space<vmem>>, %arg12: memref<2x128xf32, #tpu.memory_space<vmem>>, %arg13: memref<2x128x32xbf16, #tpu.memory_space<vmem>>, %arg14: memref<2x32xf32, #tpu.memory_space<vmem>>, %arg15: memref<1x32xf32, #tpu.memory_space<vmem>>, %arg16: memref<1x32xf32, #tpu.memory_space<vmem>>, %arg17: memref<32x128xbf16, #tpu.memory_space<vmem>>, %arg18: memref<1x128xf32, #tpu.memory_space<vmem>>, %arg19: memref<8x128xf32, #tpu.memory_space<vmem>>) attributes {dimension_semantics = [#tpu.dimension_semantics<parallel>], iteration_bounds = array<i64: 2>, scalar_prefetch = 0 : i64, scratch_operands = 0 : i64, tpu.core_type = #tpu.core_type<tc>, window_params = [{transform_indices = @transform_0, window_bounds = array<i64: 8, 1>}, {pipeline_mode = #tpu.pipeline_mode<synchronous>, transform_indices = @transform_1, window_bounds = array<i64: 128, 32>}, {pipeline_mode = #tpu.pipeline_mode<synchronous>, transform_indices = @transform_2, window_bounds = array<i64: 8, 32>}, {pipeline_mode = #tpu.pipeline_mode<synchronous>, transform_indices = @transform_3, window_bounds = array<i64: 2, 32>}, {pipeline_mode = #tpu.pipeline_mode<synchronous>, transform_indices = @transform_4, window_bounds = array<i64: 2, 32>}, {pipeline_mode = #tpu.pipeline_mode<synchronous>, transform_indices = @transform_5, window_bounds = array<i64: 2, 32, 96>}, {pipeline_mode = #tpu.pipeline_mode<synchronous>, transform_indices = @transform_6, window_bounds = array<i64: 2, 32, 32>}, {pipeline_mode = #tpu.pipeline_mode<synchronous>, transform_indices = @transform_7, window_bounds = array<i64: 2, 32>}, {pipeline_mode = #tpu.pipeline_mode<synchronous>, transform_indices = @transform_8, window_bounds = array<i64: 2, 32>}, {pipeline_mode = #tpu.pipeline_mode<synchronous>, transform_indices = @transform_9, window_bounds = array<i64: 2, 32>}, {pipeline_mode = #tpu.pipeline_mode<synchronous>, transform_indices = @transform_10, window_bounds = array<i64: 2, 32, 128>}, {pipeline_mode = #tpu.pipeline_mode<synchronous>, transform_indices = @transform_11, window_bounds = array<i64: 2, 128>}, {pipeline_mode = #tpu.pipeline_mode<synchronous>, transform_indices = @transform_12, window_bounds = array<i64: 2, 128, 32>}, {pipeline_mode = #tpu.pipeline_mode<synchronous>, transform_indices = @transform_13, window_bounds = array<i64: 2, 32>}, {pipeline_mode = #tpu.pipeline_mode<synchronous>, transform_indices = @transform_14, window_bounds = array<i64: 1, 32>}, {pipeline_mode = #tpu.pipeline_mode<synchronous>, transform_indices = @transform_15, window_bounds = array<i64: 1, 32>}, {pipeline_mode = #tpu.pipeline_mode<synchronous>, transform_indices = @transform_16, window_bounds = array<i64: 32, 128>}, {pipeline_mode = #tpu.pipeline_mode<synchronous>, transform_indices = @transform_17, window_bounds = array<i64: 1, 128>}, {transform_indices = @transform_18, window_bounds = array<i64: 8, 128>}]} {
    %c0 = arith.constant 0 : index
    %c0_0 = arith.constant 0 : index
    %0 = vector.load %arg1[%c0, %c0_0] : memref<8x1xi32, #tpu.memory_space<vmem>>, vector<8x1xi32>
    %1 = tpu.iota {dimensions = array<i32: 1>} : vector<8x128xi32>
    %2 = vector.broadcast %0 : vector<8x1xi32> to vector<8x128xi32>
    %3 = arith.cmpi eq, %2, %1 : vector<8x128xi32>
    %4 = arith.extui %3 : vector<8x128xi1> to vector<8x128xi32>
    %5 = arith.sitofp %4 : vector<8x128xi32> to vector<8x128xf32>
    %6 = arith.truncf %5 : vector<8x128xf32> to vector<8x128xbf16>
    %c0_1 = arith.constant 0 : index
    %c0_2 = arith.constant 0 : index
    %7 = vector.load %arg2[%c0_1, %c0_2] : memref<128x32xbf16, #tpu.memory_space<vmem>>, vector<128x32xbf16>
    %cst = arith.constant dense<0.000000e+00> : vector<8x32xf32>
    %8 = tpu.matmul %6, %7, %cst {dimension_numbers = #tpu.dot_dimension_numbers<[1], [0], [0], [1], [0, 0, 1, 1], [], []>} : vector<8x128xbf16>, vector<128x32xbf16>, vector<8x32xf32> -> vector<8x32xf32>
    %c0_3 = arith.constant 0 : index
    %c0_4 = arith.constant 0 : index
    %9 = vector.load %arg3[%c0_3, %c0_4] : memref<8x32xf32, #tpu.memory_space<vmem>>, vector<8x32xf32>
    %10 = arith.addf %8, %9 : vector<8x32xf32>
    %11 = tpu.iota {dimensions = array<i32: 0>} : vector<8x8xi32>
    %12 = tpu.iota {dimensions = array<i32: 1>} : vector<8x8xi32>
    %13 = arith.cmpi sge, %11, %12 : vector<8x8xi32>
    %cst_5 = arith.constant 0.000000e+00 : f32
    %cst_6 = arith.constant -1.000000e+30 : f32
    %14 = vector.broadcast %cst_5 : f32 to vector<8x8xf32>
    %15 = vector.broadcast %cst_6 : f32 to vector<8x8xf32>
    %16 = arith.select %13, %14, %15 : vector<8x8xi1>, vector<8x8xf32>
    %17 = vector.shape_cast %16 : vector<8x8xf32> to vector<1x8x8xf32>
    %18 = vector.shape_cast %17 : vector<1x8x8xf32> to vector<1x8x8xf32>
    %19 = vector.broadcast %18 : vector<1x8x8xf32> to vector<4x8x8xf32>
    %c0_7 = arith.constant 0 : index
    %c0_8 = arith.constant 0 : index
    %20 = vector.load %arg4[%c0_7, %c0_8] : memref<2x32xf32, #tpu.memory_space<vmem>>, vector<1x32xf32>
    %c0_9 = arith.constant 0 : index
    %c0_10 = arith.constant 0 : index
    %21 = vector.load %arg5[%c0_9, %c0_10] : memref<2x32xf32, #tpu.memory_space<vmem>>, vector<1x32xf32>
    %cst_11 = arith.constant dense<0.000000e+00> : vector<8xf32>
    %22 = vector.multi_reduction <add>, %10, %cst_11 [1] : vector<8x32xf32> to vector<8xf32>
    %23 = vector.shape_cast %22 : vector<8xf32> to vector<8x1xf32>
    %cst_12 = arith.constant 3.200000e+01 : f32
    %24 = vector.broadcast %cst_12 : f32 to vector<8x1xf32>
    %25 = arith.divf %23, %24 : vector<8x1xf32>
    %26 = vector.broadcast %25 : vector<8x1xf32> to vector<8x32xf32>
    %27 = arith.subf %10, %26 : vector<8x32xf32>
    %28 = vector.broadcast %25 : vector<8x1xf32> to vector<8x32xf32>
    %29 = arith.subf %10, %28 : vector<8x32xf32>
    %30 = arith.mulf %27, %29 : vector<8x32xf32>
    %cst_13 = arith.constant dense<0.000000e+00> : vector<8xf32>
    %31 = vector.multi_reduction <add>, %30, %cst_13 [1] : vector<8x32xf32> to vector<8xf32>
    %32 = vector.shape_cast %31 : vector<8xf32> to vector<8x1xf32>
    %cst_14 = arith.constant 3.200000e+01 : f32
    %33 = vector.broadcast %cst_14 : f32 to vector<8x1xf32>
    %34 = arith.divf %32, %33 : vector<8x1xf32>
    %35 = vector.broadcast %25 : vector<8x1xf32> to vector<8x32xf32>
    %36 = arith.subf %10, %35 : vector<8x32xf32>
    %cst_15 = arith.constant 9.99999974E-6 : f32
    %37 = vector.broadcast %cst_15 : f32 to vector<8x1xf32>
    %38 = arith.addf %34, %37 : vector<8x1xf32>
    %39 = math.rsqrt %38 : vector<8x1xf32>
    %40 = vector.broadcast %39 : vector<8x1xf32> to vector<8x32xf32>
    %41 = arith.mulf %36, %40 : vector<8x32xf32>
    %42 = vector.broadcast %20 : vector<1x32xf32> to vector<8x32xf32>
    %43 = arith.mulf %41, %42 : vector<8x32xf32>
    %44 = vector.broadcast %21 : vector<1x32xf32> to vector<8x32xf32>
    %45 = arith.addf %43, %44 : vector<8x32xf32>
    %46 = arith.truncf %45 : vector<8x32xf32> to vector<8x32xbf16>
    %c0_16 = arith.constant 0 : index
    %c0_17 = arith.constant 0 : index
    %c0_18 = arith.constant 0 : index
    %47 = vector.load %arg6[%c0_16, %c0_17, %c0_18] : memref<2x32x96xbf16, #tpu.memory_space<vmem>>, vector<1x32x96xbf16>
    %48 = vector.shape_cast %47 : vector<1x32x96xbf16> to vector<32x96xbf16>
    %cst_19 = arith.constant dense<0.000000e+00> : vector<8x96xf32>
    %49 = tpu.matmul %46, %48, %cst_19 {dimension_numbers = #tpu.dot_dimension_numbers<[1], [0], [0], [1], [0, 0, 1, 1], [], []>} : vector<8x32xbf16>, vector<32x96xbf16>, vector<8x96xf32> -> vector<8x96xf32>
    %50 = vector.extract_strided_slice %49 {offsets = [0, 0], sizes = [8, 32], strides = [1, 1]} : vector<8x96xf32> to vector<8x32xf32>
    %51 = vector.extract_strided_slice %50 {offsets = [0, 0], sizes = [8, 8], strides = [1, 1]} : vector<8x32xf32> to vector<8x8xf32>
    %52 = vector.extract_strided_slice %50 {offsets = [0, 8], sizes = [8, 8], strides = [1, 1]} : vector<8x32xf32> to vector<8x8xf32>
    %53 = vector.extract_strided_slice %50 {offsets = [0, 16], sizes = [8, 8], strides = [1, 1]} : vector<8x32xf32> to vector<8x8xf32>
    %54 = vector.extract_strided_slice %50 {offsets = [0, 24], sizes = [8, 8], strides = [1, 1]} : vector<8x32xf32> to vector<8x8xf32>
    %55 = vector.shape_cast %51 : vector<8x8xf32> to vector<1x8x8xf32>
    %56 = vector.shape_cast %52 : vector<8x8xf32> to vector<1x8x8xf32>
    %57 = vector.shape_cast %53 : vector<8x8xf32> to vector<1x8x8xf32>
    %58 = vector.shape_cast %54 : vector<8x8xf32> to vector<1x8x8xf32>
    %59 = tpu.concatenate %55, %56, %57, %58 in 0 : vector<1x8x8xf32>, vector<1x8x8xf32>, vector<1x8x8xf32>, vector<1x8x8xf32> -> vector<4x8x8xf32>
    %60 = arith.truncf %59 : vector<4x8x8xf32> to vector<4x8x8xbf16>
    %61 = vector.extract_strided_slice %49 {offsets = [0, 32], sizes = [8, 32], strides = [1, 1]} : vector<8x96xf32> to vector<8x32xf32>
    %62 = vector.extract_strided_slice %61 {offsets = [0, 0], sizes = [8, 8], strides = [1, 1]} : vector<8x32xf32> to vector<8x8xf32>
    %63 = vector.extract_strided_slice %61 {offsets = [0, 8], sizes = [8, 8], strides = [1, 1]} : vector<8x32xf32> to vector<8x8xf32>
    %64 = vector.extract_strided_slice %61 {offsets = [0, 16], sizes = [8, 8], strides = [1, 1]} : vector<8x32xf32> to vector<8x8xf32>
    %65 = vector.extract_strided_slice %61 {offsets = [0, 24], sizes = [8, 8], strides = [1, 1]} : vector<8x32xf32> to vector<8x8xf32>
    %66 = vector.shape_cast %62 : vector<8x8xf32> to vector<1x8x8xf32>
    %67 = vector.shape_cast %63 : vector<8x8xf32> to vector<1x8x8xf32>
    %68 = vector.shape_cast %64 : vector<8x8xf32> to vector<1x8x8xf32>
    %69 = vector.shape_cast %65 : vector<8x8xf32> to vector<1x8x8xf32>
    %70 = tpu.concatenate %66, %67, %68, %69 in 0 : vector<1x8x8xf32>, vector<1x8x8xf32>, vector<1x8x8xf32>, vector<1x8x8xf32> -> vector<4x8x8xf32>
    %71 = arith.truncf %70 : vector<4x8x8xf32> to vector<4x8x8xbf16>
    %72 = vector.extract_strided_slice %49 {offsets = [0, 64], sizes = [8, 32], strides = [1, 1]} : vector<8x96xf32> to vector<8x32xf32>
    %73 = vector.extract_strided_slice %72 {offsets = [0, 0], sizes = [8, 8], strides = [1, 1]} : vector<8x32xf32> to vector<8x8xf32>
    %74 = vector.extract_strided_slice %72 {offsets = [0, 8], sizes = [8, 8], strides = [1, 1]} : vector<8x32xf32> to vector<8x8xf32>
    %75 = vector.extract_strided_slice %72 {offsets = [0, 16], sizes = [8, 8], strides = [1, 1]} : vector<8x32xf32> to vector<8x8xf32>
    %76 = vector.extract_strided_slice %72 {offsets = [0, 24], sizes = [8, 8], strides = [1, 1]} : vector<8x32xf32> to vector<8x8xf32>
    %77 = vector.shape_cast %73 : vector<8x8xf32> to vector<1x8x8xf32>
    %78 = vector.shape_cast %74 : vector<8x8xf32> to vector<1x8x8xf32>
    %79 = vector.shape_cast %75 : vector<8x8xf32> to vector<1x8x8xf32>
    %80 = vector.shape_cast %76 : vector<8x8xf32> to vector<1x8x8xf32>
    %81 = tpu.concatenate %77, %78, %79, %80 in 0 : vector<1x8x8xf32>, vector<1x8x8xf32>, vector<1x8x8xf32>, vector<1x8x8xf32> -> vector<4x8x8xf32>
    %82 = arith.truncf %81 : vector<4x8x8xf32> to vector<4x8x8xbf16>
    "tpu.trace_start"() <{level = 10 : i32, message = "htd,hsd->hts"}> : () -> ()
    %cst_20 = arith.constant dense<0.000000e+00> : vector<4x8x8xf32>
    %83 = tpu.matmul %60, %71, %cst_20 {dimension_numbers = #tpu.dot_dimension_numbers<[2], [2], [1], [1], [0, 0, 0, 1, 1, 1], [0], [0]>} : vector<4x8x8xbf16>, vector<4x8x8xbf16>, vector<4x8x8xf32> -> vector<4x8x8xf32>
    "tpu.trace_stop"() : () -> ()
    %cst_21 = arith.constant 0.176776692 : f32
    %84 = vector.broadcast %cst_21 : f32 to vector<4x8x8xf32>
    %85 = arith.mulf %83, %84 : vector<4x8x8xf32>
    %86 = arith.addf %85, %19 : vector<4x8x8xf32>
    %cst_22 = arith.constant dense<0xFF800000> : vector<4x8xf32>
    %87 = vector.multi_reduction <maximumf>, %86, %cst_22 [2] : vector<4x8x8xf32> to vector<4x8xf32>
    %88 = vector.shape_cast %87 : vector<4x8xf32> to vector<4x8x1xf32>
    %89 = vector.broadcast %88 : vector<4x8x1xf32> to vector<4x8x8xf32>
    %90 = arith.subf %86, %89 : vector<4x8x8xf32>
    %91 = math.exp %90 : vector<4x8x8xf32>
    %cst_23 = arith.constant dense<0.000000e+00> : vector<4x8xf32>
    %92 = vector.multi_reduction <add>, %91, %cst_23 [2] : vector<4x8x8xf32> to vector<4x8xf32>
    %93 = vector.shape_cast %92 : vector<4x8xf32> to vector<4x8x1xf32>
    %94 = vector.broadcast %93 : vector<4x8x1xf32> to vector<4x8x8xf32>
    %95 = arith.divf %91, %94 : vector<4x8x8xf32>
    %96 = arith.truncf %95 : vector<4x8x8xf32> to vector<4x8x8xbf16>
    "tpu.trace_start"() <{level = 10 : i32, message = "hts,hsd->htd"}> : () -> ()
    %cst_24 = arith.constant dense<0.000000e+00> : vector<4x8x8xf32>
    %97 = tpu.matmul %96, %82, %cst_24 {dimension_numbers = #tpu.dot_dimension_numbers<[2], [1], [1], [2], [0, 0, 0, 1, 1, 2], [0], [0]>} : vector<4x8x8xbf16>, vector<4x8x8xbf16>, vector<4x8x8xf32> -> vector<4x8x8xf32>
    "tpu.trace_stop"() : () -> ()
    %98 = vector.extract_strided_slice %97 {offsets = [0, 0, 0], sizes = [1, 8, 8], strides = [1, 1, 1]} : vector<4x8x8xf32> to vector<1x8x8xf32>
    %99 = vector.shape_cast %98 : vector<1x8x8xf32> to vector<8x8xf32>
    %100 = vector.extract_strided_slice %97 {offsets = [1, 0, 0], sizes = [1, 8, 8], strides = [1, 1, 1]} : vector<4x8x8xf32> to vector<1x8x8xf32>
    %101 = vector.shape_cast %100 : vector<1x8x8xf32> to vector<8x8xf32>
    %102 = vector.extract_strided_slice %97 {offsets = [2, 0, 0], sizes = [1, 8, 8], strides = [1, 1, 1]} : vector<4x8x8xf32> to vector<1x8x8xf32>
    %103 = vector.shape_cast %102 : vector<1x8x8xf32> to vector<8x8xf32>
    %104 = vector.extract_strided_slice %97 {offsets = [3, 0, 0], sizes = [1, 8, 8], strides = [1, 1, 1]} : vector<4x8x8xf32> to vector<1x8x8xf32>
    %105 = vector.shape_cast %104 : vector<1x8x8xf32> to vector<8x8xf32>
    %106 = tpu.concatenate %99, %101, %103, %105 in 1 : vector<8x8xf32>, vector<8x8xf32>, vector<8x8xf32>, vector<8x8xf32> -> vector<8x32xf32>
    %107 = arith.truncf %106 : vector<8x32xf32> to vector<8x32xbf16>
    %c0_25 = arith.constant 0 : index
    %c0_26 = arith.constant 0 : index
    %c0_27 = arith.constant 0 : index
    %108 = vector.load %arg7[%c0_25, %c0_26, %c0_27] : memref<2x32x32xbf16, #tpu.memory_space<vmem>>, vector<1x32x32xbf16>
    %109 = vector.shape_cast %108 : vector<1x32x32xbf16> to vector<32x32xbf16>
    %cst_28 = arith.constant dense<0.000000e+00> : vector<8x32xf32>
    %110 = tpu.matmul %107, %109, %cst_28 {dimension_numbers = #tpu.dot_dimension_numbers<[1], [0], [0], [1], [0, 0, 1, 1], [], []>} : vector<8x32xbf16>, vector<32x32xbf16>, vector<8x32xf32> -> vector<8x32xf32>
    %111 = arith.addf %10, %110 : vector<8x32xf32>
    %c0_29 = arith.constant 0 : index
    %c0_30 = arith.constant 0 : index
    %112 = vector.load %arg8[%c0_29, %c0_30] : memref<2x32xf32, #tpu.memory_space<vmem>>, vector<1x32xf32>
    %113 = vector.broadcast %112 : vector<1x32xf32> to vector<8x32xf32>
    %114 = arith.addf %111, %113 : vector<8x32xf32>
    %c0_31 = arith.constant 0 : index
    %c0_32 = arith.constant 0 : index
    %115 = vector.load %arg9[%c0_31, %c0_32] : memref<2x32xf32, #tpu.memory_space<vmem>>, vector<1x32xf32>
    %c0_33 = arith.constant 0 : index
    %c0_34 = arith.constant 0 : index
    %116 = vector.load %arg10[%c0_33, %c0_34] : memref<2x32xf32, #tpu.memory_space<vmem>>, vector<1x32xf32>
    %cst_35 = arith.constant dense<0.000000e+00> : vector<8xf32>
    %117 = vector.multi_reduction <add>, %114, %cst_35 [1] : vector<8x32xf32> to vector<8xf32>
    %118 = vector.shape_cast %117 : vector<8xf32> to vector<8x1xf32>
    %cst_36 = arith.constant 3.200000e+01 : f32
    %119 = vector.broadcast %cst_36 : f32 to vector<8x1xf32>
    %120 = arith.divf %118, %119 : vector<8x1xf32>
    %121 = vector.broadcast %120 : vector<8x1xf32> to vector<8x32xf32>
    %122 = arith.subf %114, %121 : vector<8x32xf32>
    %123 = vector.broadcast %120 : vector<8x1xf32> to vector<8x32xf32>
    %124 = arith.subf %114, %123 : vector<8x32xf32>
    %125 = arith.mulf %122, %124 : vector<8x32xf32>
    %cst_37 = arith.constant dense<0.000000e+00> : vector<8xf32>
    %126 = vector.multi_reduction <add>, %125, %cst_37 [1] : vector<8x32xf32> to vector<8xf32>
    %127 = vector.shape_cast %126 : vector<8xf32> to vector<8x1xf32>
    %cst_38 = arith.constant 3.200000e+01 : f32
    %128 = vector.broadcast %cst_38 : f32 to vector<8x1xf32>
    %129 = arith.divf %127, %128 : vector<8x1xf32>
    %130 = vector.broadcast %120 : vector<8x1xf32> to vector<8x32xf32>
    %131 = arith.subf %114, %130 : vector<8x32xf32>
    %cst_39 = arith.constant 9.99999974E-6 : f32
    %132 = vector.broadcast %cst_39 : f32 to vector<8x1xf32>
    %133 = arith.addf %129, %132 : vector<8x1xf32>
    %134 = math.rsqrt %133 : vector<8x1xf32>
    %135 = vector.broadcast %134 : vector<8x1xf32> to vector<8x32xf32>
    %136 = arith.mulf %131, %135 : vector<8x32xf32>
    %137 = vector.broadcast %115 : vector<1x32xf32> to vector<8x32xf32>
    %138 = arith.mulf %136, %137 : vector<8x32xf32>
    %139 = vector.broadcast %116 : vector<1x32xf32> to vector<8x32xf32>
    %140 = arith.addf %138, %139 : vector<8x32xf32>
    %141 = arith.truncf %140 : vector<8x32xf32> to vector<8x32xbf16>
    %c0_40 = arith.constant 0 : index
    %c0_41 = arith.constant 0 : index
    %c0_42 = arith.constant 0 : index
    %142 = vector.load %arg11[%c0_40, %c0_41, %c0_42] : memref<2x32x128xbf16, #tpu.memory_space<vmem>>, vector<1x32x128xbf16>
    %143 = vector.shape_cast %142 : vector<1x32x128xbf16> to vector<32x128xbf16>
    %cst_43 = arith.constant dense<0.000000e+00> : vector<8x128xf32>
    %144 = tpu.matmul %141, %143, %cst_43 {dimension_numbers = #tpu.dot_dimension_numbers<[1], [0], [0], [1], [0, 0, 1, 1], [], []>} : vector<8x32xbf16>, vector<32x128xbf16>, vector<8x128xf32> -> vector<8x128xf32>
    %c0_44 = arith.constant 0 : index
    %c0_45 = arith.constant 0 : index
    %145 = vector.load %arg12[%c0_44, %c0_45] : memref<2x128xf32, #tpu.memory_space<vmem>>, vector<1x128xf32>
    %146 = vector.broadcast %145 : vector<1x128xf32> to vector<8x128xf32>
    %147 = arith.addf %144, %146 : vector<8x128xf32>
    %cst_46 = arith.constant 0.000000e+00 : f32
    %148 = vector.broadcast %cst_46 : f32 to vector<8x128xf32>
    %149 = arith.maximumf %147, %148 : vector<8x128xf32>
    %150 = arith.truncf %149 : vector<8x128xf32> to vector<8x128xbf16>
    %c0_47 = arith.constant 0 : index
    %c0_48 = arith.constant 0 : index
    %c0_49 = arith.constant 0 : index
    %151 = vector.load %arg13[%c0_47, %c0_48, %c0_49] : memref<2x128x32xbf16, #tpu.memory_space<vmem>>, vector<1x128x32xbf16>
    %152 = vector.shape_cast %151 : vector<1x128x32xbf16> to vector<128x32xbf16>
    %cst_50 = arith.constant dense<0.000000e+00> : vector<8x32xf32>
    %153 = tpu.matmul %150, %152, %cst_50 {dimension_numbers = #tpu.dot_dimension_numbers<[1], [0], [0], [1], [0, 0, 1, 1], [], []>} : vector<8x128xbf16>, vector<128x32xbf16>, vector<8x32xf32> -> vector<8x32xf32>
    %154 = arith.addf %114, %153 : vector<8x32xf32>
    %c0_51 = arith.constant 0 : index
    %c0_52 = arith.constant 0 : index
    %155 = vector.load %arg14[%c0_51, %c0_52] : memref<2x32xf32, #tpu.memory_space<vmem>>, vector<1x32xf32>
    %156 = vector.broadcast %155 : vector<1x32xf32> to vector<8x32xf32>
    %157 = arith.addf %154, %156 : vector<8x32xf32>
    %c1 = arith.constant 1 : index
    %c0_53 = arith.constant 0 : index
    %158 = vector.load %arg4[%c1, %c0_53] : memref<2x32xf32, #tpu.memory_space<vmem>>, vector<1x32xf32>
    %c1_54 = arith.constant 1 : index
    %c0_55 = arith.constant 0 : index
    %159 = vector.load %arg5[%c1_54, %c0_55] : memref<2x32xf32, #tpu.memory_space<vmem>>, vector<1x32xf32>
    %cst_56 = arith.constant dense<0.000000e+00> : vector<8xf32>
    %160 = vector.multi_reduction <add>, %157, %cst_56 [1] : vector<8x32xf32> to vector<8xf32>
    %161 = vector.shape_cast %160 : vector<8xf32> to vector<8x1xf32>
    %cst_57 = arith.constant 3.200000e+01 : f32
    %162 = vector.broadcast %cst_57 : f32 to vector<8x1xf32>
    %163 = arith.divf %161, %162 : vector<8x1xf32>
    %164 = vector.broadcast %163 : vector<8x1xf32> to vector<8x32xf32>
    %165 = arith.subf %157, %164 : vector<8x32xf32>
    %166 = vector.broadcast %163 : vector<8x1xf32> to vector<8x32xf32>
    %167 = arith.subf %157, %166 : vector<8x32xf32>
    %168 = arith.mulf %165, %167 : vector<8x32xf32>
    %cst_58 = arith.constant dense<0.000000e+00> : vector<8xf32>
    %169 = vector.multi_reduction <add>, %168, %cst_58 [1] : vector<8x32xf32> to vector<8xf32>
    %170 = vector.shape_cast %169 : vector<8xf32> to vector<8x1xf32>
    %cst_59 = arith.constant 3.200000e+01 : f32
    %171 = vector.broadcast %cst_59 : f32 to vector<8x1xf32>
    %172 = arith.divf %170, %171 : vector<8x1xf32>
    %173 = vector.broadcast %163 : vector<8x1xf32> to vector<8x32xf32>
    %174 = arith.subf %157, %173 : vector<8x32xf32>
    %cst_60 = arith.constant 9.99999974E-6 : f32
    %175 = vector.broadcast %cst_60 : f32 to vector<8x1xf32>
    %176 = arith.addf %172, %175 : vector<8x1xf32>
    %177 = math.rsqrt %176 : vector<8x1xf32>
    %178 = vector.broadcast %177 : vector<8x1xf32> to vector<8x32xf32>
    %179 = arith.mulf %174, %178 : vector<8x32xf32>
    %180 = vector.broadcast %158 : vector<1x32xf32> to vector<8x32xf32>
    %181 = arith.mulf %179, %180 : vector<8x32xf32>
    %182 = vector.broadcast %159 : vector<1x32xf32> to vector<8x32xf32>
    %183 = arith.addf %181, %182 : vector<8x32xf32>
    %184 = arith.truncf %183 : vector<8x32xf32> to vector<8x32xbf16>
    %c1_61 = arith.constant 1 : index
    %c0_62 = arith.constant 0 : index
    %c0_63 = arith.constant 0 : index
    %185 = vector.load %arg6[%c1_61, %c0_62, %c0_63] : memref<2x32x96xbf16, #tpu.memory_space<vmem>>, vector<1x32x96xbf16>
    %186 = vector.shape_cast %185 : vector<1x32x96xbf16> to vector<32x96xbf16>
    %cst_64 = arith.constant dense<0.000000e+00> : vector<8x96xf32>
    %187 = tpu.matmul %184, %186, %cst_64 {dimension_numbers = #tpu.dot_dimension_numbers<[1], [0], [0], [1], [0, 0, 1, 1], [], []>} : vector<8x32xbf16>, vector<32x96xbf16>, vector<8x96xf32> -> vector<8x96xf32>
    %188 = vector.extract_strided_slice %187 {offsets = [0, 0], sizes = [8, 32], strides = [1, 1]} : vector<8x96xf32> to vector<8x32xf32>
    %189 = vector.extract_strided_slice %188 {offsets = [0, 0], sizes = [8, 8], strides = [1, 1]} : vector<8x32xf32> to vector<8x8xf32>
    %190 = vector.extract_strided_slice %188 {offsets = [0, 8], sizes = [8, 8], strides = [1, 1]} : vector<8x32xf32> to vector<8x8xf32>
    %191 = vector.extract_strided_slice %188 {offsets = [0, 16], sizes = [8, 8], strides = [1, 1]} : vector<8x32xf32> to vector<8x8xf32>
    %192 = vector.extract_strided_slice %188 {offsets = [0, 24], sizes = [8, 8], strides = [1, 1]} : vector<8x32xf32> to vector<8x8xf32>
    %193 = vector.shape_cast %189 : vector<8x8xf32> to vector<1x8x8xf32>
    %194 = vector.shape_cast %190 : vector<8x8xf32> to vector<1x8x8xf32>
    %195 = vector.shape_cast %191 : vector<8x8xf32> to vector<1x8x8xf32>
    %196 = vector.shape_cast %192 : vector<8x8xf32> to vector<1x8x8xf32>
    %197 = tpu.concatenate %193, %194, %195, %196 in 0 : vector<1x8x8xf32>, vector<1x8x8xf32>, vector<1x8x8xf32>, vector<1x8x8xf32> -> vector<4x8x8xf32>
    %198 = arith.truncf %197 : vector<4x8x8xf32> to vector<4x8x8xbf16>
    %199 = vector.extract_strided_slice %187 {offsets = [0, 32], sizes = [8, 32], strides = [1, 1]} : vector<8x96xf32> to vector<8x32xf32>
    %200 = vector.extract_strided_slice %199 {offsets = [0, 0], sizes = [8, 8], strides = [1, 1]} : vector<8x32xf32> to vector<8x8xf32>
    %201 = vector.extract_strided_slice %199 {offsets = [0, 8], sizes = [8, 8], strides = [1, 1]} : vector<8x32xf32> to vector<8x8xf32>
    %202 = vector.extract_strided_slice %199 {offsets = [0, 16], sizes = [8, 8], strides = [1, 1]} : vector<8x32xf32> to vector<8x8xf32>
    %203 = vector.extract_strided_slice %199 {offsets = [0, 24], sizes = [8, 8], strides = [1, 1]} : vector<8x32xf32> to vector<8x8xf32>
    %204 = vector.shape_cast %200 : vector<8x8xf32> to vector<1x8x8xf32>
    %205 = vector.shape_cast %201 : vector<8x8xf32> to vector<1x8x8xf32>
    %206 = vector.shape_cast %202 : vector<8x8xf32> to vector<1x8x8xf32>
    %207 = vector.shape_cast %203 : vector<8x8xf32> to vector<1x8x8xf32>
    %208 = tpu.concatenate %204, %205, %206, %207 in 0 : vector<1x8x8xf32>, vector<1x8x8xf32>, vector<1x8x8xf32>, vector<1x8x8xf32> -> vector<4x8x8xf32>
    %209 = arith.truncf %208 : vector<4x8x8xf32> to vector<4x8x8xbf16>
    %210 = vector.extract_strided_slice %187 {offsets = [0, 64], sizes = [8, 32], strides = [1, 1]} : vector<8x96xf32> to vector<8x32xf32>
    %211 = vector.extract_strided_slice %210 {offsets = [0, 0], sizes = [8, 8], strides = [1, 1]} : vector<8x32xf32> to vector<8x8xf32>
    %212 = vector.extract_strided_slice %210 {offsets = [0, 8], sizes = [8, 8], strides = [1, 1]} : vector<8x32xf32> to vector<8x8xf32>
    %213 = vector.extract_strided_slice %210 {offsets = [0, 16], sizes = [8, 8], strides = [1, 1]} : vector<8x32xf32> to vector<8x8xf32>
    %214 = vector.extract_strided_slice %210 {offsets = [0, 24], sizes = [8, 8], strides = [1, 1]} : vector<8x32xf32> to vector<8x8xf32>
    %215 = vector.shape_cast %211 : vector<8x8xf32> to vector<1x8x8xf32>
    %216 = vector.shape_cast %212 : vector<8x8xf32> to vector<1x8x8xf32>
    %217 = vector.shape_cast %213 : vector<8x8xf32> to vector<1x8x8xf32>
    %218 = vector.shape_cast %214 : vector<8x8xf32> to vector<1x8x8xf32>
    %219 = tpu.concatenate %215, %216, %217, %218 in 0 : vector<1x8x8xf32>, vector<1x8x8xf32>, vector<1x8x8xf32>, vector<1x8x8xf32> -> vector<4x8x8xf32>
    %220 = arith.truncf %219 : vector<4x8x8xf32> to vector<4x8x8xbf16>
    "tpu.trace_start"() <{level = 10 : i32, message = "htd,hsd->hts"}> : () -> ()
    %cst_65 = arith.constant dense<0.000000e+00> : vector<4x8x8xf32>
    %221 = tpu.matmul %198, %209, %cst_65 {dimension_numbers = #tpu.dot_dimension_numbers<[2], [2], [1], [1], [0, 0, 0, 1, 1, 1], [0], [0]>} : vector<4x8x8xbf16>, vector<4x8x8xbf16>, vector<4x8x8xf32> -> vector<4x8x8xf32>
    "tpu.trace_stop"() : () -> ()
    %cst_66 = arith.constant 0.176776692 : f32
    %222 = vector.broadcast %cst_66 : f32 to vector<4x8x8xf32>
    %223 = arith.mulf %221, %222 : vector<4x8x8xf32>
    %224 = arith.addf %223, %19 : vector<4x8x8xf32>
    %cst_67 = arith.constant dense<0xFF800000> : vector<4x8xf32>
    %225 = vector.multi_reduction <maximumf>, %224, %cst_67 [2] : vector<4x8x8xf32> to vector<4x8xf32>
    %226 = vector.shape_cast %225 : vector<4x8xf32> to vector<4x8x1xf32>
    %227 = vector.broadcast %226 : vector<4x8x1xf32> to vector<4x8x8xf32>
    %228 = arith.subf %224, %227 : vector<4x8x8xf32>
    %229 = math.exp %228 : vector<4x8x8xf32>
    %cst_68 = arith.constant dense<0.000000e+00> : vector<4x8xf32>
    %230 = vector.multi_reduction <add>, %229, %cst_68 [2] : vector<4x8x8xf32> to vector<4x8xf32>
    %231 = vector.shape_cast %230 : vector<4x8xf32> to vector<4x8x1xf32>
    %232 = vector.broadcast %231 : vector<4x8x1xf32> to vector<4x8x8xf32>
    %233 = arith.divf %229, %232 : vector<4x8x8xf32>
    %234 = arith.truncf %233 : vector<4x8x8xf32> to vector<4x8x8xbf16>
    "tpu.trace_start"() <{level = 10 : i32, message = "hts,hsd->htd"}> : () -> ()
    %cst_69 = arith.constant dense<0.000000e+00> : vector<4x8x8xf32>
    %235 = tpu.matmul %234, %220, %cst_69 {dimension_numbers = #tpu.dot_dimension_numbers<[2], [1], [1], [2], [0, 0, 0, 1, 1, 2], [0], [0]>} : vector<4x8x8xbf16>, vector<4x8x8xbf16>, vector<4x8x8xf32> -> vector<4x8x8xf32>
    "tpu.trace_stop"() : () -> ()
    %236 = vector.extract_strided_slice %235 {offsets = [0, 0, 0], sizes = [1, 8, 8], strides = [1, 1, 1]} : vector<4x8x8xf32> to vector<1x8x8xf32>
    %237 = vector.shape_cast %236 : vector<1x8x8xf32> to vector<8x8xf32>
    %238 = vector.extract_strided_slice %235 {offsets = [1, 0, 0], sizes = [1, 8, 8], strides = [1, 1, 1]} : vector<4x8x8xf32> to vector<1x8x8xf32>
    %239 = vector.shape_cast %238 : vector<1x8x8xf32> to vector<8x8xf32>
    %240 = vector.extract_strided_slice %235 {offsets = [2, 0, 0], sizes = [1, 8, 8], strides = [1, 1, 1]} : vector<4x8x8xf32> to vector<1x8x8xf32>
    %241 = vector.shape_cast %240 : vector<1x8x8xf32> to vector<8x8xf32>
    %242 = vector.extract_strided_slice %235 {offsets = [3, 0, 0], sizes = [1, 8, 8], strides = [1, 1, 1]} : vector<4x8x8xf32> to vector<1x8x8xf32>
    %243 = vector.shape_cast %242 : vector<1x8x8xf32> to vector<8x8xf32>
    %244 = tpu.concatenate %237, %239, %241, %243 in 1 : vector<8x8xf32>, vector<8x8xf32>, vector<8x8xf32>, vector<8x8xf32> -> vector<8x32xf32>
    %245 = arith.truncf %244 : vector<8x32xf32> to vector<8x32xbf16>
    %c1_70 = arith.constant 1 : index
    %c0_71 = arith.constant 0 : index
    %c0_72 = arith.constant 0 : index
    %246 = vector.load %arg7[%c1_70, %c0_71, %c0_72] : memref<2x32x32xbf16, #tpu.memory_space<vmem>>, vector<1x32x32xbf16>
    %247 = vector.shape_cast %246 : vector<1x32x32xbf16> to vector<32x32xbf16>
    %cst_73 = arith.constant dense<0.000000e+00> : vector<8x32xf32>
    %248 = tpu.matmul %245, %247, %cst_73 {dimension_numbers = #tpu.dot_dimension_numbers<[1], [0], [0], [1], [0, 0, 1, 1], [], []>} : vector<8x32xbf16>, vector<32x32xbf16>, vector<8x32xf32> -> vector<8x32xf32>
    %249 = arith.addf %157, %248 : vector<8x32xf32>
    %c1_74 = arith.constant 1 : index
    %c0_75 = arith.constant 0 : index
    %250 = vector.load %arg8[%c1_74, %c0_75] : memref<2x32xf32, #tpu.memory_space<vmem>>, vector<1x32xf32>
    %251 = vector.broadcast %250 : vector<1x32xf32> to vector<8x32xf32>
    %252 = arith.addf %249, %251 : vector<8x32xf32>
    %c1_76 = arith.constant 1 : index
    %c0_77 = arith.constant 0 : index
    %253 = vector.load %arg9[%c1_76, %c0_77] : memref<2x32xf32, #tpu.memory_space<vmem>>, vector<1x32xf32>
    %c1_78 = arith.constant 1 : index
    %c0_79 = arith.constant 0 : index
    %254 = vector.load %arg10[%c1_78, %c0_79] : memref<2x32xf32, #tpu.memory_space<vmem>>, vector<1x32xf32>
    %cst_80 = arith.constant dense<0.000000e+00> : vector<8xf32>
    %255 = vector.multi_reduction <add>, %252, %cst_80 [1] : vector<8x32xf32> to vector<8xf32>
    %256 = vector.shape_cast %255 : vector<8xf32> to vector<8x1xf32>
    %cst_81 = arith.constant 3.200000e+01 : f32
    %257 = vector.broadcast %cst_81 : f32 to vector<8x1xf32>
    %258 = arith.divf %256, %257 : vector<8x1xf32>
    %259 = vector.broadcast %258 : vector<8x1xf32> to vector<8x32xf32>
    %260 = arith.subf %252, %259 : vector<8x32xf32>
    %261 = vector.broadcast %258 : vector<8x1xf32> to vector<8x32xf32>
    %262 = arith.subf %252, %261 : vector<8x32xf32>
    %263 = arith.mulf %260, %262 : vector<8x32xf32>
    %cst_82 = arith.constant dense<0.000000e+00> : vector<8xf32>
    %264 = vector.multi_reduction <add>, %263, %cst_82 [1] : vector<8x32xf32> to vector<8xf32>
    %265 = vector.shape_cast %264 : vector<8xf32> to vector<8x1xf32>
    %cst_83 = arith.constant 3.200000e+01 : f32
    %266 = vector.broadcast %cst_83 : f32 to vector<8x1xf32>
    %267 = arith.divf %265, %266 : vector<8x1xf32>
    %268 = vector.broadcast %258 : vector<8x1xf32> to vector<8x32xf32>
    %269 = arith.subf %252, %268 : vector<8x32xf32>
    %cst_84 = arith.constant 9.99999974E-6 : f32
    %270 = vector.broadcast %cst_84 : f32 to vector<8x1xf32>
    %271 = arith.addf %267, %270 : vector<8x1xf32>
    %272 = math.rsqrt %271 : vector<8x1xf32>
    %273 = vector.broadcast %272 : vector<8x1xf32> to vector<8x32xf32>
    %274 = arith.mulf %269, %273 : vector<8x32xf32>
    %275 = vector.broadcast %253 : vector<1x32xf32> to vector<8x32xf32>
    %276 = arith.mulf %274, %275 : vector<8x32xf32>
    %277 = vector.broadcast %254 : vector<1x32xf32> to vector<8x32xf32>
    %278 = arith.addf %276, %277 : vector<8x32xf32>
    %279 = arith.truncf %278 : vector<8x32xf32> to vector<8x32xbf16>
    %c1_85 = arith.constant 1 : index
    %c0_86 = arith.constant 0 : index
    %c0_87 = arith.constant 0 : index
    %280 = vector.load %arg11[%c1_85, %c0_86, %c0_87] : memref<2x32x128xbf16, #tpu.memory_space<vmem>>, vector<1x32x128xbf16>
    %281 = vector.shape_cast %280 : vector<1x32x128xbf16> to vector<32x128xbf16>
    %cst_88 = arith.constant dense<0.000000e+00> : vector<8x128xf32>
    %282 = tpu.matmul %279, %281, %cst_88 {dimension_numbers = #tpu.dot_dimension_numbers<[1], [0], [0], [1], [0, 0, 1, 1], [], []>} : vector<8x32xbf16>, vector<32x128xbf16>, vector<8x128xf32> -> vector<8x128xf32>
    %c1_89 = arith.constant 1 : index
    %c0_90 = arith.constant 0 : index
    %283 = vector.load %arg12[%c1_89, %c0_90] : memref<2x128xf32, #tpu.memory_space<vmem>>, vector<1x128xf32>
    %284 = vector.broadcast %283 : vector<1x128xf32> to vector<8x128xf32>
    %285 = arith.addf %282, %284 : vector<8x128xf32>
    %cst_91 = arith.constant 0.000000e+00 : f32
    %286 = vector.broadcast %cst_91 : f32 to vector<8x128xf32>
    %287 = arith.maximumf %285, %286 : vector<8x128xf32>
    %288 = arith.truncf %287 : vector<8x128xf32> to vector<8x128xbf16>
    %c1_92 = arith.constant 1 : index
    %c0_93 = arith.constant 0 : index
    %c0_94 = arith.constant 0 : index
    %289 = vector.load %arg13[%c1_92, %c0_93, %c0_94] : memref<2x128x32xbf16, #tpu.memory_space<vmem>>, vector<1x128x32xbf16>
    %290 = vector.shape_cast %289 : vector<1x128x32xbf16> to vector<128x32xbf16>
    %cst_95 = arith.constant dense<0.000000e+00> : vector<8x32xf32>
    %291 = tpu.matmul %288, %290, %cst_95 {dimension_numbers = #tpu.dot_dimension_numbers<[1], [0], [0], [1], [0, 0, 1, 1], [], []>} : vector<8x128xbf16>, vector<128x32xbf16>, vector<8x32xf32> -> vector<8x32xf32>
    %292 = arith.addf %252, %291 : vector<8x32xf32>
    %c1_96 = arith.constant 1 : index
    %c0_97 = arith.constant 0 : index
    %293 = vector.load %arg14[%c1_96, %c0_97] : memref<2x32xf32, #tpu.memory_space<vmem>>, vector<1x32xf32>
    %294 = vector.broadcast %293 : vector<1x32xf32> to vector<8x32xf32>
    %295 = arith.addf %292, %294 : vector<8x32xf32>
    %c0_98 = arith.constant 0 : index
    %c0_99 = arith.constant 0 : index
    %296 = vector.load %arg15[%c0_98, %c0_99] : memref<1x32xf32, #tpu.memory_space<vmem>>, vector<1x32xf32>
    %c0_100 = arith.constant 0 : index
    %c0_101 = arith.constant 0 : index
    %297 = vector.load %arg16[%c0_100, %c0_101] : memref<1x32xf32, #tpu.memory_space<vmem>>, vector<1x32xf32>
    %cst_102 = arith.constant dense<0.000000e+00> : vector<8xf32>
    %298 = vector.multi_reduction <add>, %295, %cst_102 [1] : vector<8x32xf32> to vector<8xf32>
    %299 = vector.shape_cast %298 : vector<8xf32> to vector<8x1xf32>
    %cst_103 = arith.constant 3.200000e+01 : f32
    %300 = vector.broadcast %cst_103 : f32 to vector<8x1xf32>
    %301 = arith.divf %299, %300 : vector<8x1xf32>
    %302 = vector.broadcast %301 : vector<8x1xf32> to vector<8x32xf32>
    %303 = arith.subf %295, %302 : vector<8x32xf32>
    %304 = vector.broadcast %301 : vector<8x1xf32> to vector<8x32xf32>
    %305 = arith.subf %295, %304 : vector<8x32xf32>
    %306 = arith.mulf %303, %305 : vector<8x32xf32>
    %cst_104 = arith.constant dense<0.000000e+00> : vector<8xf32>
    %307 = vector.multi_reduction <add>, %306, %cst_104 [1] : vector<8x32xf32> to vector<8xf32>
    %308 = vector.shape_cast %307 : vector<8xf32> to vector<8x1xf32>
    %cst_105 = arith.constant 3.200000e+01 : f32
    %309 = vector.broadcast %cst_105 : f32 to vector<8x1xf32>
    %310 = arith.divf %308, %309 : vector<8x1xf32>
    %311 = vector.broadcast %301 : vector<8x1xf32> to vector<8x32xf32>
    %312 = arith.subf %295, %311 : vector<8x32xf32>
    %cst_106 = arith.constant 9.99999974E-6 : f32
    %313 = vector.broadcast %cst_106 : f32 to vector<8x1xf32>
    %314 = arith.addf %310, %313 : vector<8x1xf32>
    %315 = math.rsqrt %314 : vector<8x1xf32>
    %316 = vector.broadcast %315 : vector<8x1xf32> to vector<8x32xf32>
    %317 = arith.mulf %312, %316 : vector<8x32xf32>
    %318 = vector.broadcast %296 : vector<1x32xf32> to vector<8x32xf32>
    %319 = arith.mulf %317, %318 : vector<8x32xf32>
    %320 = vector.broadcast %297 : vector<1x32xf32> to vector<8x32xf32>
    %321 = arith.addf %319, %320 : vector<8x32xf32>
    %322 = arith.truncf %321 : vector<8x32xf32> to vector<8x32xbf16>
    %c0_107 = arith.constant 0 : index
    %c0_108 = arith.constant 0 : index
    %323 = vector.load %arg17[%c0_107, %c0_108] : memref<32x128xbf16, #tpu.memory_space<vmem>>, vector<32x128xbf16>
    %cst_109 = arith.constant dense<0.000000e+00> : vector<8x128xf32>
    %324 = tpu.matmul %322, %323, %cst_109 {dimension_numbers = #tpu.dot_dimension_numbers<[1], [0], [0], [1], [0, 0, 1, 1], [], []>} : vector<8x32xbf16>, vector<32x128xbf16>, vector<8x128xf32> -> vector<8x128xf32>
    %c0_110 = arith.constant 0 : index
    %c0_111 = arith.constant 0 : index
    %325 = vector.load %arg18[%c0_110, %c0_111] : memref<1x128xf32, #tpu.memory_space<vmem>>, vector<1x128xf32>
    %326 = vector.broadcast %325 : vector<1x128xf32> to vector<8x128xf32>
    %327 = arith.addf %324, %326 : vector<8x128xf32>
    %c0_112 = arith.constant 0 : index
    %c0_113 = arith.constant 0 : index
    %328 = vector.load %arg19[%c0_112, %c0_113] : memref<8x128xf32, #tpu.memory_space<vmem>>, vector<8x128xf32>
    tpu.vector_store %arg19[%c0_112, %c0_113], %327 {strides = array<i32>} : memref<8x128xf32, #tpu.memory_space<vmem>>, vector<8x128xf32>,
    return
  }
  func.func @transform_0(%arg0: i32) -> (i32, i32) {
    %c0_i32 = arith.constant 0 : i32
    %c0_i32_0 = arith.constant 0 : i32
    return %arg0, %c0_i32 : i32, i32
  }
  func.func @transform_1(%arg0: i32) -> (i32, i32) {
    %c0_i32 = arith.constant 0 : i32
    %c0_i32_0 = arith.constant 0 : i32
    %c0_i32_1 = arith.constant 0 : i32
    return %c0_i32, %c0_i32_0 : i32, i32
  }
  func.func @transform_2(%arg0: i32) -> (i32, i32) {
    %c0_i32 = arith.constant 0 : i32
    %c0_i32_0 = arith.constant 0 : i32
    %c0_i32_1 = arith.constant 0 : i32
    return %c0_i32, %c0_i32_0 : i32, i32
  }
  func.func @transform_3(%arg0: i32) -> (i32, i32) {
    %c0_i32 = arith.constant 0 : i32
    %c0_i32_0 = arith.constant 0 : i32
    %c0_i32_1 = arith.constant 0 : i32
    return %c0_i32, %c0_i32_0 : i32, i32
  }
  func.func @transform_4(%arg0: i32) -> (i32, i32) {
    %c0_i32 = arith.constant 0 : i32
    %c0_i32_0 = arith.constant 0 : i32
    %c0_i32_1 = arith.constant 0 : i32
    return %c0_i32, %c0_i32_0 : i32, i32
  }
  func.func @transform_5(%arg0: i32) -> (i32, i32, i32) {
    %c0_i32 = arith.constant 0 : i32
    %c0_i32_0 = arith.constant 0 : i32
    %c0_i32_1 = arith.constant 0 : i32
    %c0_i32_2 = arith.constant 0 : i32
    return %c0_i32, %c0_i32_0, %c0_i32_1 : i32, i32, i32
  }
  func.func @transform_6(%arg0: i32) -> (i32, i32, i32) {
    %c0_i32 = arith.constant 0 : i32
    %c0_i32_0 = arith.constant 0 : i32
    %c0_i32_1 = arith.constant 0 : i32
    %c0_i32_2 = arith.constant 0 : i32
    return %c0_i32, %c0_i32_0, %c0_i32_1 : i32, i32, i32
  }
  func.func @transform_7(%arg0: i32) -> (i32, i32) {
    %c0_i32 = arith.constant 0 : i32
    %c0_i32_0 = arith.constant 0 : i32
    %c0_i32_1 = arith.constant 0 : i32
    return %c0_i32, %c0_i32_0 : i32, i32
  }
  func.func @transform_8(%arg0: i32) -> (i32, i32) {
    %c0_i32 = arith.constant 0 : i32
    %c0_i32_0 = arith.constant 0 : i32
    %c0_i32_1 = arith.constant 0 : i32
    return %c0_i32, %c0_i32_0 : i32, i32
  }
  func.func @transform_9(%arg0: i32) -> (i32, i32) {
    %c0_i32 = arith.constant 0 : i32
    %c0_i32_0 = arith.constant 0 : i32
    %c0_i32_1 = arith.constant 0 : i32
    return %c0_i32, %c0_i32_0 : i32, i32
  }
  func.func @transform_10(%arg0: i32) -> (i32, i32, i32) {
    %c0_i32 = arith.constant 0 : i32
    %c0_i32_0 = arith.constant 0 : i32
    %c0_i32_1 = arith.constant 0 : i32
    %c0_i32_2 = arith.constant 0 : i32
    return %c0_i32, %c0_i32_0, %c0_i32_1 : i32, i32, i32
  }
  func.func @transform_11(%arg0: i32) -> (i32, i32) {
    %c0_i32 = arith.constant 0 : i32
    %c0_i32_0 = arith.constant 0 : i32
    %c0_i32_1 = arith.constant 0 : i32
    return %c0_i32, %c0_i32_0 : i32, i32
  }
  func.func @transform_12(%arg0: i32) -> (i32, i32, i32) {
    %c0_i32 = arith.constant 0 : i32
    %c0_i32_0 = arith.constant 0 : i32
    %c0_i32_1 = arith.constant 0 : i32
    %c0_i32_2 = arith.constant 0 : i32
    return %c0_i32, %c0_i32_0, %c0_i32_1 : i32, i32, i32
  }
  func.func @transform_13(%arg0: i32) -> (i32, i32) {
    %c0_i32 = arith.constant 0 : i32
    %c0_i32_0 = arith.constant 0 : i32
    %c0_i32_1 = arith.constant 0 : i32
    return %c0_i32, %c0_i32_0 : i32, i32
  }
  func.func @transform_14(%arg0: i32) -> (i32, i32) {
    %c0_i32 = arith.constant 0 : i32
    %c0_i32_0 = arith.constant 0 : i32
    %c0_i32_1 = arith.constant 0 : i32
    return %c0_i32, %c0_i32_0 : i32, i32
  }
  func.func @transform_15(%arg0: i32) -> (i32, i32) {
    %c0_i32 = arith.constant 0 : i32
    %c0_i32_0 = arith.constant 0 : i32
    %c0_i32_1 = arith.constant 0 : i32
    return %c0_i32, %c0_i32_0 : i32, i32
  }
  func.func @transform_16(%arg0: i32) -> (i32, i32) {
    %c0_i32 = arith.constant 0 : i32
    %c0_i32_0 = arith.constant 0 : i32
    %c0_i32_1 = arith.constant 0 : i32
    return %c0_i32, %c0_i32_0 : i32, i32
  }
  func.func @transform_17(%arg0: i32) -> (i32, i32) {
    %c0_i32 = arith.constant 0 : i32
    %c0_i32_0 = arith.constant 0 : i32
    %c0_i32_1 = arith.constant 0 : i32
    return %c0_i32, %c0_i32_0 : i32, i32
  }
  func.func @transform_18(%arg0: i32) -> (i32, i32) {
    %c0_i32 = arith.constant 0 : i32
    %c0_i32_0 = arith.constant 0 : i32
    return %arg0, %c0_i32 : i32, i32
  }
}

</mosaic_0001>

<llo_original>
// kernel: tpu_custom_call.1
$region0: #{tpu_custom_call.1}
  #allocation0 [shape = 'u32[]', space=smem, size = 0x4, offset = 0x4, fixed_abs, tag = 'smem constant byte address 0x4 - core index']
  #allocation1 [shape = 'u32[144,128]{1,0:T(1,128)}', space=vmem, size = 0x12000, scoped, tag = 'internal scratch']
  %s0 = inlined_call_operand.vmem [shape: s32[16,1], index: 0, kind: input, shape index: {}]
  %s1 = inlined_call_operand.vmem [shape: bf16[128,32], index: 1, kind: input, shape index: {}]
  %s2 = inlined_call_operand.vmem [shape: f32[8,32], index: 2, kind: input, shape index: {}]
  %s3 = inlined_call_operand.vmem [shape: f32[2,32], index: 3, kind: input, shape index: {}]
  %s4 = inlined_call_operand.vmem [shape: f32[2,32], index: 4, kind: input, shape index: {}]
  %s5 = inlined_call_operand.vmem [shape: bf16[2,32,96], index: 5, kind: input, shape index: {}]
  %s6 = inlined_call_operand.vmem [shape: bf16[2,32,32], index: 6, kind: input, shape index: {}]
  %s7 = inlined_call_operand.vmem [shape: f32[2,32], index: 7, kind: input, shape index: {}]
  %s8 = inlined_call_operand.vmem [shape: f32[2,32], index: 8, kind: input, shape index: {}]
  %s9 = inlined_call_operand.vmem [shape: f32[2,32], index: 9, kind: input, shape index: {}]
  %s10 = inlined_call_operand.vmem [shape: bf16[2,32,128], index: 10, kind: input, shape index: {}]
  %s11 = inlined_call_operand.vmem [shape: f32[2,128], index: 11, kind: input, shape index: {}]
  %s12 = inlined_call_operand.vmem [shape: bf16[2,128,32], index: 12, kind: input, shape index: {}]
  %s13 = inlined_call_operand.vmem [shape: f32[2,32], index: 13, kind: input, shape index: {}]
  %s14 = inlined_call_operand.vmem [shape: f32[1,32], index: 14, kind: input, shape index: {}]
  %s15 = inlined_call_operand.vmem [shape: f32[1,32], index: 15, kind: input, shape index: {}]
  %s16 = inlined_call_operand.vmem [shape: bf16[32,128], index: 16, kind: input, shape index: {}]
  %s17 = inlined_call_operand.vmem [shape: f32[1,128], index: 17, kind: input, shape index: {}]
  %s18 = inlined_call_operand.hbm [shape: f32[16,128], index: 18, kind: output, shape index: {}]
  %s19 = sld [smem:[#allocation0]]
  $region105: #{tpu_custom_call.1} parent=0
    _
  %s21 = ssub.s32 1, %s19
  %s22 = scalar_select 0, %s21, %s19
  $region1: #{tpu_custom_call.1} parent=0
    #allocation2 [shape = 'u8[8192]{0}', space=vmem, size = 0x2000, scoped, tag = 'output window, operand 0']
    #allocation3 [shape = 's32[2]{0}', space=sflag, size = 0x8, scoped, tag = 'scoped memory for tpu_custom_call.1']
    %23 = vsyncpa [#allocation3], 0
    %s24 = scalar_lea.sflag [#allocation3], 1
    %25 = vsyncpa %s24, 0
    loop: start=0, step=1, limit=4
    $region2: #{tpu_custom_call.1} parent=1 // loop_pre_header
      _
    $region3: #{tpu_custom_call.1} parent=1 // loop_header
      %s27 = sphi 0, %s31
      %p28 = scmp.ge.s32.totalorder %s27, 4
      %s37 = sphi 0, %s39
      %s40 = sphi 0, %s37
      %s41 = sphi 0, %s40
      %s57 = sphi 0, %s41
      %s61 = sphi 0, %s61
      %s63 = sphi 0, %s61
      %s64 = sphi 0, %s63
      %s78 = sphi 0, %s64
      %s82 = sphi 0, %s82
      %s84 = sphi 0, %s82
      %s85 = sphi 0, %s84
      %s99 = sphi 0, %s85
      %s103 = sphi 0, %s103
      %s105 = sphi 0, %s103
      %s106 = sphi 0, %s105
      %s120 = sphi 0, %s106
      %s124 = sphi 0, %s124
      %s126 = sphi 0, %s124
      %s127 = sphi 0, %s126
      %s141 = sphi 0, %s127
      %s145 = sphi 0, %s145
      %s147 = sphi 0, %s145
      %s148 = sphi 0, %s147
      %s162 = sphi 0, %s148
      %s166 = sphi 0, %s166
      %s168 = sphi 0, %s166
      %s169 = sphi 0, %s168
      %s183 = sphi 0, %s169
      %s187 = sphi 0, %s187
      %s189 = sphi 0, %s187
      %s190 = sphi 0, %s189
      %s204 = sphi 0, %s190
      %s208 = sphi 0, %s208
      %s210 = sphi 0, %s208
      %s211 = sphi 0, %s210
      %s225 = sphi 0, %s211
      %s229 = sphi 0, %s229
      %s231 = sphi 0, %s229
      %s232 = sphi 0, %s231
      %s246 = sphi 0, %s232
      %s250 = sphi 0, %s250
      %s252 = sphi 0, %s250
      %s253 = sphi 0, %s252
      %s267 = sphi 0, %s253
      %s271 = sphi 0, %s271
      %s273 = sphi 0, %s271
      %s274 = sphi 0, %s273
      %s288 = sphi 0, %s274
      %s292 = sphi 0, %s292
      %s294 = sphi 0, %s292
      %s295 = sphi 0, %s294
      %s309 = sphi 0, %s295
      %s313 = sphi 0, %s313
      %s315 = sphi 0, %s313
      %s316 = sphi 0, %s315
      %s330 = sphi 0, %s316
      %s334 = sphi 0, %s334
      %s336 = sphi 0, %s334
      %s337 = sphi 0, %s336
      %s351 = sphi 0, %s337
      %s355 = sphi 0, %s355
      %s357 = sphi 0, %s355
      %s358 = sphi 0, %s357
      %s372 = sphi 0, %s358
      %s376 = sphi 0, %s376
      %s378 = sphi 0, %s376
      %s379 = sphi 0, %s378
      %s393 = sphi 0, %s379
      %s397 = sphi 0, %s397
      %s399 = sphi 0, %s397
      %s400 = sphi 0, %s399
      %s414 = sphi 0, %s400
      %s420 = sphi 0, %s422
      %s423 = sphi 0, %s420
      %s424 = sphi 0, %s423
      %s440 = sphi 0, %s424
    $region4: #{tpu_custom_call.1} parent=1 // loop_header_branch
      %30 = sbr.rel (%p28) target = $region8
    $region5: #{tpu_custom_call.1} parent=1 // loop_body
      %s32 = ssub.s32 %s27, 1
      %s33 = ssub.s32 %s27, 2
      %s34 = sadd.s32 %s27, 1
      %s35 = ssub.s32 %s27, %s34
      %p36 = scmp.eq.s32.totalorder %s35, 0
      %s38 = sadd.s32 %s37, 1
      %s39 = scalar_select %p36, %s37, %s38
      %p42 = pneg %p36
      %p43 = scmp.eq.s32.totalorder %s27, 1
      %p44 = por %p42, %p43
      %p45 = scmp.ne.s32.totalorder %s37, %s40
      %p46 = scmp.eq.s32.totalorder %s27, 0
      %p47 = por %p45, %p46
      %p48 = scmp.ne.s32.totalorder %s37, %s40
      %p49 = scmp.eq.s32.totalorder %s32, 1
      %p50 = por %p48, %p49
      %p51 = scmp.ne.s32.totalorder %s40, %s41
      %p52 = scmp.eq.s32.totalorder %s32, 0
      %p53 = por %p51, %p52
      %p54 = scmp.ne.s32.totalorder %s40, %s41
      %p55 = scmp.eq.s32.totalorder %s33, 1
      %p56 = por %p54, %p55
      %p58 = scmp.ne.s32.totalorder %s41, %s57
      %p59 = scmp.eq.s32.totalorder %s33, 0
      %p60 = por %p58, %p59
      %s62 = sadd.s32 %s61, 1
      %p65 = scmp.eq.s32.totalorder %s27, 1
      %p66 = scmp.ne.s32.totalorder %s61, %s63
      %p67 = scmp.eq.s32.totalorder %s27, 0
      %p68 = por %p66, %p67
      %p69 = scmp.ne.s32.totalorder %s61, %s63
      %p70 = scmp.eq.s32.totalorder %s32, 1
      %p71 = por %p69, %p70
      %p72 = scmp.ne.s32.totalorder %s63, %s64
      %p73 = scmp.eq.s32.totalorder %s32, 0
      %p74 = por %p72, %p73
      %p75 = scmp.ne.s32.totalorder %s63, %s64
      %p76 = scmp.eq.s32.totalorder %s33, 1
      %p77 = por %p75, %p76
      %p79 = scmp.ne.s32.totalorder %s64, %s78
      %p80 = scmp.eq.s32.totalorder %s33, 0
      %p81 = por %p79, %p80
      %s83 = sadd.s32 %s82, 1
      %p86 = scmp.eq.s32.totalorder %s27, 1
      %p87 = scmp.ne.s32.totalorder %s82, %s84
      %p88 = scmp.eq.s32.totalorder %s27, 0
      %p89 = por %p87, %p88
      %p90 = scmp.ne.s32.totalorder %s82, %s84
      %p91 = scmp.eq.s32.totalorder %s32, 1
      %p92 = por %p90, %p91
      %p93 = scmp.ne.s32.totalorder %s84, %s85
      %p94 = scmp.eq.s32.totalorder %s32, 0
      %p95 = por %p93, %p94
      %p96 = scmp.ne.s32.totalorder %s84, %s85
      %p97 = scmp.eq.s32.totalorder %s33, 1
      %p98 = por %p96, %p97
      %p100 = scmp.ne.s32.totalorder %s85, %s99
      %p101 = scmp.eq.s32.totalorder %s33, 0
      %p102 = por %p100, %p101
      %s104 = sadd.s32 %s103, 1
      %p107 = scmp.eq.s32.totalorder %s27, 1
      %p108 = scmp.ne.s32.totalorder %s103, %s105
      %p109 = scmp.eq.s32.totalorder %s27, 0
      %p110 = por %p108, %p109
      %p111 = scmp.ne.s32.totalorder %s103, %s105
      %p112 = scmp.eq.s32.totalorder %s32, 1
      %p113 = por %p111, %p112
      %p114 = scmp.ne.s32.totalorder %s105, %s106
      %p115 = scmp.eq.s32.totalorder %s32, 0
      %p116 = por %p114, %p115
      %p117 = scmp.ne.s32.totalorder %s105, %s106
      %p118 = scmp.eq.s32.totalorder %s33, 1
      %p119 = por %p117, %p118
      %p121 = scmp.ne.s32.totalorder %s106, %s120
      %p122 = scmp.eq.s32.totalorder %s33, 0
      %p123 = por %p121, %p122
      %s125 = sadd.s32 %s124, 1
      %p128 = scmp.eq.s32.totalorder %s27, 1
      %p129 = scmp.ne.s32.totalorder %s124, %s126
      %p130 = scmp.eq.s32.totalorder %s27, 0
      %p131 = por %p129, %p130
      %p132 = scmp.ne.s32.totalorder %s124, %s126
      %p133 = scmp.eq.s32.totalorder %s32, 1
      %p134 = por %p132, %p133
      %p135 = scmp.ne.s32.totalorder %s126, %s127
      %p136 = scmp.eq.s32.totalorder %s32, 0
      %p137 = por %p135, %p136
      %p138 = scmp.ne.s32.totalorder %s126, %s127
      %p139 = scmp.eq.s32.totalorder %s33, 1
      %p140 = por %p138, %p139
      %p142 = scmp.ne.s32.totalorder %s127, %s141
      %p143 = scmp.eq.s32.totalorder %s33, 0
      %p144 = por %p142, %p143
      %s146 = sadd.s32 %s145, 1
      %p149 = scmp.eq.s32.totalorder %s27, 1
      %p150 = scmp.ne.s32.totalorder %s145, %s147
      %p151 = scmp.eq.s32.totalorder %s27, 0
      %p152 = por %p150, %p151
      %p153 = scmp.ne.s32.totalorder %s145, %s147
      %p154 = scmp.eq.s32.totalorder %s32, 1
      %p155 = por %p153, %p154
      %p156 = scmp.ne.s32.totalorder %s147, %s148
      %p157 = scmp.eq.s32.totalorder %s32, 0
      %p158 = por %p156, %p157
      %p159 = scmp.ne.s32.totalorder %s147, %s148
      %p160 = scmp.eq.s32.totalorder %s33, 1
      %p161 = por %p159, %p160
      %p163 = scmp.ne.s32.totalorder %s148, %s162
      %p164 = scmp.eq.s32.totalorder %s33, 0
      %p165 = por %p163, %p164
      %s167 = sadd.s32 %s166, 1
      %p170 = scmp.eq.s32.totalorder %s27, 1
      %p171 = scmp.ne.s32.totalorder %s166, %s168
      %p172 = scmp.eq.s32.totalorder %s27, 0
      %p173 = por %p171, %p172
      %p174 = scmp.ne.s32.totalorder %s166, %s168
      %p175 = scmp.eq.s32.totalorder %s32, 1
      %p176 = por %p174, %p175
      %p177 = scmp.ne.s32.totalorder %s168, %s169
      %p178 = scmp.eq.s32.totalorder %s32, 0
      %p179 = por %p177, %p178
      %p180 = scmp.ne.s32.totalorder %s168, %s169
      %p181 = scmp.eq.s32.totalorder %s33, 1
      %p182 = por %p180, %p181
      %p184 = scmp.ne.s32.totalorder %s169, %s183
      %p185 = scmp.eq.s32.totalorder %s33, 0
      %p186 = por %p184, %p185
      %s188 = sadd.s32 %s187, 1
      %p191 = scmp.eq.s32.totalorder %s27, 1
      %p192 = scmp.ne.s32.totalorder %s187, %s189
      %p193 = scmp.eq.s32.totalorder %s27, 0
      %p194 = por %p192, %p193
      %p195 = scmp.ne.s32.totalorder %s187, %s189
      %p196 = scmp.eq.s32.totalorder %s32, 1
      %p197 = por %p195, %p196
      %p198 = scmp.ne.s32.totalorder %s189, %s190
      %p199 = scmp.eq.s32.totalorder %s32, 0
      %p200 = por %p198, %p199
      %p201 = scmp.ne.s32.totalorder %s189, %s190
      %p202 = scmp.eq.s32.totalorder %s33, 1
      %p203 = por %p201, %p202
      %p205 = scmp.ne.s32.totalorder %s190, %s204
      %p206 = scmp.eq.s32.totalorder %s33, 0
      %p207 = por %p205, %p206
      %s209 = sadd.s32 %s208, 1
      %p212 = scmp.eq.s32.totalorder %s27, 1
      %p213 = scmp.ne.s32.totalorder %s208, %s210
      %p214 = scmp.eq.s32.totalorder %s27, 0
      %p215 = por %p213, %p214
      %p216 = scmp.ne.s32.totalorder %s208, %s210
      %p217 = scmp.eq.s32.totalorder %s32, 1
      %p218 = por %p216, %p217
      %p219 = scmp.ne.s32.totalorder %s210, %s211
      %p220 = scmp.eq.s32.totalorder %s32, 0
      %p221 = por %p219, %p220
      %p222 = scmp.ne.s32.totalorder %s210, %s211
      %p223 = scmp.eq.s32.totalorder %s33, 1
      %p224 = por %p222, %p223
      %p226 = scmp.ne.s32.totalorder %s211, %s225
      %p227 = scmp.eq.s32.totalorder %s33, 0
      %p228 = por %p226, %p227
      %s230 = sadd.s32 %s229, 1
      %p233 = scmp.eq.s32.totalorder %s27, 1
      %p234 = scmp.ne.s32.totalorder %s229, %s231
      %p235 = scmp.eq.s32.totalorder %s27, 0
      %p236 = por %p234, %p235
      %p237 = scmp.ne.s32.totalorder %s229, %s231
      %p238 = scmp.eq.s32.totalorder %s32, 1
      %p239 = por %p237, %p238
      %p240 = scmp.ne.s32.totalorder %s231, %s232
      %p241 = scmp.eq.s32.totalorder %s32, 0
      %p242 = por %p240, %p241
      %p243 = scmp.ne.s32.totalorder %s231, %s232
      %p244 = scmp.eq.s32.totalorder %s33, 1
      %p245 = por %p243, %p244
      %p247 = scmp.ne.s32.totalorder %s232, %s246
      %p248 = scmp.eq.s32.totalorder %s33, 0
      %p249 = por %p247, %p248
      %s251 = sadd.s32 %s250, 1
      %p254 = scmp.eq.s32.totalorder %s27, 1
      %p255 = scmp.ne.s32.totalorder %s250, %s252
      %p256 = scmp.eq.s32.totalorder %s27, 0
      %p257 = por %p255, %p256
      %p258 = scmp.ne.s32.totalorder %s250, %s252
      %p259 = scmp.eq.s32.totalorder %s32, 1
      %p260 = por %p258, %p259
      %p261 = scmp.ne.s32.totalorder %s252, %s253
      %p262 = scmp.eq.s32.totalorder %s32, 0
      %p263 = por %p261, %p262
      %p264 = scmp.ne.s32.totalorder %s252, %s253
      %p265 = scmp.eq.s32.totalorder %s33, 1
      %p266 = por %p264, %p265
      %p268 = scmp.ne.s32.totalorder %s253, %s267
      %p269 = scmp.eq.s32.totalorder %s33, 0
      %p270 = por %p268, %p269
      %s272 = sadd.s32 %s271, 1
      %p275 = scmp.eq.s32.totalorder %s27, 1
      %p276 = scmp.ne.s32.totalorder %s271, %s273
      %p277 = scmp.eq.s32.totalorder %s27, 0
      %p278 = por %p276, %p277
      %p279 = scmp.ne.s32.totalorder %s271, %s273
      %p280 = scmp.eq.s32.totalorder %s32, 1
      %p281 = por %p279, %p280
      %p282 = scmp.ne.s32.totalorder %s273, %s274
      %p283 = scmp.eq.s32.totalorder %s32, 0
      %p284 = por %p282, %p283
      %p285 = scmp.ne.s32.totalorder %s273, %s274
      %p286 = scmp.eq.s32.totalorder %s33, 1
      %p287 = por %p285, %p286
      %p289 = scmp.ne.s32.totalorder %s274, %s288
      %p290 = scmp.eq.s32.totalorder %s33, 0
      %p291 = por %p289, %p290
      %s293 = sadd.s32 %s292, 1
      %p296 = scmp.eq.s32.totalorder %s27, 1
      %p297 = scmp.ne.s32.totalorder %s292, %s294
      %p298 = scmp.eq.s32.totalorder %s27, 0
      %p299 = por %p297, %p298
      %p300 = scmp.ne.s32.totalorder %s292, %s294
      %p301 = scmp.eq.s32.totalorder %s32, 1
      %p302 = por %p300, %p301
      %p303 = scmp.ne.s32.totalorder %s294, %s295
      %p304 = scmp.eq.s32.totalorder %s32, 0
      %p305 = por %p303, %p304
      %p306 = scmp.ne.s32.totalorder %s294, %s295
      %p307 = scmp.eq.s32.totalorder %s33, 1
      %p308 = por %p306, %p307
      %p310 = scmp.ne.s32.totalorder %s295, %s309
      %p311 = scmp.eq.s32.totalorder %s33, 0
      %p312 = por %p310, %p311
      %s314 = sadd.s32 %s313, 1
      %p317 = scmp.eq.s32.totalorder %s27, 1
      %p318 = scmp.ne.s32.totalorder %s313, %s315
      %p319 = scmp.eq.s32.totalorder %s27, 0
      %p320 = por %p318, %p319
      %p321 = scmp.ne.s32.totalorder %s313, %s315
      %p322 = scmp.eq.s32.totalorder %s32, 1
      %p323 = por %p321, %p322
      %p324 = scmp.ne.s32.totalorder %s315, %s316
      %p325 = scmp.eq.s32.totalorder %s32, 0
      %p326 = por %p324, %p325
      %p327 = scmp.ne.s32.totalorder %s315, %s316
      %p328 = scmp.eq.s32.totalorder %s33, 1
      %p329 = por %p327, %p328
      %p331 = scmp.ne.s32.totalorder %s316, %s330
      %p332 = scmp.eq.s32.totalorder %s33, 0
      %p333 = por %p331, %p332
      %s335 = sadd.s32 %s334, 1
      %p338 = scmp.eq.s32.totalorder %s27, 1
      %p339 = scmp.ne.s32.totalorder %s334, %s336
      %p340 = scmp.eq.s32.totalorder %s27, 0
      %p341 = por %p339, %p340
      %p342 = scmp.ne.s32.totalorder %s334, %s336
      %p343 = scmp.eq.s32.totalorder %s32, 1
      %p344 = por %p342, %p343
      %p345 = scmp.ne.s32.totalorder %s336, %s337
      %p346 = scmp.eq.s32.totalorder %s32, 0
      %p347 = por %p345, %p346
      %p348 = scmp.ne.s32.totalorder %s336, %s337
      %p349 = scmp.eq.s32.totalorder %s33, 1
      %p350 = por %p348, %p349
      %p352 = scmp.ne.s32.totalorder %s337, %s351
      %p353 = scmp.eq.s32.totalorder %s33, 0
      %p354 = por %p352, %p353
      %s356 = sadd.s32 %s355, 1
      %p359 = scmp.eq.s32.totalorder %s27, 1
      %p360 = scmp.ne.s32.totalorder %s355, %s357
      %p361 = scmp.eq.s32.totalorder %s27, 0
      %p362 = por %p360, %p361
      %p363 = scmp.ne.s32.totalorder %s355, %s357
      %p364 = scmp.eq.s32.totalorder %s32, 1
      %p365 = por %p363, %p364
      %p366 = scmp.ne.s32.totalorder %s357, %s358
      %p367 = scmp.eq.s32.totalorder %s32, 0
      %p368 = por %p366, %p367
      %p369 = scmp.ne.s32.totalorder %s357, %s358
      %p370 = scmp.eq.s32.totalorder %s33, 1
      %p371 = por %p369, %p370
      %p373 = scmp.ne.s32.totalorder %s358, %s372
      %p374 = scmp.eq.s32.totalorder %s33, 0
      %p375 = por %p373, %p374
      %s377 = sadd.s32 %s376, 1
      %p380 = scmp.eq.s32.totalorder %s27, 1
      %p381 = scmp.ne.s32.totalorder %s376, %s378
      %p382 = scmp.eq.s32.totalorder %s27, 0
      %p383 = por %p381, %p382
      %p384 = scmp.ne.s32.totalorder %s376, %s378
      %p385 = scmp.eq.s32.totalorder %s32, 1
      %p386 = por %p384, %p385
      %p387 = scmp.ne.s32.totalorder %s378, %s379
      %p388 = scmp.eq.s32.totalorder %s32, 0
      %p389 = por %p387, %p388
      %p390 = scmp.ne.s32.totalorder %s378, %s379
      %p391 = scmp.eq.s32.totalorder %s33, 1
      %p392 = por %p390, %p391
      %p394 = scmp.ne.s32.totalorder %s379, %s393
      %p395 = scmp.eq.s32.totalorder %s33, 0
      %p396 = por %p394, %p395
      %s398 = sadd.s32 %s397, 1
      %p401 = scmp.eq.s32.totalorder %s27, 1
      %p402 = scmp.ne.s32.totalorder %s397, %s399
      %p403 = scmp.eq.s32.totalorder %s27, 0
      %p404 = por %p402, %p403
      %p405 = scmp.ne.s32.totalorder %s397, %s399
      %p406 = scmp.eq.s32.totalorder %s32, 1
      %p407 = por %p405, %p406
      %p408 = scmp.ne.s32.totalorder %s399, %s400
      %p409 = scmp.eq.s32.totalorder %s32, 0
      %p410 = por %p408, %p409
      %p411 = scmp.ne.s32.totalorder %s399, %s400
      %p412 = scmp.eq.s32.totalorder %s33, 1
      %p413 = por %p411, %p412
      %p415 = scmp.ne.s32.totalorder %s400, %s414
      %p416 = scmp.eq.s32.totalorder %s33, 0
      %p417 = por %p415, %p416
      %s418 = ssub.s32 %s27, %s34
      %p419 = scmp.eq.s32.totalorder %s418, 0
      %s421 = sadd.s32 %s420, 1
      %s422 = scalar_select %p419, %s420, %s421
      %p425 = pneg %p419
      %p426 = scmp.eq.s32.totalorder %s27, 1
      %p427 = por %p425, %p426
      %p428 = scmp.ne.s32.totalorder %s420, %s423
      %p429 = scmp.eq.s32.totalorder %s27, 0
      %p430 = por %p428, %p429
      %p431 = scmp.ne.s32.totalorder %s420, %s423
      %p432 = scmp.eq.s32.totalorder %s32, 1
      %p433 = por %p431, %p432
      %p434 = scmp.ne.s32.totalorder %s423, %s424
      %p435 = scmp.eq.s32.totalorder %s32, 0
      %p436 = por %p434, %p435
      %p437 = scmp.ne.s32.totalorder %s423, %s424
      %p438 = scmp.eq.s32.totalorder %s33, 1
      %p439 = por %p437, %p438
      %p441 = scmp.ne.s32.totalorder %s424, %s440
      %p442 = scmp.eq.s32.totalorder %s33, 0
      %p443 = por %p441, %p442
      %p444 = scmp.le.s32.totalorder 1, %s27
      %p445 = scmp.lt.s32.totalorder %s27, 3
      %p446 = pnand %p444, %p445
      %p447 = pneg %p446
      // Predicated region
      $region9: #{tpu_custom_call.1} parent=5 // pred_check
        _
      $region10: #{tpu_custom_call.1} parent=5 // pred_check_branch
        %449 = sbr.rel (%p446) target = $region12
      $region11: #{tpu_custom_call.1} parent=5 // pred_region
        %s450 = ssub.s32 %s27, 1
        // Predicated region
        $region13: #{tpu_custom_call.1} parent=11 // pred_check
          %p451 = pneg %p74
        $region14: #{tpu_custom_call.1} parent=11 // pred_check_branch
          %453 = sbr.rel (%p451) target = $region16
        $region15: #{tpu_custom_call.1} parent=11 // pred_region
          _
        $region16: #{tpu_custom_call.1} parent=11 // pred_fallthru
          _
        // Predicated region
        $region17: #{tpu_custom_call.1} parent=11 // pred_check
          %p454 = pneg %p95
        $region18: #{tpu_custom_call.1} parent=11 // pred_check_branch
          %456 = sbr.rel (%p454) target = $region20
        $region19: #{tpu_custom_call.1} parent=11 // pred_region
          _
        $region20: #{tpu_custom_call.1} parent=11 // pred_fallthru
          _
        // Predicated region
        $region21: #{tpu_custom_call.1} parent=11 // pred_check
          %p457 = pneg %p116
        $region22: #{tpu_custom_call.1} parent=11 // pred_check_branch
          %459 = sbr.rel (%p457) target = $region24
        $region23: #{tpu_custom_call.1} parent=11 // pred_region
          _
        $region24: #{tpu_custom_call.1} parent=11 // pred_fallthru
          _
        // Predicated region
        $region25: #{tpu_custom_call.1} parent=11 // pred_check
          %p460 = pneg %p137
        $region26: #{tpu_custom_call.1} parent=11 // pred_check_branch
          %462 = sbr.rel (%p460) target = $region28
        $region27: #{tpu_custom_call.1} parent=11 // pred_region
          _
        $region28: #{tpu_custom_call.1} parent=11 // pred_fallthru
          _
        // Predicated region
        $region29: #{tpu_custom_call.1} parent=11 // pred_check
          %p463 = pneg %p158
        $region30: #{tpu_custom_call.1} parent=11 // pred_check_branch
          %465 = sbr.rel (%p463) target = $region32
        $region31: #{tpu_custom_call.1} parent=11 // pred_region
          _
        $region32: #{tpu_custom_call.1} parent=11 // pred_fallthru
          _
        // Predicated region
        $region33: #{tpu_custom_call.1} parent=11 // pred_check
          %p466 = pneg %p179
        $region34: #{tpu_custom_call.1} parent=11 // pred_check_branch
          %468 = sbr.rel (%p466) target = $region36
        $region35: #{tpu_custom_call.1} parent=11 // pred_region
          _
        $region36: #{tpu_custom_call.1} parent=11 // pred_fallthru
          _
        // Predicated region
        $region37: #{tpu_custom_call.1} parent=11 // pred_check
          %p469 = pneg %p200
        $region38: #{tpu_custom_call.1} parent=11 // pred_check_branch
          %471 = sbr.rel (%p469) target = $region40
        $region39: #{tpu_custom_call.1} parent=11 // pred_region
          _
        $region40: #{tpu_custom_call.1} parent=11 // pred_fallthru
          _
        // Predicated region
        $region41: #{tpu_custom_call.1} parent=11 // pred_check
          %p472 = pneg %p221
        $region42: #{tpu_custom_call.1} parent=11 // pred_check_branch
          %474 = sbr.rel (%p472) target = $region44
        $region43: #{tpu_custom_call.1} parent=11 // pred_region
          _
        $region44: #{tpu_custom_call.1} parent=11 // pred_fallthru
          _
        // Predicated region
        $region45: #{tpu_custom_call.1} parent=11 // pred_check
          %p475 = pneg %p242
        $region46: #{tpu_custom_call.1} parent=11 // pred_check_branch
          %477 = sbr.rel (%p475) target = $region48
        $region47: #{tpu_custom_call.1} parent=11 // pred_region
          _
        $region48: #{tpu_custom_call.1} parent=11 // pred_fallthru
          _
        // Predicated region
        $region49: #{tpu_custom_call.1} parent=11 // pred_check
          %p478 = pneg %p263
        $region50: #{tpu_custom_call.1} parent=11 // pred_check_branch
          %480 = sbr.rel (%p478) target = $region52
        $region51: #{tpu_custom_call.1} parent=11 // pred_region
          _
        $region52: #{tpu_custom_call.1} parent=11 // pred_fallthru
          _
        // Predicated region
        $region53: #{tpu_custom_call.1} parent=11 // pred_check
          %p481 = pneg %p284
        $region54: #{tpu_custom_call.1} parent=11 // pred_check_branch
          %483 = sbr.rel (%p481) target = $region56
        $region55: #{tpu_custom_call.1} parent=11 // pred_region
          _
        $region56: #{tpu_custom_call.1} parent=11 // pred_fallthru
          _
        // Predicated region
        $region57: #{tpu_custom_call.1} parent=11 // pred_check
          %p484 = pneg %p305
        $region58: #{tpu_custom_call.1} parent=11 // pred_check_branch
          %486 = sbr.rel (%p484) target = $region60
        $region59: #{tpu_custom_call.1} parent=11 // pred_region
          _
        $region60: #{tpu_custom_call.1} parent=11 // pred_fallthru
          _
        // Predicated region
        $region61: #{tpu_custom_call.1} parent=11 // pred_check
          %p487 = pneg %p326
        $region62: #{tpu_custom_call.1} parent=11 // pred_check_branch
          %489 = sbr.rel (%p487) target = $region64
        $region63: #{tpu_custom_call.1} parent=11 // pred_region
          _
        $region64: #{tpu_custom_call.1} parent=11 // pred_fallthru
          _
        // Predicated region
        $region65: #{tpu_custom_call.1} parent=11 // pred_check
          %p490 = pneg %p347
        $region66: #{tpu_custom_call.1} parent=11 // pred_check_branch
          %492 = sbr.rel (%p490) target = $region68
        $region67: #{tpu_custom_call.1} parent=11 // pred_region
          _
        $region68: #{tpu_custom_call.1} parent=11 // pred_fallthru
          _
        // Predicated region
        $region69: #{tpu_custom_call.1} parent=11 // pred_check
          %p493 = pneg %p368
        $region70: #{tpu_custom_call.1} parent=11 // pred_check_branch
          %495 = sbr.rel (%p493) target = $region72
        $region71: #{tpu_custom_call.1} parent=11 // pred_region
          _
        $region72: #{tpu_custom_call.1} parent=11 // pred_fallthru
          _
        // Predicated region
        $region73: #{tpu_custom_call.1} parent=11 // pred_check
          %p496 = pneg %p389
        $region74: #{tpu_custom_call.1} parent=11 // pred_check_branch
          %498 = sbr.rel (%p496) target = $region76
        $region75: #{tpu_custom_call.1} parent=11 // pred_region
          _
        $region76: #{tpu_custom_call.1} parent=11 // pred_fallthru
          _
        // Predicated region
        $region77: #{tpu_custom_call.1} parent=11 // pred_check
          %p499 = pneg %p410
        $region78: #{tpu_custom_call.1} parent=11 // pred_check_branch
          %501 = sbr.rel (%p499) target = $region80
        $region79: #{tpu_custom_call.1} parent=11 // pred_region
          _
        $region80: #{tpu_custom_call.1} parent=11 // pred_fallthru
          _
      $region12: #{tpu_custom_call.1} parent=5 // pred_fallthru
        _
      %p502 = scmp.lt.s32.totalorder %s27, 2
      // Predicated region
      $region81: #{tpu_custom_call.1} parent=5 // pred_check
        %p503 = pneg %p502
      $region82: #{tpu_custom_call.1} parent=5 // pred_check_branch
        %505 = sbr.rel (%p503) target = $region84
      $region83: #{tpu_custom_call.1} parent=5 // pred_region
        // Predicated region
        $region85: #{tpu_custom_call.1} parent=83 // pred_check
          %p506 = pneg %p47
        $region86: #{tpu_custom_call.1} parent=83 // pred_check_branch
          %508 = sbr.rel (%p506) target = $region88
        $region87: #{tpu_custom_call.1} parent=83 // pred_region
          %p509 = scmp.lt.s32.totalorder %s27, 1
          %s510 = scalar_select %p509, %s27, 1
          %s511 = smul.addr %s510, 8
          %s512 = scalar_lea.vmem %s0, %s511
        $region88: #{tpu_custom_call.1} parent=83 // pred_fallthru
          _
      $region84: #{tpu_custom_call.1} parent=5 // pred_fallthru
        _
      %p513 = scmp.le.s32.totalorder 1, %s27
      %p514 = scmp.lt.s32.totalorder %s27, 3
      %p515 = pnand %p513, %p514
      %p516 = pneg %p515
      // Predicated region
      $region89: #{tpu_custom_call.1} parent=5 // pred_check
        _
      $region90: #{tpu_custom_call.1} parent=5 // pred_check_branch
        %518 = sbr.rel (%p515) target = $region92
      $region91: #{tpu_custom_call.1} parent=5 // pred_region
        %s519 = ssub.s32 %s27, 1
        %p520 = scmp.lt.s32.totalorder %s32, 1
        %s521 = scalar_select %p520, %s32, 1
        %s522 = smul.addr %s521, 8
        %s523 = scalar_lea.vmem %s0, %s522
        %p524 = pneg %p53
        %p525 = pneg %p50
        %p526 = pneg %p74
        %p527 = pneg %p71
        %p528 = pneg %p95
        %p529 = pneg %p92
        %p530 = pneg %p116
        %p531 = pneg %p113
        %p532 = pneg %p137
        %p533 = pneg %p134
        %p534 = pneg %p158
        %p535 = pneg %p155
        %p536 = pneg %p179
        %p537 = pneg %p176
        %p538 = pneg %p200
        %p539 = pneg %p197
        %p540 = pneg %p221
        %p541 = pneg %p218
        %p542 = pneg %p242
        %p543 = pneg %p239
        %p544 = pneg %p263
        %p545 = pneg %p260
        %p546 = pneg %p284
        %p547 = pneg %p281
        %p548 = pneg %p305
        %p549 = pneg %p302
        %p550 = pneg %p326
        %p551 = pneg %p323
        %p552 = pneg %p347
        %p553 = pneg %p344
        %p554 = pneg %p368
        %p555 = pneg %p365
        %p556 = pneg %p389
        %p557 = pneg %p386
        %p558 = pneg %p410
        %p559 = pneg %p407
        %p560 = pneg %p436
        %p561 = pneg %p433
        %s562 = sand.u32 %s423, 1
        %s563 = scalar_lea.sflag [#allocation3], %s562
        %s564 = sand.u32 %s423, 1
        %s565 = smul.addr %s564, 8
        %s566 = scalar_lea.vmem [#allocation2], %s565
        %p567 = scmp.lt.s32.totalorder %s32, 1
        %s568 = scalar_select %p567, %s32, 1
        %s569 = smul.addr %s568, 8
        %s570 = scalar_lea.vmem %s0, %s569
        %v572 = vld [vmem:[%s570] sm:$0xff]
        %v573 = vlaneseq
        %v574 = vand.u32 %v573, 127
        %575 = vset.pattern.permute.xlu0 0
        %576 = vperm.xlu0 %575, %v572
        %v577 = vpop.permute.xlu0 %576
        %vm578 = vcmp.eq.s32.totalorder %v577, %v574
        %v579 = vsel %vm578, 1, 0
        %v580 = vcvt.s32.f32 %v579
        %v581 = vpack.c.bf16 %v580, %v580
        %v582 = vld [vmem:[%s1] sm:$0xf]
        %v583 = vld [vmem:[%s1 + $0x4] sm:$0xf]
        %v584 = vld [vmem:[%s1 + $0x8] sm:$0xf]
        %v585 = vld [vmem:[%s1 + $0xc] sm:$0xf]
        %v586 = vld [vmem:[%s1 + $0x10] sm:$0xf]
        %v587 = vld [vmem:[%s1 + $0x14] sm:$0xf]
        %v588 = vld [vmem:[%s1 + $0x18] sm:$0xf]
        %v589 = vld [vmem:[%s1 + $0x1c] sm:$0xf]
        %v590 = vld [vmem:[%s1 + $0x20] sm:$0xf]
        %v591 = vld [vmem:[%s1 + $0x24] sm:$0xf]
        %v592 = vld [vmem:[%s1 + $0x28] sm:$0xf]
        %v593 = vld [vmem:[%s1 + $0x2c] sm:$0xf]
        %v594 = vld [vmem:[%s1 + $0x30] sm:$0xf]
        %v595 = vld [vmem:[%s1 + $0x34] sm:$0xf]
        %v596 = vld [vmem:[%s1 + $0x38] sm:$0xf]
        %v597 = vld [vmem:[%s1 + $0x3c] sm:$0xf]
        %v598 = vld [vmem:[%s2] sm:$0xff]
        %v615 = vunpack.c.l.b16 %v582
        %v616 = vunpack.c.l.b16 %v583
        %v617 = vunpack.c.l.b16 %v584
        %v618 = vunpack.c.l.b16 %v585
        %v619 = vunpack.c.l.b16 %v586
        %v620 = vunpack.c.l.b16 %v587
        %v621 = vunpack.c.l.b16 %v588
        %v622 = vunpack.c.l.b16 %v589
        %v623 = vunpack.c.l.b16 %v590
        %v624 = vunpack.c.l.b16 %v591
        %v625 = vunpack.c.l.b16 %v592
        %v626 = vunpack.c.l.b16 %v593
        %v627 = vunpack.c.l.b16 %v594
        %v628 = vunpack.c.l.b16 %v595
        %v629 = vunpack.c.l.b16 %v596
        %v630 = vunpack.c.l.b16 %v597
        %v631 = vpack.c.b16 %v616, %v615
        %v632 = vpack.c.b16 %v618, %v617
        %v633 = vpack.c.b16 %v620, %v619
        %v634 = vpack.c.b16 %v622, %v621
        %v635 = vpack.c.b16 %v624, %v623
        %v636 = vpack.c.b16 %v626, %v625
        %v637 = vpack.c.b16 %v628, %v627
        %v638 = vpack.c.b16 %v630, %v629
        %647 = vmatprep.subr.bf16.mxu0 0
        %648 = vmatpush1.bf16.msra.mxu0 %v638
        %649 = vmatprep.subr.bf16.mxu0 0
        %650 = vmatpush1.bf16.msra.mxu0 %v637
        %651 = vmatprep.subr.bf16.mxu0 0
        %652 = vmatpush1.bf16.msra.mxu0 %v636
        %653 = vmatprep.subr.bf16.mxu0 0
        %654 = vmatpush1.bf16.msra.mxu0 %v635
        %655 = vmatprep.subr.bf16.mxu0 0
        %656 = vmatpush1.bf16.msra.mxu0 %v634
        %657 = vmatprep.subr.bf16.mxu0 0
        %658 = vmatpush1.bf16.msra.mxu0 %v633
        %659 = vmatprep.subr.bf16.mxu0 0
        %660 = vmatpush1.bf16.msra.mxu0 %v632
        %661 = vmatprep.subr.bf16.mxu0 0
        %662 = vmatpush1.bf16.msra.mxu0 %v631
        %663 = vmatprep.subr.bf16.mxu0 0
        %664 = vmatpush2.bf16.msra.mxu0 0
        %665 = vmatprep.subr.bf16.mxu0 0
        %666 = vmatpush2.bf16.msra.mxu0 0
        %667 = vmatprep.subr.bf16.mxu0 0
        %668 = vmatpush2.bf16.msra.mxu0 0
        %669 = vmatprep.subr.bf16.mxu0 0
        %670 = vmatpush2.bf16.msra.mxu0 0
        %671 = vmatprep.subr.bf16.mxu0 0
        %672 = vmatpush2.bf16.msra.mxu0 0
        %673 = vmatprep.subr.bf16.mxu0 0
        %674 = vmatpush2.bf16.msra.mxu0 0
        %675 = vmatprep.subr.bf16.mxu0 0
        %676 = vmatpush2.bf16.msra.mxu0 0
        %677 = vmatprep.subr.bf16.mxu0 0
        %678 = vmatpush2.bf16.msra.mxu0 0
        %679 = vmatprep.mubr.bf16.mxu0 0
        %680 = vmatmul.mubr.bf16.gmra.mxu0 %v581
        %v681 = vpop.f32.mrf.mxu0
        %v682 = vadd.f32 %v598, %v681
        %v683 = vpop.f32.mrf.mxu0
        %v684 = vpop.f32.mrf.mxu0
        %v685 = vpop.f32.mrf.mxu0
        %686 = vdwg.mxu0
        %v687 = vlaneseq
        %v688 = vshrl.u32 %v687, 7
        %vm689 = vcmp.ge.s32.totalorder %v688, %v574
        %v690 = vsel %vm689, 0.0, -1e+30
        %v691 = vld [vmem:[%s3] sm:$0x1]
        %v692 = vld [vmem:[%s4] sm:$0x1]
        %vm693 = vcmask 261120
        %v694 = vsel %vm693, %v682, 0.0
        %695 = vadd.xlane.f32.xlu0 %v694
        %v696 = vpop.xlane.xlu0 %695
        %v697 = vrcp.pop 32.0
        %v698 = vmul.f32 %v696, %v697
        %v699 = vsub.f32 %v682, %v698
        %v700 = vmul.f32 %v699, %v699
        %v701 = vsel %vm693, %v700, 0.0
        %702 = vadd.xlane.f32.xlu0 %v701
        %v703 = vpop.xlane.xlu0 %702
        %v704 = vmul.f32 %v703, %v697
        %v705 = vadd.f32 %v704, 1e-05
        %v706 = vrsqrt.pop %v705
        %v707 = vmul.f32 %v699, %v706
        %v708 = vlaneseq
        %v709 = vshrl.u32 %v708, 7
        %v710 = vsub.s32 0, %v709
        %v711 = vrot.slane %v691, %v710
        %v712 = vmul.f32 %v707, %v711
        %v713 = vlaneseq
        %v714 = vshrl.u32 %v713, 7
        %v715 = vsub.s32 0, %v714
        %v716 = vrot.slane %v692, %v715
        %v717 = vadd.f32 %v712, %v716
        %v718 = vpack.c.bf16 %v717, %v717
        %v719 = vld [vmem:[%s5] sm:$0xf]
        %v720 = vld [vmem:[%s5 + $0x4] sm:$0xf]
        %v721 = vld [vmem:[%s5 + $0x8] sm:$0xf]
        %v722 = vld [vmem:[%s5 + $0xc] sm:$0xf]
        %v727 = vunpack.c.l.b16 %v719
        %v728 = vunpack.c.l.b16 %v720
        %v729 = vunpack.c.l.b16 %v721
        %v730 = vunpack.c.l.b16 %v722
        %v731 = vpack.c.b16 %v728, %v727
        %v732 = vpack.c.b16 %v730, %v729
        %v736 = vsel %vm693, %v718, 0
        %738 = vmatprep.subr.bf16.mxu0 0
        %739 = vmatpush1.bf16.msra.mxu0 0
        %740 = vmatprep.subr.bf16.mxu0 0
        %741 = vmatpush1.bf16.msra.mxu0 0
        %742 = vmatprep.subr.bf16.mxu0 0
        %743 = vmatpush1.bf16.msra.mxu0 0
        %744 = vmatprep.subr.bf16.mxu0 0
        %745 = vmatpush1.bf16.msra.mxu0 0
        %746 = vmatprep.subr.bf16.mxu0 0
        %747 = vmatpush1.bf16.msra.mxu0 0
        %748 = vmatprep.subr.bf16.mxu0 0
        %749 = vmatpush1.bf16.msra.mxu0 0
        %750 = vmatprep.subr.bf16.mxu0 0
        %751 = vmatpush1.bf16.msra.mxu0 %v732
        %752 = vmatprep.subr.bf16.mxu0 0
        %753 = vmatpush1.bf16.msra.mxu0 %v731
        %754 = vmatprep.subr.bf16.mxu0 0
        %755 = vmatpush2.bf16.msra.mxu0 0
        %756 = vmatprep.subr.bf16.mxu0 0
        %757 = vmatpush2.bf16.msra.mxu0 0
        %758 = vmatprep.subr.bf16.mxu0 0
        %759 = vmatpush2.bf16.msra.mxu0 0
        %760 = vmatprep.subr.bf16.mxu0 0
        %761 = vmatpush2.bf16.msra.mxu0 0
        %762 = vmatprep.subr.bf16.mxu0 0
        %763 = vmatpush2.bf16.msra.mxu0 0
        %764 = vmatprep.subr.bf16.mxu0 0
        %765 = vmatpush2.bf16.msra.mxu0 0
        %766 = vmatprep.subr.bf16.mxu0 0
        %767 = vmatpush2.bf16.msra.mxu0 0
        %768 = vmatprep.subr.bf16.mxu0 0
        %769 = vmatpush2.bf16.msra.mxu0 0
        %770 = vmatprep.mubr.bf16.mxu0 0
        %771 = vmatmul.mubr.bf16.gmra.mxu0 %v736
        %v772 = vpop.f32.mrf.mxu0
        %v773 = vadd.f32 0.0, %v772
        %v774 = vpop.f32.mrf.mxu0
        %v775 = vpop.f32.mrf.mxu0
        %v776 = vpop.f32.mrf.mxu0
        %777 = vdwg.mxu0
        %779 = vrot.lane.b32.xlu0 %v773, 120
        %v780 = vpop.permute.xlu0 %779
        %782 = vrot.lane.b32.xlu0 %v773, 112
        %v783 = vpop.permute.xlu0 %782
        %785 = vrot.lane.b32.xlu0 %v773, 104
        %v786 = vpop.permute.xlu0 %785
        %v788 = vpack.c.bf16 %v773, %v773
        %v789 = vpack.c.bf16 %v780, %v780
        %v790 = vpack.c.bf16 %v783, %v783
        %v791 = vpack.c.bf16 %v786, %v786
        %793 = vrot.lane.b32.xlu0 %v788, 96
        %v794 = vpop.permute.xlu0 %793
        %vm795 = vcmask 64512
        %v797 = vsel %vm795, %v788, 0
        %v800 = vsel %vm795, %v794, 0
        %802 = vmatprep.subr.bf16.mxu0 0
        %803 = vmatpush1.bf16.xpose.msra.mxu0 0
        %804 = vmatprep.subr.bf16.mxu0 0
        %805 = vmatpush1.bf16.xpose.msra.mxu0 0
        %806 = vmatprep.subr.bf16.mxu0 0
        %807 = vmatpush1.bf16.xpose.msra.mxu0 0
        %808 = vmatprep.subr.bf16.mxu0 0
        %809 = vmatpush1.bf16.xpose.msra.mxu0 0
        %810 = vmatprep.subr.bf16.mxu0 0
        %811 = vmatpush1.bf16.xpose.msra.mxu0 0
        %812 = vmatprep.subr.bf16.mxu0 0
        %813 = vmatpush1.bf16.xpose.msra.mxu0 0
        %814 = vmatprep.subr.bf16.mxu0 0
        %815 = vmatpush1.bf16.xpose.msra.mxu0 0
        %816 = vmatprep.subr.bf16.mxu0 0
        %817 = vmatpush1.bf16.xpose.msra.mxu0 %v800
        %818 = vmatprep.subr.bf16.mxu0 0
        %819 = vmatpush2.bf16.xpose.msra.mxu0 0
        %820 = vmatprep.subr.bf16.mxu0 0
        %821 = vmatpush2.bf16.xpose.msra.mxu0 0
        %822 = vmatprep.subr.bf16.mxu0 0
        %823 = vmatpush2.bf16.xpose.msra.mxu0 0
        %824 = vmatprep.subr.bf16.mxu0 0
        %825 = vmatpush2.bf16.xpose.msra.mxu0 0
        %826 = vmatprep.subr.bf16.mxu0 0
        %827 = vmatpush2.bf16.xpose.msra.mxu0 0
        %828 = vmatprep.subr.bf16.mxu0 0
        %829 = vmatpush2.bf16.xpose.msra.mxu0 0
        %830 = vmatprep.subr.bf16.mxu0 0
        %831 = vmatpush2.bf16.xpose.msra.mxu0 0
        %832 = vmatprep.subr.bf16.mxu0 0
        %833 = vmatpush2.bf16.xpose.msra.mxu0 0
        %834 = vmatprep.mubr.bf16.mxu0 0
        %835 = vmatmul.mubr.bf16.gmra.mxu0 %v797
        %v836 = vpop.f32.mrf.mxu0
        %v837 = vadd.f32 0.0, %v836
        %v838 = vpop.f32.mrf.mxu0
        %v839 = vpop.f32.mrf.mxu0
        %v840 = vpop.f32.mrf.mxu0
        %841 = vdwg.mxu0
        %843 = vrot.lane.b32.xlu0 %v789, 96
        %v844 = vpop.permute.xlu0 %843
        %v846 = vsel %vm795, %v789, 0
        %v849 = vsel %vm795, %v844, 0
        %851 = vmatprep.subr.bf16.mxu0 0
        %852 = vmatpush1.bf16.xpose.msra.mxu0 0
        %853 = vmatprep.subr.bf16.mxu0 0
        %854 = vmatpush1.bf16.xpose.msra.mxu0 0
        %855 = vmatprep.subr.bf16.mxu0 0
        %856 = vmatpush1.bf16.xpose.msra.mxu0 0
        %857 = vmatprep.subr.bf16.mxu0 0
        %858 = vmatpush1.bf16.xpose.msra.mxu0 0
        %859 = vmatprep.subr.bf16.mxu0 0
        %860 = vmatpush1.bf16.xpose.msra.mxu0 0
        %861 = vmatprep.subr.bf16.mxu0 0
        %862 = vmatpush1.bf16.xpose.msra.mxu0 0
        %863 = vmatprep.subr.bf16.mxu0 0
        %864 = vmatpush1.bf16.xpose.msra.mxu0 0
        %865 = vmatprep.subr.bf16.mxu0 0
        %866 = vmatpush1.bf16.xpose.msra.mxu0 %v849
        %867 = vmatprep.subr.bf16.mxu0 0
        %868 = vmatpush2.bf16.xpose.msra.mxu0 0
        %869 = vmatprep.subr.bf16.mxu0 0
        %870 = vmatpush2.bf16.xpose.msra.mxu0 0
        %871 = vmatprep.subr.bf16.mxu0 0
        %872 = vmatpush2.bf16.xpose.msra.mxu0 0
        %873 = vmatprep.subr.bf16.mxu0 0
        %874 = vmatpush2.bf16.xpose.msra.mxu0 0
        %875 = vmatprep.subr.bf16.mxu0 0
        %876 = vmatpush2.bf16.xpose.msra.mxu0 0
        %877 = vmatprep.subr.bf16.mxu0 0
        %878 = vmatpush2.bf16.xpose.msra.mxu0 0
        %879 = vmatprep.subr.bf16.mxu0 0
        %880 = vmatpush2.bf16.xpose.msra.mxu0 0
        %881 = vmatprep.subr.bf16.mxu0 0
        %882 = vmatpush2.bf16.xpose.msra.mxu0 0
        %883 = vmatprep.mubr.bf16.mxu0 0
        %884 = vmatmul.mubr.bf16.gmra.mxu0 %v846
        %v885 = vpop.f32.mrf.mxu0
        %v886 = vadd.f32 0.0, %v885
        %v887 = vpop.f32.mrf.mxu0
        %v888 = vpop.f32.mrf.mxu0
        %v889 = vpop.f32.mrf.mxu0
        %890 = vdwg.mxu0
        %892 = vrot.lane.b32.xlu0 %v790, 96
        %v893 = vpop.permute.xlu0 %892
        %v895 = vsel %vm795, %v790, 0
        %v898 = vsel %vm795, %v893, 0
        %900 = vmatprep.subr.bf16.mxu0 0
        %901 = vmatpush1.bf16.xpose.msra.mxu0 0
        %902 = vmatprep.subr.bf16.mxu0 0
        %903 = vmatpush1.bf16.xpose.msra.mxu0 0
        %904 = vmatprep.subr.bf16.mxu0 0
        %905 = vmatpush1.bf16.xpose.msra.mxu0 0
        %906 = vmatprep.subr.bf16.mxu0 0
        %907 = vmatpush1.bf16.xpose.msra.mxu0 0
        %908 = vmatprep.subr.bf16.mxu0 0
        %909 = vmatpush1.bf16.xpose.msra.mxu0 0
        %910 = vmatprep.subr.bf16.mxu0 0
        %911 = vmatpush1.bf16.xpose.msra.mxu0 0
        %912 = vmatprep.subr.bf16.mxu0 0
        %913 = vmatpush1.bf16.xpose.msra.mxu0 0
        %914 = vmatprep.subr.bf16.mxu0 0
        %915 = vmatpush1.bf16.xpose.msra.mxu0 %v898
        %916 = vmatprep.subr.bf16.mxu0 0
        %917 = vmatpush2.bf16.xpose.msra.mxu0 0
        %918 = vmatprep.subr.bf16.mxu0 0
        %919 = vmatpush2.bf16.xpose.msra.mxu0 0
        %920 = vmatprep.subr.bf16.mxu0 0
        %921 = vmatpush2.bf16.xpose.msra.mxu0 0
        %922 = vmatprep.subr.bf16.mxu0 0
        %923 = vmatpush2.bf16.xpose.msra.mxu0 0
        %924 = vmatprep.subr.bf16.mxu0 0
        %925 = vmatpush2.bf16.xpose.msra.mxu0 0
        %926 = vmatprep.subr.bf16.mxu0 0
        %927 = vmatpush2.bf16.xpose.msra.mxu0 0
        %928 = vmatprep.subr.bf16.mxu0 0
        %929 = vmatpush2.bf16.xpose.msra.mxu0 0
        %930 = vmatprep.subr.bf16.mxu0 0
        %931 = vmatpush2.bf16.xpose.msra.mxu0 0
        %932 = vmatprep.mubr.bf16.mxu0 0
        %933 = vmatmul.mubr.bf16.gmra.mxu0 %v895
        %v934 = vpop.f32.mrf.mxu0
        %v935 = vadd.f32 0.0, %v934
        %v936 = vpop.f32.mrf.mxu0
        %v937 = vpop.f32.mrf.mxu0
        %v938 = vpop.f32.mrf.mxu0
        %939 = vdwg.mxu0
        %941 = vrot.lane.b32.xlu0 %v791, 96
        %v942 = vpop.permute.xlu0 %941
        %v944 = vsel %vm795, %v791, 0
        %v947 = vsel %vm795, %v942, 0
        %949 = vmatprep.subr.bf16.mxu0 0
        %950 = vmatpush1.bf16.xpose.msra.mxu0 0
        %951 = vmatprep.subr.bf16.mxu0 0
        %952 = vmatpush1.bf16.xpose.msra.mxu0 0
        %953 = vmatprep.subr.bf16.mxu0 0
        %954 = vmatpush1.bf16.xpose.msra.mxu0 0
        %955 = vmatprep.subr.bf16.mxu0 0
        %956 = vmatpush1.bf16.xpose.msra.mxu0 0
        %957 = vmatprep.subr.bf16.mxu0 0
        %958 = vmatpush1.bf16.xpose.msra.mxu0 0
        %959 = vmatprep.subr.bf16.mxu0 0
        %960 = vmatpush1.bf16.xpose.msra.mxu0 0
        %961 = vmatprep.subr.bf16.mxu0 0
        %962 = vmatpush1.bf16.xpose.msra.mxu0 0
        %963 = vmatprep.subr.bf16.mxu0 0
        %964 = vmatpush1.bf16.xpose.msra.mxu0 %v947
        %965 = vmatprep.subr.bf16.mxu0 0
        %966 = vmatpush2.bf16.xpose.msra.mxu0 0
        %967 = vmatprep.subr.bf16.mxu0 0
        %968 = vmatpush2.bf16.xpose.msra.mxu0 0
        %969 = vmatprep.subr.bf16.mxu0 0
        %970 = vmatpush2.bf16.xpose.msra.mxu0 0
        %971 = vmatprep.subr.bf16.mxu0 0
        %972 = vmatpush2.bf16.xpose.msra.mxu0 0
        %973 = vmatprep.subr.bf16.mxu0 0
        %974 = vmatpush2.bf16.xpose.msra.mxu0 0
        %975 = vmatprep.subr.bf16.mxu0 0
        %976 = vmatpush2.bf16.xpose.msra.mxu0 0
        %977 = vmatprep.subr.bf16.mxu0 0
        %978 = vmatpush2.bf16.xpose.msra.mxu0 0
        %979 = vmatprep.subr.bf16.mxu0 0
        %980 = vmatpush2.bf16.xpose.msra.mxu0 0
        %981 = vmatprep.mubr.bf16.mxu0 0
        %982 = vmatmul.mubr.bf16.gmra.mxu0 %v944
        %v983 = vpop.f32.mrf.mxu0
        %v984 = vadd.f32 0.0, %v983
        %v985 = vpop.f32.mrf.mxu0
        %v986 = vpop.f32.mrf.mxu0
        %v987 = vpop.f32.mrf.mxu0
        %988 = vdwg.mxu0
        %v989 = vmul.f32 %v837, 0.17677669
        %v990 = vmul.f32 %v886, 0.17677669
        %v991 = vmul.f32 %v935, 0.17677669
        %v992 = vmul.f32 %v984, 0.17677669
        %v993 = vadd.f32 %v989, %v690
        %v994 = vadd.f32 %v990, %v690
        %v995 = vadd.f32 %v991, %v690
        %v996 = vadd.f32 %v992, %v690
        %v997 = vsel %vm795, %v993, -inf
        %998 = vmax.xlane.f32.xlu0 %v997
        %v999 = vpop.xlane.xlu0 %998
        %v1000 = vsel %vm795, %v994, -inf
        %1001 = vmax.xlane.f32.xlu0 %v1000
        %v1002 = vpop.xlane.xlu0 %1001
        %v1003 = vsel %vm795, %v995, -inf
        %1004 = vmax.xlane.f32.xlu0 %v1003
        %v1005 = vpop.xlane.xlu0 %1004
        %v1006 = vsel %vm795, %v996, -inf
        %1007 = vmax.xlane.f32.xlu0 %v1006
        %v1008 = vpop.xlane.xlu0 %1007
        %v1009 = vsub.f32 %v993, %v999
        %v1010 = vsub.f32 %v994, %v1002
        %v1011 = vsub.f32 %v995, %v1005
        %v1012 = vsub.f32 %v996, %v1008
        %v1013 = vmul.f32 %v1009, 1.442695
        %v1014 = vpow.pop %v1013
        %v1015 = vmul.f32 %v1010, 1.442695
        %v1016 = vpow.pop %v1015
        %v1017 = vmul.f32 %v1011, 1.442695
        %v1018 = vpow.pop %v1017
        %v1019 = vmul.f32 %v1012, 1.442695
        %v1020 = vpow.pop %v1019
        %v1021 = vsel %vm795, %v1014, 0.0
        %1022 = vadd.xlane.f32.xlu0 %v1021
        %v1023 = vpop.xlane.xlu0 %1022
        %v1024 = vsel %vm795, %v1016, 0.0
        %1025 = vadd.xlane.f32.xlu0 %v1024
        %v1026 = vpop.xlane.xlu0 %1025
        %v1027 = vsel %vm795, %v1018, 0.0
        %1028 = vadd.xlane.f32.xlu0 %v1027
        %v1029 = vpop.xlane.xlu0 %1028
        %v1030 = vsel %vm795, %v1020, 0.0
        %1031 = vadd.xlane.f32.xlu0 %v1030
        %v1032 = vpop.xlane.xlu0 %1031
        %v1033 = vrcp.pop %v1023
        %v1034 = vmul.f32 %v1014, %v1033
        %v1035 = vrcp.pop %v1026
        %v1036 = vmul.f32 %v1016, %v1035
        %v1037 = vrcp.pop %v1029
        %v1038 = vmul.f32 %v1018, %v1037
        %v1039 = vrcp.pop %v1032
        %v1040 = vmul.f32 %v1020, %v1039
        %v1041 = vpack.c.bf16 %v1034, %v1034
        %v1042 = vpack.c.bf16 %v1036, %v1036
        %v1043 = vpack.c.bf16 %v1038, %v1038
        %v1044 = vpack.c.bf16 %v1040, %v1040
        %1045 = vrot.lane.b32.xlu0 %v788, 64
        %v1046 = vpop.permute.xlu0 %1045
        %v1048 = vsel %vm795, %v1041, 0
        %vm1050 = vcmask 1043456
        %v1052 = vsel %vm1050, %v1046, 0
        %1054 = vmatprep.subr.bf16.mxu0 0
        %1055 = vmatpush1.bf16.msra.mxu0 0
        %1056 = vmatprep.subr.bf16.mxu0 0
        %1057 = vmatpush1.bf16.msra.mxu0 0
        %1058 = vmatprep.subr.bf16.mxu0 0
        %1059 = vmatpush1.bf16.msra.mxu0 0
        %1060 = vmatprep.subr.bf16.mxu0 0
        %1061 = vmatpush1.bf16.msra.mxu0 0
        %1062 = vmatprep.subr.bf16.mxu0 0
        %1063 = vmatpush1.bf16.msra.mxu0 0
        %1064 = vmatprep.subr.bf16.mxu0 0
        %1065 = vmatpush1.bf16.msra.mxu0 0
        %1066 = vmatprep.subr.bf16.mxu0 0
        %1067 = vmatpush1.bf16.msra.mxu0 0
        %1068 = vmatprep.subr.bf16.mxu0 0
        %1069 = vmatpush1.bf16.msra.mxu0 %v1052
        %1070 = vmatprep.subr.bf16.mxu0 0
        %1071 = vmatpush2.bf16.msra.mxu0 0
        %1072 = vmatprep.subr.bf16.mxu0 0
        %1073 = vmatpush2.bf16.msra.mxu0 0
        %1074 = vmatprep.subr.bf16.mxu0 0
        %1075 = vmatpush2.bf16.msra.mxu0 0
        %1076 = vmatprep.subr.bf16.mxu0 0
        %1077 = vmatpush2.bf16.msra.mxu0 0
        %1078 = vmatprep.subr.bf16.mxu0 0
        %1079 = vmatpush2.bf16.msra.mxu0 0
        %1080 = vmatprep.subr.bf16.mxu0 0
        %1081 = vmatpush2.bf16.msra.mxu0 0
        %1082 = vmatprep.subr.bf16.mxu0 0
        %1083 = vmatpush2.bf16.msra.mxu0 0
        %1084 = vmatprep.subr.bf16.mxu0 0
        %1085 = vmatpush2.bf16.msra.mxu0 0
        %1086 = vmatprep.mubr.bf16.mxu0 0
        %1087 = vmatmul.mubr.bf16.gmra.mxu0 %v1048
        %v1088 = vpop.f32.mrf.mxu0
        %v1089 = vadd.f32 0.0, %v1088
        %v1090 = vpop.f32.mrf.mxu0
        %v1091 = vpop.f32.mrf.mxu0
        %v1092 = vpop.f32.mrf.mxu0
        %1093 = vdwg.mxu0
        %1094 = vrot.lane.b32.xlu0 %v789, 64
        %v1095 = vpop.permute.xlu0 %1094
        %v1097 = vsel %vm795, %v1042, 0
        %v1100 = vsel %vm1050, %v1095, 0
        %1102 = vmatprep.subr.bf16.mxu0 0
        %1103 = vmatpush1.bf16.msra.mxu0 0
        %1104 = vmatprep.subr.bf16.mxu0 0
        %1105 = vmatpush1.bf16.msra.mxu0 0
        %1106 = vmatprep.subr.bf16.mxu0 0
        %1107 = vmatpush1.bf16.msra.mxu0 0
        %1108 = vmatprep.subr.bf16.mxu0 0
        %1109 = vmatpush1.bf16.msra.mxu0 0
        %1110 = vmatprep.subr.bf16.mxu0 0
        %1111 = vmatpush1.bf16.msra.mxu0 0
        %1112 = vmatprep.subr.bf16.mxu0 0
        %1113 = vmatpush1.bf16.msra.mxu0 0
        %1114 = vmatprep.subr.bf16.mxu0 0
        %1115 = vmatpush1.bf16.msra.mxu0 0
        %1116 = vmatprep.subr.bf16.mxu0 0
        %1117 = vmatpush1.bf16.msra.mxu0 %v1100
        %1118 = vmatprep.subr.bf16.mxu0 0
        %1119 = vmatpush2.bf16.msra.mxu0 0
        %1120 = vmatprep.subr.bf16.mxu0 0
        %1121 = vmatpush2.bf16.msra.mxu0 0
        %1122 = vmatprep.subr.bf16.mxu0 0
        %1123 = vmatpush2.bf16.msra.mxu0 0
        %1124 = vmatprep.subr.bf16.mxu0 0
        %1125 = vmatpush2.bf16.msra.mxu0 0
        %1126 = vmatprep.subr.bf16.mxu0 0
        %1127 = vmatpush2.bf16.msra.mxu0 0
        %1128 = vmatprep.subr.bf16.mxu0 0
        %1129 = vmatpush2.bf16.msra.mxu0 0
        %1130 = vmatprep.subr.bf16.mxu0 0
        %1131 = vmatpush2.bf16.msra.mxu0 0
        %1132 = vmatprep.subr.bf16.mxu0 0
        %1133 = vmatpush2.bf16.msra.mxu0 0
        %1134 = vmatprep.mubr.bf16.mxu0 0
        %1135 = vmatmul.mubr.bf16.gmra.mxu0 %v1097
        %v1136 = vpop.f32.mrf.mxu0
        %v1137 = vadd.f32 0.0, %v1136
        %v1138 = vpop.f32.mrf.mxu0
        %v1139 = vpop.f32.mrf.mxu0
        %v1140 = vpop.f32.mrf.mxu0
        %1141 = vdwg.mxu0
        %1142 = vrot.lane.b32.xlu0 %v790, 64
        %v1143 = vpop.permute.xlu0 %1142
        %v1145 = vsel %vm795, %v1043, 0
        %v1148 = vsel %vm1050, %v1143, 0
        %1150 = vmatprep.subr.bf16.mxu0 0
        %1151 = vmatpush1.bf16.msra.mxu0 0
        %1152 = vmatprep.subr.bf16.mxu0 0
        %1153 = vmatpush1.bf16.msra.mxu0 0
        %1154 = vmatprep.subr.bf16.mxu0 0
        %1155 = vmatpush1.bf16.msra.mxu0 0
        %1156 = vmatprep.subr.bf16.mxu0 0
        %1157 = vmatpush1.bf16.msra.mxu0 0
        %1158 = vmatprep.subr.bf16.mxu0 0
        %1159 = vmatpush1.bf16.msra.mxu0 0
        %1160 = vmatprep.subr.bf16.mxu0 0
        %1161 = vmatpush1.bf16.msra.mxu0 0
        %1162 = vmatprep.subr.bf16.mxu0 0
        %1163 = vmatpush1.bf16.msra.mxu0 0
        %1164 = vmatprep.subr.bf16.mxu0 0
        %1165 = vmatpush1.bf16.msra.mxu0 %v1148
        %1166 = vmatprep.subr.bf16.mxu0 0
        %1167 = vmatpush2.bf16.msra.mxu0 0
        %1168 = vmatprep.subr.bf16.mxu0 0
        %1169 = vmatpush2.bf16.msra.mxu0 0
        %1170 = vmatprep.subr.bf16.mxu0 0
        %1171 = vmatpush2.bf16.msra.mxu0 0
        %1172 = vmatprep.subr.bf16.mxu0 0
        %1173 = vmatpush2.bf16.msra.mxu0 0
        %1174 = vmatprep.subr.bf16.mxu0 0
        %1175 = vmatpush2.bf16.msra.mxu0 0
        %1176 = vmatprep.subr.bf16.mxu0 0
        %1177 = vmatpush2.bf16.msra.mxu0 0
        %1178 = vmatprep.subr.bf16.mxu0 0
        %1179 = vmatpush2.bf16.msra.mxu0 0
        %1180 = vmatprep.subr.bf16.mxu0 0
        %1181 = vmatpush2.bf16.msra.mxu0 0
        %1182 = vmatprep.mubr.bf16.mxu0 0
        %1183 = vmatmul.mubr.bf16.gmra.mxu0 %v1145
        %v1184 = vpop.f32.mrf.mxu0
        %v1185 = vadd.f32 0.0, %v1184
        %v1186 = vpop.f32.mrf.mxu0
        %v1187 = vpop.f32.mrf.mxu0
        %v1188 = vpop.f32.mrf.mxu0
        %1189 = vdwg.mxu0
        %1190 = vrot.lane.b32.xlu0 %v791, 64
        %v1191 = vpop.permute.xlu0 %1190
        %v1193 = vsel %vm795, %v1044, 0
        %v1196 = vsel %vm1050, %v1191, 0
        %1198 = vmatprep.subr.bf16.mxu0 0
        %1199 = vmatpush1.bf16.msra.mxu0 0
        %1200 = vmatprep.subr.bf16.mxu0 0
        %1201 = vmatpush1.bf16.msra.mxu0 0
        %1202 = vmatprep.subr.bf16.mxu0 0
        %1203 = vmatpush1.bf16.msra.mxu0 0
        %1204 = vmatprep.subr.bf16.mxu0 0
        %1205 = vmatpush1.bf16.msra.mxu0 0
        %1206 = vmatprep.subr.bf16.mxu0 0
        %1207 = vmatpush1.bf16.msra.mxu0 0
        %1208 = vmatprep.subr.bf16.mxu0 0
        %1209 = vmatpush1.bf16.msra.mxu0 0
        %1210 = vmatprep.subr.bf16.mxu0 0
        %1211 = vmatpush1.bf16.msra.mxu0 0
        %1212 = vmatprep.subr.bf16.mxu0 0
        %1213 = vmatpush1.bf16.msra.mxu0 %v1196
        %1214 = vmatprep.subr.bf16.mxu0 0
        %1215 = vmatpush2.bf16.msra.mxu0 0
        %1216 = vmatprep.subr.bf16.mxu0 0
        %1217 = vmatpush2.bf16.msra.mxu0 0
        %1218 = vmatprep.subr.bf16.mxu0 0
        %1219 = vmatpush2.bf16.msra.mxu0 0
        %1220 = vmatprep.subr.bf16.mxu0 0
        %1221 = vmatpush2.bf16.msra.mxu0 0
        %1222 = vmatprep.subr.bf16.mxu0 0
        %1223 = vmatpush2.bf16.msra.mxu0 0
        %1224 = vmatprep.subr.bf16.mxu0 0
        %1225 = vmatpush2.bf16.msra.mxu0 0
        %1226 = vmatprep.subr.bf16.mxu0 0
        %1227 = vmatpush2.bf16.msra.mxu0 0
        %1228 = vmatprep.subr.bf16.mxu0 0
        %1229 = vmatpush2.bf16.msra.mxu0 0
        %1230 = vmatprep.mubr.bf16.mxu0 0
        %1231 = vmatmul.mubr.bf16.gmra.mxu0 %v1193
        %v1232 = vpop.f32.mrf.mxu0
        %v1233 = vadd.f32 0.0, %v1232
        %v1234 = vpop.f32.mrf.mxu0
        %v1235 = vpop.f32.mrf.mxu0
        %v1236 = vpop.f32.mrf.mxu0
        %1237 = vdwg.mxu0
        %1239 = vrot.lane.b32.xlu0 %v1137, 8
        %v1240 = vpop.permute.xlu0 %1239
        %1243 = vrot.lane.b32.xlu0 %v1185, 16
        %v1244 = vpop.permute.xlu0 %1243
        %1247 = vrot.lane.b32.xlu0 %v1233, 24
        %v1248 = vpop.permute.xlu0 %1247
        %v1250 = vsel %vm795, %v1089, %v1240
        %vm1251 = vcmask 130048
        %v1252 = vsel %vm1251, %v1250, %v1244
        %vm1253 = vcmask 195584
        %v1254 = vsel %vm1253, %v1252, %v1248
        %v1255 = vpack.c.bf16 %v1254, %v1254
        %v1256 = vld [vmem:[%s6] sm:$0xf]
        %v1257 = vld [vmem:[%s6 + $0x4] sm:$0xf]
        %v1258 = vld [vmem:[%s6 + $0x8] sm:$0xf]
        %v1259 = vld [vmem:[%s6 + $0xc] sm:$0xf]
        %v1264 = vunpack.c.l.b16 %v1256
        %v1265 = vunpack.c.l.b16 %v1257
        %v1266 = vunpack.c.l.b16 %v1258
        %v1267 = vunpack.c.l.b16 %v1259
        %v1268 = vpack.c.b16 %v1265, %v1264
        %v1269 = vpack.c.b16 %v1267, %v1266
        %v1273 = vsel %vm693, %v1255, 0
        %1275 = vmatprep.subr.bf16.mxu0 0
        %1276 = vmatpush1.bf16.msra.mxu0 0
        %1277 = vmatprep.subr.bf16.mxu0 0
        %1278 = vmatpush1.bf16.msra.mxu0 0
        %1279 = vmatprep.subr.bf16.mxu0 0
        %1280 = vmatpush1.bf16.msra.mxu0 0
        %1281 = vmatprep.subr.bf16.mxu0 0
        %1282 = vmatpush1.bf16.msra.mxu0 0
        %1283 = vmatprep.subr.bf16.mxu0 0
        %1284 = vmatpush1.bf16.msra.mxu0 0
        %1285 = vmatprep.subr.bf16.mxu0 0
        %1286 = vmatpush1.bf16.msra.mxu0 0
        %1287 = vmatprep.subr.bf16.mxu0 0
        %1288 = vmatpush1.bf16.msra.mxu0 %v1269
        %1289 = vmatprep.subr.bf16.mxu0 0
        %1290 = vmatpush1.bf16.msra.mxu0 %v1268
        %1291 = vmatprep.subr.bf16.mxu0 0
        %1292 = vmatpush2.bf16.msra.mxu0 0
        %1293 = vmatprep.subr.bf16.mxu0 0
        %1294 = vmatpush2.bf16.msra.mxu0 0
        %1295 = vmatprep.subr.bf16.mxu0 0
        %1296 = vmatpush2.bf16.msra.mxu0 0
        %1297 = vmatprep.subr.bf16.mxu0 0
        %1298 = vmatpush2.bf16.msra.mxu0 0
        %1299 = vmatprep.subr.bf16.mxu0 0
        %1300 = vmatpush2.bf16.msra.mxu0 0
        %1301 = vmatprep.subr.bf16.mxu0 0
        %1302 = vmatpush2.bf16.msra.mxu0 0
        %1303 = vmatprep.subr.bf16.mxu0 0
        %1304 = vmatpush2.bf16.msra.mxu0 0
        %1305 = vmatprep.subr.bf16.mxu0 0
        %1306 = vmatpush2.bf16.msra.mxu0 0
        %1307 = vmatprep.mubr.bf16.mxu0 0
        %1308 = vmatmul.mubr.bf16.gmra.mxu0 %v1273
        %v1309 = vpop.f32.mrf.mxu0
        %v1310 = vadd.f32 0.0, %v1309
        %v1311 = vpop.f32.mrf.mxu0
        %v1312 = vpop.f32.mrf.mxu0
        %v1313 = vpop.f32.mrf.mxu0
        %1314 = vdwg.mxu0
        %v1315 = vadd.f32 %v682, %v1310
        %v1316 = vld [vmem:[%s7] sm:$0x1]
        %v1317 = vlaneseq
        %v1318 = vshrl.u32 %v1317, 7
        %v1319 = vsub.s32 0, %v1318
        %v1320 = vrot.slane %v1316, %v1319
        %v1321 = vadd.f32 %v1315, %v1320
        %v1322 = vld [vmem:[%s8] sm:$0x1]
        %v1323 = vld [vmem:[%s9] sm:$0x1]
        %v1324 = vsel %vm693, %v1321, 0.0
        %1325 = vadd.xlane.f32.xlu0 %v1324
        %v1326 = vpop.xlane.xlu0 %1325
        %v1327 = vmul.f32 %v1326, %v697
        %v1328 = vsub.f32 %v1321, %v1327
        %v1329 = vmul.f32 %v1328, %v1328
        %v1330 = vsel %vm693, %v1329, 0.0
        %1331 = vadd.xlane.f32.xlu0 %v1330
        %v1332 = vpop.xlane.xlu0 %1331
        %v1333 = vmul.f32 %v1332, %v697
        %v1334 = vadd.f32 %v1333, 1e-05
        %v1335 = vrsqrt.pop %v1334
        %v1336 = vmul.f32 %v1328, %v1335
        %v1337 = vlaneseq
        %v1338 = vshrl.u32 %v1337, 7
        %v1339 = vsub.s32 0, %v1338
        %v1340 = vrot.slane %v1322, %v1339
        %v1341 = vmul.f32 %v1336, %v1340
        %v1342 = vlaneseq
        %v1343 = vshrl.u32 %v1342, 7
        %v1344 = vsub.s32 0, %v1343
        %v1345 = vrot.slane %v1323, %v1344
        %v1346 = vadd.f32 %v1341, %v1345
        %v1347 = vpack.c.bf16 %v1346, %v1346
        %v1348 = vld [vmem:[%s10] sm:$0xf]
        %v1349 = vld [vmem:[%s10 + $0x4] sm:$0xf]
        %v1350 = vld [vmem:[%s10 + $0x8] sm:$0xf]
        %v1351 = vld [vmem:[%s10 + $0xc] sm:$0xf]
        %v1352 = vld [vmem:[%s11] sm:$0x1]
        %v1353 = vlaneseq
        %v1354 = vshrl.u32 %v1353, 7
        %v1355 = vsub.s32 0, %v1354
        %v1356 = vrot.slane %v1352, %v1355
        %v1361 = vunpack.c.l.b16 %v1348
        %v1362 = vunpack.c.l.b16 %v1349
        %v1363 = vunpack.c.l.b16 %v1350
        %v1364 = vunpack.c.l.b16 %v1351
        %v1365 = vpack.c.b16 %v1362, %v1361
        %v1366 = vpack.c.b16 %v1364, %v1363
        %v1370 = vsel %vm693, %v1347, 0
        %1372 = vmatprep.subr.bf16.mxu0 0
        %1373 = vmatpush1.bf16.msra.mxu0 0
        %1374 = vmatprep.subr.bf16.mxu0 0
        %1375 = vmatpush1.bf16.msra.mxu0 0
        %1376 = vmatprep.subr.bf16.mxu0 0
        %1377 = vmatpush1.bf16.msra.mxu0 0
        %1378 = vmatprep.subr.bf16.mxu0 0
        %1379 = vmatpush1.bf16.msra.mxu0 0
        %1380 = vmatprep.subr.bf16.mxu0 0
        %1381 = vmatpush1.bf16.msra.mxu0 0
        %1382 = vmatprep.subr.bf16.mxu0 0
        %1383 = vmatpush1.bf16.msra.mxu0 0
        %1384 = vmatprep.subr.bf16.mxu0 0
        %1385 = vmatpush1.bf16.msra.mxu0 %v1366
        %1386 = vmatprep.subr.bf16.mxu0 0
        %1387 = vmatpush1.bf16.msra.mxu0 %v1365
        %1388 = vmatprep.subr.bf16.mxu0 0
        %1389 = vmatpush2.bf16.msra.mxu0 0
        %1390 = vmatprep.subr.bf16.mxu0 0
        %1391 = vmatpush2.bf16.msra.mxu0 0
        %1392 = vmatprep.subr.bf16.mxu0 0
        %1393 = vmatpush2.bf16.msra.mxu0 0
        %1394 = vmatprep.subr.bf16.mxu0 0
        %1395 = vmatpush2.bf16.msra.mxu0 0
        %1396 = vmatprep.subr.bf16.mxu0 0
        %1397 = vmatpush2.bf16.msra.mxu0 0
        %1398 = vmatprep.subr.bf16.mxu0 0
        %1399 = vmatpush2.bf16.msra.mxu0 0
        %1400 = vmatprep.subr.bf16.mxu0 0
        %1401 = vmatpush2.bf16.msra.mxu0 0
        %1402 = vmatprep.subr.bf16.mxu0 0
        %1403 = vmatpush2.bf16.msra.mxu0 0
        %1404 = vmatprep.mubr.bf16.mxu0 0
        %1405 = vmatmul.mubr.bf16.gmra.mxu0 %v1370
        %v1406 = vpop.f32.mrf.mxu0
        %v1407 = vadd.f32 %v1356, %v1406
        %v1408 = vpop.f32.mrf.mxu0
        %v1409 = vpop.f32.mrf.mxu0
        %v1410 = vpop.f32.mrf.mxu0
        %1411 = vdwg.mxu0
        %v1412 = vmax.f32 %v1407, 0.0
        %v1413 = vpack.c.bf16 %v1412, %v1412
        %v1414 = vld [vmem:[%s12] sm:$0xf]
        %v1415 = vld [vmem:[%s12 + $0x4] sm:$0xf]
        %v1416 = vld [vmem:[%s12 + $0x8] sm:$0xf]
        %v1417 = vld [vmem:[%s12 + $0xc] sm:$0xf]
        %v1418 = vld [vmem:[%s12 + $0x10] sm:$0xf]
        %v1419 = vld [vmem:[%s12 + $0x14] sm:$0xf]
        %v1420 = vld [vmem:[%s12 + $0x18] sm:$0xf]
        %v1421 = vld [vmem:[%s12 + $0x1c] sm:$0xf]
        %v1422 = vld [vmem:[%s12 + $0x20] sm:$0xf]
        %v1423 = vld [vmem:[%s12 + $0x24] sm:$0xf]
        %v1424 = vld [vmem:[%s12 + $0x28] sm:$0xf]
        %v1425 = vld [vmem:[%s12 + $0x2c] sm:$0xf]
        %v1426 = vld [vmem:[%s12 + $0x30] sm:$0xf]
        %v1427 = vld [vmem:[%s12 + $0x34] sm:$0xf]
        %v1428 = vld [vmem:[%s12 + $0x38] sm:$0xf]
        %v1429 = vld [vmem:[%s12 + $0x3c] sm:$0xf]
        %v1446 = vunpack.c.l.b16 %v1414
        %v1447 = vunpack.c.l.b16 %v1415
        %v1448 = vunpack.c.l.b16 %v1416
        %v1449 = vunpack.c.l.b16 %v1417
        %v1450 = vunpack.c.l.b16 %v1418
        %v1451 = vunpack.c.l.b16 %v1419
        %v1452 = vunpack.c.l.b16 %v1420
        %v1453 = vunpack.c.l.b16 %v1421
        %v1454 = vunpack.c.l.b16 %v1422
        %v1455 = vunpack.c.l.b16 %v1423
        %v1456 = vunpack.c.l.b16 %v1424
        %v1457 = vunpack.c.l.b16 %v1425
        %v1458 = vunpack.c.l.b16 %v1426
        %v1459 = vunpack.c.l.b16 %v1427
        %v1460 = vunpack.c.l.b16 %v1428
        %v1461 = vunpack.c.l.b16 %v1429
        %v1462 = vpack.c.b16 %v1447, %v1446
        %v1463 = vpack.c.b16 %v1449, %v1448
        %v1464 = vpack.c.b16 %v1451, %v1450
        %v1465 = vpack.c.b16 %v1453, %v1452
        %v1466 = vpack.c.b16 %v1455, %v1454
        %v1467 = vpack.c.b16 %v1457, %v1456
        %v1468 = vpack.c.b16 %v1459, %v1458
        %v1469 = vpack.c.b16 %v1461, %v1460
        %1478 = vmatprep.subr.bf16.mxu0 0
        %1479 = vmatpush1.bf16.msra.mxu0 %v1469
        %1480 = vmatprep.subr.bf16.mxu0 0
        %1481 = vmatpush1.bf16.msra.mxu0 %v1468
        %1482 = vmatprep.subr.bf16.mxu0 0
        %1483 = vmatpush1.bf16.msra.mxu0 %v1467
        %1484 = vmatprep.subr.bf16.mxu0 0
        %1485 = vmatpush1.bf16.msra.mxu0 %v1466
        %1486 = vmatprep.subr.bf16.mxu0 0
        %1487 = vmatpush1.bf16.msra.mxu0 %v1465
        %1488 = vmatprep.subr.bf16.mxu0 0
        %1489 = vmatpush1.bf16.msra.mxu0 %v1464
        %1490 = vmatprep.subr.bf16.mxu0 0
        %1491 = vmatpush1.bf16.msra.mxu0 %v1463
        %1492 = vmatprep.subr.bf16.mxu0 0
        %1493 = vmatpush1.bf16.msra.mxu0 %v1462
        %1494 = vmatprep.subr.bf16.mxu0 0
        %1495 = vmatpush2.bf16.msra.mxu0 0
        %1496 = vmatprep.subr.bf16.mxu0 0
        %1497 = vmatpush2.bf16.msra.mxu0 0
        %1498 = vmatprep.subr.bf16.mxu0 0
        %1499 = vmatpush2.bf16.msra.mxu0 0
        %1500 = vmatprep.subr.bf16.mxu0 0
        %1501 = vmatpush2.bf16.msra.mxu0 0
        %1502 = vmatprep.subr.bf16.mxu0 0
        %1503 = vmatpush2.bf16.msra.mxu0 0
        %1504 = vmatprep.subr.bf16.mxu0 0
        %1505 = vmatpush2.bf16.msra.mxu0 0
        %1506 = vmatprep.subr.bf16.mxu0 0
        %1507 = vmatpush2.bf16.msra.mxu0 0
        %1508 = vmatprep.subr.bf16.mxu0 0
        %1509 = vmatpush2.bf16.msra.mxu0 0
        %1510 = vmatprep.mubr.bf16.mxu0 0
        %1511 = vmatmul.mubr.bf16.gmra.mxu0 %v1413
        %v1512 = vpop.f32.mrf.mxu0
        %v1513 = vadd.f32 0.0, %v1512
        %v1514 = vpop.f32.mrf.mxu0
        %v1515 = vpop.f32.mrf.mxu0
        %v1516 = vpop.f32.mrf.mxu0
        %1517 = vdwg.mxu0
        %v1518 = vadd.f32 %v1321, %v1513
        %v1519 = vld [vmem:[%s13] sm:$0x1]
        %v1520 = vlaneseq
        %v1521 = vshrl.u32 %v1520, 7
        %v1522 = vsub.s32 0, %v1521
        %v1523 = vrot.slane %v1519, %v1522
        %v1524 = vadd.f32 %v1518, %v1523
        %v1525 = vld [vmem:[%s3 + $0x1] sm:$0x1]
        %v1526 = vld [vmem:[%s4 + $0x1] sm:$0x1]
        %v1527 = vsel %vm693, %v1524, 0.0
        %1528 = vadd.xlane.f32.xlu0 %v1527
        %v1529 = vpop.xlane.xlu0 %1528
        %v1530 = vmul.f32 %v1529, %v697
        %v1531 = vsub.f32 %v1524, %v1530
        %v1532 = vmul.f32 %v1531, %v1531
        %v1533 = vsel %vm693, %v1532, 0.0
        %1534 = vadd.xlane.f32.xlu0 %v1533
        %v1535 = vpop.xlane.xlu0 %1534
        %v1536 = vmul.f32 %v1535, %v697
        %v1537 = vadd.f32 %v1536, 1e-05
        %v1538 = vrsqrt.pop %v1537
        %v1539 = vmul.f32 %v1531, %v1538
        %v1540 = vlaneseq
        %v1541 = vshrl.u32 %v1540, 7
        %v1542 = vsub.s32 0, %v1541
        %v1543 = vrot.slane %v1525, %v1542
        %v1544 = vmul.f32 %v1539, %v1543
        %v1545 = vlaneseq
        %v1546 = vshrl.u32 %v1545, 7
        %v1547 = vsub.s32 0, %v1546
        %v1548 = vrot.slane %v1526, %v1547
        %v1549 = vadd.f32 %v1544, %v1548
        %v1550 = vpack.c.bf16 %v1549, %v1549
        %s1551 = scalar_lea.vmem %s5, 16
        %v1552 = vld [vmem:[%s1551] sm:$0xf]
        %v1553 = vld [vmem:[%s1551 + $0x4] sm:$0xf]
        %v1554 = vld [vmem:[%s1551 + $0x8] sm:$0xf]
        %v1555 = vld [vmem:[%s1551 + $0xc] sm:$0xf]
        %v1560 = vunpack.c.l.b16 %v1552
        %v1561 = vunpack.c.l.b16 %v1553
        %v1562 = vunpack.c.l.b16 %v1554
        %v1563 = vunpack.c.l.b16 %v1555
        %v1564 = vpack.c.b16 %v1561, %v1560
        %v1565 = vpack.c.b16 %v1563, %v1562
        %v1569 = vsel %vm693, %v1550, 0
        %1571 = vmatprep.subr.bf16.mxu0 0
        %1572 = vmatpush1.bf16.msra.mxu0 0
        %1573 = vmatprep.subr.bf16.mxu0 0
        %1574 = vmatpush1.bf16.msra.mxu0 0
        %1575 = vmatprep.subr.bf16.mxu0 0
        %1576 = vmatpush1.bf16.msra.mxu0 0
        %1577 = vmatprep.subr.bf16.mxu0 0
        %1578 = vmatpush1.bf16.msra.mxu0 0
        %1579 = vmatprep.subr.bf16.mxu0 0
        %1580 = vmatpush1.bf16.msra.mxu0 0
        %1581 = vmatprep.subr.bf16.mxu0 0
        %1582 = vmatpush1.bf16.msra.mxu0 0
        %1583 = vmatprep.subr.bf16.mxu0 0
        %1584 = vmatpush1.bf16.msra.mxu0 %v1565
        %1585 = vmatprep.subr.bf16.mxu0 0
        %1586 = vmatpush1.bf16.msra.mxu0 %v1564
        %1587 = vmatprep.subr.bf16.mxu0 0
        %1588 = vmatpush2.bf16.msra.mxu0 0
        %1589 = vmatprep.subr.bf16.mxu0 0
        %1590 = vmatpush2.bf16.msra.mxu0 0
        %1591 = vmatprep.subr.bf16.mxu0 0
        %1592 = vmatpush2.bf16.msra.mxu0 0
        %1593 = vmatprep.subr.bf16.mxu0 0
        %1594 = vmatpush2.bf16.msra.mxu0 0
        %1595 = vmatprep.subr.bf16.mxu0 0
        %1596 = vmatpush2.bf16.msra.mxu0 0
        %1597 = vmatprep.subr.bf16.mxu0 0
        %1598 = vmatpush2.bf16.msra.mxu0 0
        %1599 = vmatprep.subr.bf16.mxu0 0
        %1600 = vmatpush2.bf16.msra.mxu0 0
        %1601 = vmatprep.subr.bf16.mxu0 0
        %1602 = vmatpush2.bf16.msra.mxu0 0
        %1603 = vmatprep.mubr.bf16.mxu0 0
        %1604 = vmatmul.mubr.bf16.gmra.mxu0 %v1569
        %v1605 = vpop.f32.mrf.mxu0
        %v1606 = vadd.f32 0.0, %v1605
        %v1607 = vpop.f32.mrf.mxu0
        %v1608 = vpop.f32.mrf.mxu0
        %v1609 = vpop.f32.mrf.mxu0
        %1610 = vdwg.mxu0
        %1612 = vrot.lane.b32.xlu0 %v1606, 120
        %v1613 = vpop.permute.xlu0 %1612
        %1615 = vrot.lane.b32.xlu0 %v1606, 112
        %v1616 = vpop.permute.xlu0 %1615
        %1618 = vrot.lane.b32.xlu0 %v1606, 104
        %v1619 = vpop.permute.xlu0 %1618
        %v1621 = vpack.c.bf16 %v1606, %v1606
        %v1622 = vpack.c.bf16 %v1613, %v1613
        %v1623 = vpack.c.bf16 %v1616, %v1616
        %v1624 = vpack.c.bf16 %v1619, %v1619
        %1626 = vrot.lane.b32.xlu0 %v1621, 96
        %v1627 = vpop.permute.xlu0 %1626
        %v1629 = vsel %vm795, %v1621, 0
        %v1632 = vsel %vm795, %v1627, 0
        %1634 = vmatprep.subr.bf16.mxu0 0
        %1635 = vmatpush1.bf16.xpose.msra.mxu0 0
        %1636 = vmatprep.subr.bf16.mxu0 0
        %1637 = vmatpush1.bf16.xpose.msra.mxu0 0
        %1638 = vmatprep.subr.bf16.mxu0 0
        %1639 = vmatpush1.bf16.xpose.msra.mxu0 0
        %1640 = vmatprep.subr.bf16.mxu0 0
        %1641 = vmatpush1.bf16.xpose.msra.mxu0 0
        %1642 = vmatprep.subr.bf16.mxu0 0
        %1643 = vmatpush1.bf16.xpose.msra.mxu0 0
        %1644 = vmatprep.subr.bf16.mxu0 0
        %1645 = vmatpush1.bf16.xpose.msra.mxu0 0
        %1646 = vmatprep.subr.bf16.mxu0 0
        %1647 = vmatpush1.bf16.xpose.msra.mxu0 0
        %1648 = vmatprep.subr.bf16.mxu0 0
        %1649 = vmatpush1.bf16.xpose.msra.mxu0 %v1632
        %1650 = vmatprep.subr.bf16.mxu0 0
        %1651 = vmatpush2.bf16.xpose.msra.mxu0 0
        %1652 = vmatprep.subr.bf16.mxu0 0
        %1653 = vmatpush2.bf16.xpose.msra.mxu0 0
        %1654 = vmatprep.subr.bf16.mxu0 0
        %1655 = vmatpush2.bf16.xpose.msra.mxu0 0
        %1656 = vmatprep.subr.bf16.mxu0 0
        %1657 = vmatpush2.bf16.xpose.msra.mxu0 0
        %1658 = vmatprep.subr.bf16.mxu0 0
        %1659 = vmatpush2.bf16.xpose.msra.mxu0 0
        %1660 = vmatprep.subr.bf16.mxu0 0
        %1661 = vmatpush2.bf16.xpose.msra.mxu0 0
        %1662 = vmatprep.subr.bf16.mxu0 0
        %1663 = vmatpush2.bf16.xpose.msra.mxu0 0
        %1664 = vmatprep.subr.bf16.mxu0 0
        %1665 = vmatpush2.bf16.xpose.msra.mxu0 0
        %1666 = vmatprep.mubr.bf16.mxu0 0
        %1667 = vmatmul.mubr.bf16.gmra.mxu0 %v1629
        %v1668 = vpop.f32.mrf.mxu0
        %v1669 = vadd.f32 0.0, %v1668
        %v1670 = vpop.f32.mrf.mxu0
        %v1671 = vpop.f32.mrf.mxu0
        %v1672 = vpop.f32.mrf.mxu0
        %1673 = vdwg.mxu0
        %1675 = vrot.lane.b32.xlu0 %v1622, 96
        %v1676 = vpop.permute.xlu0 %1675
        %v1678 = vsel %vm795, %v1622, 0
        %v1681 = vsel %vm795, %v1676, 0
        %1683 = vmatprep.subr.bf16.mxu0 0
        %1684 = vmatpush1.bf16.xpose.msra.mxu0 0
        %1685 = vmatprep.subr.bf16.mxu0 0
        %1686 = vmatpush1.bf16.xpose.msra.mxu0 0
        %1687 = vmatprep.subr.bf16.mxu0 0
        %1688 = vmatpush1.bf16.xpose.msra.mxu0 0
        %1689 = vmatprep.subr.bf16.mxu0 0
        %1690 = vmatpush1.bf16.xpose.msra.mxu0 0
        %1691 = vmatprep.subr.bf16.mxu0 0
        %1692 = vmatpush1.bf16.xpose.msra.mxu0 0
        %1693 = vmatprep.subr.bf16.mxu0 0
        %1694 = vmatpush1.bf16.xpose.msra.mxu0 0
        %1695 = vmatprep.subr.bf16.mxu0 0
        %1696 = vmatpush1.bf16.xpose.msra.mxu0 0
        %1697 = vmatprep.subr.bf16.mxu0 0
        %1698 = vmatpush1.bf16.xpose.msra.mxu0 %v1681
        %1699 = vmatprep.subr.bf16.mxu0 0
        %1700 = vmatpush2.bf16.xpose.msra.mxu0 0
        %1701 = vmatprep.subr.bf16.mxu0 0
        %1702 = vmatpush2.bf16.xpose.msra.mxu0 0
        %1703 = vmatprep.subr.bf16.mxu0 0
        %1704 = vmatpush2.bf16.xpose.msra.mxu0 0
        %1705 = vmatprep.subr.bf16.mxu0 0
        %1706 = vmatpush2.bf16.xpose.msra.mxu0 0
        %1707 = vmatprep.subr.bf16.mxu0 0
        %1708 = vmatpush2.bf16.xpose.msra.mxu0 0
        %1709 = vmatprep.subr.bf16.mxu0 0
        %1710 = vmatpush2.bf16.xpose.msra.mxu0 0
        %1711 = vmatprep.subr.bf16.mxu0 0
        %1712 = vmatpush2.bf16.xpose.msra.mxu0 0
        %1713 = vmatprep.subr.bf16.mxu0 0
        %1714 = vmatpush2.bf16.xpose.msra.mxu0 0
        %1715 = vmatprep.mubr.bf16.mxu0 0
        %1716 = vmatmul.mubr.bf16.gmra.mxu0 %v1678
        %v1717 = vpop.f32.mrf.mxu0
        %v1718 = vadd.f32 0.0, %v1717
        %v1719 = vpop.f32.mrf.mxu0
        %v1720 = vpop.f32.mrf.mxu0
        %v1721 = vpop.f32.mrf.mxu0
        %1722 = vdwg.mxu0
        %1724 = vrot.lane.b32.xlu0 %v1623, 96
        %v1725 = vpop.permute.xlu0 %1724
        %v1727 = vsel %vm795, %v1623, 0
        %v1730 = vsel %vm795, %v1725, 0
        %1732 = vmatprep.subr.bf16.mxu0 0
        %1733 = vmatpush1.bf16.xpose.msra.mxu0 0
        %1734 = vmatprep.subr.bf16.mxu0 0
        %1735 = vmatpush1.bf16.xpose.msra.mxu0 0
        %1736 = vmatprep.subr.bf16.mxu0 0
        %1737 = vmatpush1.bf16.xpose.msra.mxu0 0
        %1738 = vmatprep.subr.bf16.mxu0 0
        %1739 = vmatpush1.bf16.xpose.msra.mxu0 0
        %1740 = vmatprep.subr.bf16.mxu0 0
        %1741 = vmatpush1.bf16.xpose.msra.mxu0 0
        %1742 = vmatprep.subr.bf16.mxu0 0
        %1743 = vmatpush1.bf16.xpose.msra.mxu0 0
        %1744 = vmatprep.subr.bf16.mxu0 0
        %1745 = vmatpush1.bf16.xpose.msra.mxu0 0
        %1746 = vmatprep.subr.bf16.mxu0 0
        %1747 = vmatpush1.bf16.xpose.msra.mxu0 %v1730
        %1748 = vmatprep.subr.bf16.mxu0 0
        %1749 = vmatpush2.bf16.xpose.msra.mxu0 0
        %1750 = vmatprep.subr.bf16.mxu0 0
        %1751 = vmatpush2.bf16.xpose.msra.mxu0 0
        %1752 = vmatprep.subr.bf16.mxu0 0
        %1753 = vmatpush2.bf16.xpose.msra.mxu0 0
        %1754 = vmatprep.subr.bf16.mxu0 0
        %1755 = vmatpush2.bf16.xpose.msra.mxu0 0
        %1756 = vmatprep.subr.bf16.mxu0 0
        %1757 = vmatpush2.bf16.xpose.msra.mxu0 0
        %1758 = vmatprep.subr.bf16.mxu0 0
        %1759 = vmatpush2.bf16.xpose.msra.mxu0 0
        %1760 = vmatprep.subr.bf16.mxu0 0
        %1761 = vmatpush2.bf16.xpose.msra.mxu0 0
        %1762 = vmatprep.subr.bf16.mxu0 0
        %1763 = vmatpush2.bf16.xpose.msra.mxu0 0
        %1764 = vmatprep.mubr.bf16.mxu0 0
        %1765 = vmatmul.mubr.bf16.gmra.mxu0 %v1727
        %v1766 = vpop.f32.mrf.mxu0
        %v1767 = vadd.f32 0.0, %v1766
        %v1768 = vpop.f32.mrf.mxu0
        %v1769 = vpop.f32.mrf.mxu0
        %v1770 = vpop.f32.mrf.mxu0
        %1771 = vdwg.mxu0
        %1773 = vrot.lane.b32.xlu0 %v1624, 96
        %v1774 = vpop.permute.xlu0 %1773
        %v1776 = vsel %vm795, %v1624, 0
        %v1779 = vsel %vm795, %v1774, 0
        %1781 = vmatprep.subr.bf16.mxu0 0
        %1782 = vmatpush1.bf16.xpose.msra.mxu0 0
        %1783 = vmatprep.subr.bf16.mxu0 0
        %1784 = vmatpush1.bf16.xpose.msra.mxu0 0
        %1785 = vmatprep.subr.bf16.mxu0 0
        %1786 = vmatpush1.bf16.xpose.msra.mxu0 0
        %1787 = vmatprep.subr.bf16.mxu0 0
        %1788 = vmatpush1.bf16.xpose.msra.mxu0 0
        %1789 = vmatprep.subr.bf16.mxu0 0
        %1790 = vmatpush1.bf16.xpose.msra.mxu0 0
        %1791 = vmatprep.subr.bf16.mxu0 0
        %1792 = vmatpush1.bf16.xpose.msra.mxu0 0
        %1793 = vmatprep.subr.bf16.mxu0 0
        %1794 = vmatpush1.bf16.xpose.msra.mxu0 0
        %1795 = vmatprep.subr.bf16.mxu0 0
        %1796 = vmatpush1.bf16.xpose.msra.mxu0 %v1779
        %1797 = vmatprep.subr.bf16.mxu0 0
        %1798 = vmatpush2.bf16.xpose.msra.mxu0 0
        %1799 = vmatprep.subr.bf16.mxu0 0
        %1800 = vmatpush2.bf16.xpose.msra.mxu0 0
        %1801 = vmatprep.subr.bf16.mxu0 0
        %1802 = vmatpush2.bf16.xpose.msra.mxu0 0
        %1803 = vmatprep.subr.bf16.mxu0 0
        %1804 = vmatpush2.bf16.xpose.msra.mxu0 0
        %1805 = vmatprep.subr.bf16.mxu0 0
        %1806 = vmatpush2.bf16.xpose.msra.mxu0 0
        %1807 = vmatprep.subr.bf16.mxu0 0
        %1808 = vmatpush2.bf16.xpose.msra.mxu0 0
        %1809 = vmatprep.subr.bf16.mxu0 0
        %1810 = vmatpush2.bf16.xpose.msra.mxu0 0
        %1811 = vmatprep.subr.bf16.mxu0 0
        %1812 = vmatpush2.bf16.xpose.msra.mxu0 0
        %1813 = vmatprep.mubr.bf16.mxu0 0
        %1814 = vmatmul.mubr.bf16.gmra.mxu0 %v1776
        %v1815 = vpop.f32.mrf.mxu0
        %v1816 = vadd.f32 0.0, %v1815
        %v1817 = vpop.f32.mrf.mxu0
        %v1818 = vpop.f32.mrf.mxu0
        %v1819 = vpop.f32.mrf.mxu0
        %1820 = vdwg.mxu0
        %v1821 = vmul.f32 %v1669, 0.17677669
        %v1822 = vmul.f32 %v1718, 0.17677669
        %v1823 = vmul.f32 %v1767, 0.17677669
        %v1824 = vmul.f32 %v1816, 0.17677669
        %v1825 = vadd.f32 %v1821, %v690
        %v1826 = vadd.f32 %v1822, %v690
        %v1827 = vadd.f32 %v1823, %v690
        %v1828 = vadd.f32 %v1824, %v690
        %v1829 = vsel %vm795, %v1825, -inf
        %1830 = vmax.xlane.f32.xlu0 %v1829
        %v1831 = vpop.xlane.xlu0 %1830
        %v1832 = vsel %vm795, %v1826, -inf
        %1833 = vmax.xlane.f32.xlu0 %v1832
        %v1834 = vpop.xlane.xlu0 %1833
        %v1835 = vsel %vm795, %v1827, -inf
        %1836 = vmax.xlane.f32.xlu0 %v1835
        %v1837 = vpop.xlane.xlu0 %1836
        %v1838 = vsel %vm795, %v1828, -inf
        %1839 = vmax.xlane.f32.xlu0 %v1838
        %v1840 = vpop.xlane.xlu0 %1839
        %v1841 = vsub.f32 %v1825, %v1831
        %v1842 = vsub.f32 %v1826, %v1834
        %v1843 = vsub.f32 %v1827, %v1837
        %v1844 = vsub.f32 %v1828, %v1840
        %v1845 = vmul.f32 %v1841, 1.442695
        %v1846 = vpow.pop %v1845
        %v1847 = vmul.f32 %v1842, 1.442695
        %v1848 = vpow.pop %v1847
        %v1849 = vmul.f32 %v1843, 1.442695
        %v1850 = vpow.pop %v1849
        %v1851 = vmul.f32 %v1844, 1.442695
        %v1852 = vpow.pop %v1851
        %v1853 = vsel %vm795, %v1846, 0.0
        %1854 = vadd.xlane.f32.xlu0 %v1853
        %v1855 = vpop.xlane.xlu0 %1854
        %v1856 = vsel %vm795, %v1848, 0.0
        %1857 = vadd.xlane.f32.xlu0 %v1856
        %v1858 = vpop.xlane.xlu0 %1857
        %v1859 = vsel %vm795, %v1850, 0.0
        %1860 = vadd.xlane.f32.xlu0 %v1859
        %v1861 = vpop.xlane.xlu0 %1860
        %v1862 = vsel %vm795, %v1852, 0.0
        %1863 = vadd.xlane.f32.xlu0 %v1862
        %v1864 = vpop.xlane.xlu0 %1863
        %v1865 = vrcp.pop %v1855
        %v1866 = vmul.f32 %v1846, %v1865
        %v1867 = vrcp.pop %v1858
        %v1868 = vmul.f32 %v1848, %v1867
        %v1869 = vrcp.pop %v1861
        %v1870 = vmul.f32 %v1850, %v1869
        %v1871 = vrcp.pop %v1864
        %v1872 = vmul.f32 %v1852, %v1871
        %v1873 = vpack.c.bf16 %v1866, %v1866
        %v1874 = vpack.c.bf16 %v1868, %v1868
        %v1875 = vpack.c.bf16 %v1870, %v1870
        %v1876 = vpack.c.bf16 %v1872, %v1872
        %1877 = vrot.lane.b32.xlu0 %v1621, 64
        %v1878 = vpop.permute.xlu0 %1877
        %v1880 = vsel %vm795, %v1873, 0
        %v1883 = vsel %vm1050, %v1878, 0
        %1885 = vmatprep.subr.bf16.mxu0 0
        %1886 = vmatpush1.bf16.msra.mxu0 0
        %1887 = vmatprep.subr.bf16.mxu0 0
        %1888 = vmatpush1.bf16.msra.mxu0 0
        %1889 = vmatprep.subr.bf16.mxu0 0
        %1890 = vmatpush1.bf16.msra.mxu0 0
        %1891 = vmatprep.subr.bf16.mxu0 0
        %1892 = vmatpush1.bf16.msra.mxu0 0
        %1893 = vmatprep.subr.bf16.mxu0 0
        %1894 = vmatpush1.bf16.msra.mxu0 0
        %1895 = vmatprep.subr.bf16.mxu0 0
        %1896 = vmatpush1.bf16.msra.mxu0 0
        %1897 = vmatprep.subr.bf16.mxu0 0
        %1898 = vmatpush1.bf16.msra.mxu0 0
        %1899 = vmatprep.subr.bf16.mxu0 0
        %1900 = vmatpush1.bf16.msra.mxu0 %v1883
        %1901 = vmatprep.subr.bf16.mxu0 0
        %1902 = vmatpush2.bf16.msra.mxu0 0
        %1903 = vmatprep.subr.bf16.mxu0 0
        %1904 = vmatpush2.bf16.msra.mxu0 0
        %1905 = vmatprep.subr.bf16.mxu0 0
        %1906 = vmatpush2.bf16.msra.mxu0 0
        %1907 = vmatprep.subr.bf16.mxu0 0
        %1908 = vmatpush2.bf16.msra.mxu0 0
        %1909 = vmatprep.subr.bf16.mxu0 0
        %1910 = vmatpush2.bf16.msra.mxu0 0
        %1911 = vmatprep.subr.bf16.mxu0 0
        %1912 = vmatpush2.bf16.msra.mxu0 0
        %1913 = vmatprep.subr.bf16.mxu0 0
        %1914 = vmatpush2.bf16.msra.mxu0 0
        %1915 = vmatprep.subr.bf16.mxu0 0
        %1916 = vmatpush2.bf16.msra.mxu0 0
        %1917 = vmatprep.mubr.bf16.mxu0 0
        %1918 = vmatmul.mubr.bf16.gmra.mxu0 %v1880
        %v1919 = vpop.f32.mrf.mxu0
        %v1920 = vadd.f32 0.0, %v1919
        %v1921 = vpop.f32.mrf.mxu0
        %v1922 = vpop.f32.mrf.mxu0
        %v1923 = vpop.f32.mrf.mxu0
        %1924 = vdwg.mxu0
        %1925 = vrot.lane.b32.xlu0 %v1622, 64
        %v1926 = vpop.permute.xlu0 %1925
        %v1928 = vsel %vm795, %v1874, 0
        %v1931 = vsel %vm1050, %v1926, 0
        %1933 = vmatprep.subr.bf16.mxu0 0
        %1934 = vmatpush1.bf16.msra.mxu0 0
        %1935 = vmatprep.subr.bf16.mxu0 0
        %1936 = vmatpush1.bf16.msra.mxu0 0
        %1937 = vmatprep.subr.bf16.mxu0 0
        %1938 = vmatpush1.bf16.msra.mxu0 0
        %1939 = vmatprep.subr.bf16.mxu0 0
        %1940 = vmatpush1.bf16.msra.mxu0 0
        %1941 = vmatprep.subr.bf16.mxu0 0
        %1942 = vmatpush1.bf16.msra.mxu0 0
        %1943 = vmatprep.subr.bf16.mxu0 0
        %1944 = vmatpush1.bf16.msra.mxu0 0
        %1945 = vmatprep.subr.bf16.mxu0 0
        %1946 = vmatpush1.bf16.msra.mxu0 0
        %1947 = vmatprep.subr.bf16.mxu0 0
        %1948 = vmatpush1.bf16.msra.mxu0 %v1931
        %1949 = vmatprep.subr.bf16.mxu0 0
        %1950 = vmatpush2.bf16.msra.mxu0 0
        %1951 = vmatprep.subr.bf16.mxu0 0
        %1952 = vmatpush2.bf16.msra.mxu0 0
        %1953 = vmatprep.subr.bf16.mxu0 0
        %1954 = vmatpush2.bf16.msra.mxu0 0
        %1955 = vmatprep.subr.bf16.mxu0 0
        %1956 = vmatpush2.bf16.msra.mxu0 0
        %1957 = vmatprep.subr.bf16.mxu0 0
        %1958 = vmatpush2.bf16.msra.mxu0 0
        %1959 = vmatprep.subr.bf16.mxu0 0
        %1960 = vmatpush2.bf16.msra.mxu0 0
        %1961 = vmatprep.subr.bf16.mxu0 0
        %1962 = vmatpush2.bf16.msra.mxu0 0
        %1963 = vmatprep.subr.bf16.mxu0 0
        %1964 = vmatpush2.bf16.msra.mxu0 0
        %1965 = vmatprep.mubr.bf16.mxu0 0
        %1966 = vmatmul.mubr.bf16.gmra.mxu0 %v1928
        %v1967 = vpop.f32.mrf.mxu0
        %v1968 = vadd.f32 0.0, %v1967
        %v1969 = vpop.f32.mrf.mxu0
        %v1970 = vpop.f32.mrf.mxu0
        %v1971 = vpop.f32.mrf.mxu0
        %1972 = vdwg.mxu0
        %1973 = vrot.lane.b32.xlu0 %v1623, 64
        %v1974 = vpop.permute.xlu0 %1973
        %v1976 = vsel %vm795, %v1875, 0
        %v1979 = vsel %vm1050, %v1974, 0
        %1981 = vmatprep.subr.bf16.mxu0 0
        %1982 = vmatpush1.bf16.msra.mxu0 0
        %1983 = vmatprep.subr.bf16.mxu0 0
        %1984 = vmatpush1.bf16.msra.mxu0 0
        %1985 = vmatprep.subr.bf16.mxu0 0
        %1986 = vmatpush1.bf16.msra.mxu0 0
        %1987 = vmatprep.subr.bf16.mxu0 0
        %1988 = vmatpush1.bf16.msra.mxu0 0
        %1989 = vmatprep.subr.bf16.mxu0 0
        %1990 = vmatpush1.bf16.msra.mxu0 0
        %1991 = vmatprep.subr.bf16.mxu0 0
        %1992 = vmatpush1.bf16.msra.mxu0 0
        %1993 = vmatprep.subr.bf16.mxu0 0
        %1994 = vmatpush1.bf16.msra.mxu0 0
        %1995 = vmatprep.subr.bf16.mxu0 0
        %1996 = vmatpush1.bf16.msra.mxu0 %v1979
        %1997 = vmatprep.subr.bf16.mxu0 0
        %1998 = vmatpush2.bf16.msra.mxu0 0
        %1999 = vmatprep.subr.bf16.mxu0 0
        %2000 = vmatpush2.bf16.msra.mxu0 0
        %2001 = vmatprep.subr.bf16.mxu0 0
        %2002 = vmatpush2.bf16.msra.mxu0 0
        %2003 = vmatprep.subr.bf16.mxu0 0
        %2004 = vmatpush2.bf16.msra.mxu0 0
        %2005 = vmatprep.subr.bf16.mxu0 0
        %2006 = vmatpush2.bf16.msra.mxu0 0
        %2007 = vmatprep.subr.bf16.mxu0 0
        %2008 = vmatpush2.bf16.msra.mxu0 0
        %2009 = vmatprep.subr.bf16.mxu0 0
        %2010 = vmatpush2.bf16.msra.mxu0 0
        %2011 = vmatprep.subr.bf16.mxu0 0
        %2012 = vmatpush2.bf16.msra.mxu0 0
        %2013 = vmatprep.mubr.bf16.mxu0 0
        %2014 = vmatmul.mubr.bf16.gmra.mxu0 %v1976
        %v2015 = vpop.f32.mrf.mxu0
        %v2016 = vadd.f32 0.0, %v2015
        %v2017 = vpop.f32.mrf.mxu0
        %v2018 = vpop.f32.mrf.mxu0
        %v2019 = vpop.f32.mrf.mxu0
        %2020 = vdwg.mxu0
        %2021 = vrot.lane.b32.xlu0 %v1624, 64
        %v2022 = vpop.permute.xlu0 %2021
        %v2024 = vsel %vm795, %v1876, 0
        %v2027 = vsel %vm1050, %v2022, 0
        %2029 = vmatprep.subr.bf16.mxu0 0
        %2030 = vmatpush1.bf16.msra.mxu0 0
        %2031 = vmatprep.subr.bf16.mxu0 0
        %2032 = vmatpush1.bf16.msra.mxu0 0
        %2033 = vmatprep.subr.bf16.mxu0 0
        %2034 = vmatpush1.bf16.msra.mxu0 0
        %2035 = vmatprep.subr.bf16.mxu0 0
        %2036 = vmatpush1.bf16.msra.mxu0 0
        %2037 = vmatprep.subr.bf16.mxu0 0
        %2038 = vmatpush1.bf16.msra.mxu0 0
        %2039 = vmatprep.subr.bf16.mxu0 0
        %2040 = vmatpush1.bf16.msra.mxu0 0
        %2041 = vmatprep.subr.bf16.mxu0 0
        %2042 = vmatpush1.bf16.msra.mxu0 0
        %2043 = vmatprep.subr.bf16.mxu0 0
        %2044 = vmatpush1.bf16.msra.mxu0 %v2027
        %2045 = vmatprep.subr.bf16.mxu0 0
        %2046 = vmatpush2.bf16.msra.mxu0 0
        %2047 = vmatprep.subr.bf16.mxu0 0
        %2048 = vmatpush2.bf16.msra.mxu0 0
        %2049 = vmatprep.subr.bf16.mxu0 0
        %2050 = vmatpush2.bf16.msra.mxu0 0
        %2051 = vmatprep.subr.bf16.mxu0 0
        %2052 = vmatpush2.bf16.msra.mxu0 0
        %2053 = vmatprep.subr.bf16.mxu0 0
        %2054 = vmatpush2.bf16.msra.mxu0 0
        %2055 = vmatprep.subr.bf16.mxu0 0
        %2056 = vmatpush2.bf16.msra.mxu0 0
        %2057 = vmatprep.subr.bf16.mxu0 0
        %2058 = vmatpush2.bf16.msra.mxu0 0
        %2059 = vmatprep.subr.bf16.mxu0 0
        %2060 = vmatpush2.bf16.msra.mxu0 0
        %2061 = vmatprep.mubr.bf16.mxu0 0
        %2062 = vmatmul.mubr.bf16.gmra.mxu0 %v2024
        %v2063 = vpop.f32.mrf.mxu0
        %v2064 = vadd.f32 0.0, %v2063
        %v2065 = vpop.f32.mrf.mxu0
        %v2066 = vpop.f32.mrf.mxu0
        %v2067 = vpop.f32.mrf.mxu0
        %2068 = vdwg.mxu0
        %2070 = vrot.lane.b32.xlu0 %v1968, 8
        %v2071 = vpop.permute.xlu0 %2070
        %2074 = vrot.lane.b32.xlu0 %v2016, 16
        %v2075 = vpop.permute.xlu0 %2074
        %2078 = vrot.lane.b32.xlu0 %v2064, 24
        %v2079 = vpop.permute.xlu0 %2078
        %v2081 = vsel %vm795, %v1920, %v2071
        %v2082 = vsel %vm1251, %v2081, %v2075
        %v2083 = vsel %vm1253, %v2082, %v2079
        %v2084 = vpack.c.bf16 %v2083, %v2083
        %s2085 = scalar_lea.vmem %s6, 16
        %v2086 = vld [vmem:[%s2085] sm:$0xf]
        %v2087 = vld [vmem:[%s2085 + $0x4] sm:$0xf]
        %v2088 = vld [vmem:[%s2085 + $0x8] sm:$0xf]
        %v2089 = vld [vmem:[%s2085 + $0xc] sm:$0xf]
        %v2094 = vunpack.c.l.b16 %v2086
        %v2095 = vunpack.c.l.b16 %v2087
        %v2096 = vunpack.c.l.b16 %v2088
        %v2097 = vunpack.c.l.b16 %v2089
        %v2098 = vpack.c.b16 %v2095, %v2094
        %v2099 = vpack.c.b16 %v2097, %v2096
        %v2103 = vsel %vm693, %v2084, 0
        %2105 = vmatprep.subr.bf16.mxu0 0
        %2106 = vmatpush1.bf16.msra.mxu0 0
        %2107 = vmatprep.subr.bf16.mxu0 0
        %2108 = vmatpush1.bf16.msra.mxu0 0
        %2109 = vmatprep.subr.bf16.mxu0 0
        %2110 = vmatpush1.bf16.msra.mxu0 0
        %2111 = vmatprep.subr.bf16.mxu0 0
        %2112 = vmatpush1.bf16.msra.mxu0 0
        %2113 = vmatprep.subr.bf16.mxu0 0
        %2114 = vmatpush1.bf16.msra.mxu0 0
        %2115 = vmatprep.subr.bf16.mxu0 0
        %2116 = vmatpush1.bf16.msra.mxu0 0
        %2117 = vmatprep.subr.bf16.mxu0 0
        %2118 = vmatpush1.bf16.msra.mxu0 %v2099
        %2119 = vmatprep.subr.bf16.mxu0 0
        %2120 = vmatpush1.bf16.msra.mxu0 %v2098
        %2121 = vmatprep.subr.bf16.mxu0 0
        %2122 = vmatpush2.bf16.msra.mxu0 0
        %2123 = vmatprep.subr.bf16.mxu0 0
        %2124 = vmatpush2.bf16.msra.mxu0 0
        %2125 = vmatprep.subr.bf16.mxu0 0
        %2126 = vmatpush2.bf16.msra.mxu0 0
        %2127 = vmatprep.subr.bf16.mxu0 0
        %2128 = vmatpush2.bf16.msra.mxu0 0
        %2129 = vmatprep.subr.bf16.mxu0 0
        %2130 = vmatpush2.bf16.msra.mxu0 0
        %2131 = vmatprep.subr.bf16.mxu0 0
        %2132 = vmatpush2.bf16.msra.mxu0 0
        %2133 = vmatprep.subr.bf16.mxu0 0
        %2134 = vmatpush2.bf16.msra.mxu0 0
        %2135 = vmatprep.subr.bf16.mxu0 0
        %2136 = vmatpush2.bf16.msra.mxu0 0
        %2137 = vmatprep.mubr.bf16.mxu0 0
        %2138 = vmatmul.mubr.bf16.gmra.mxu0 %v2103
        %v2139 = vpop.f32.mrf.mxu0
        %v2140 = vadd.f32 0.0, %v2139
        %v2141 = vpop.f32.mrf.mxu0
        %v2142 = vpop.f32.mrf.mxu0
        %v2143 = vpop.f32.mrf.mxu0
        %2144 = vdwg.mxu0
        %v2145 = vadd.f32 %v1524, %v2140
        %v2146 = vld [vmem:[%s7 + $0x1] sm:$0x1]
        %v2147 = vlaneseq
        %v2148 = vshrl.u32 %v2147, 7
        %v2149 = vsub.s32 0, %v2148
        %v2150 = vrot.slane %v2146, %v2149
        %v2151 = vadd.f32 %v2145, %v2150
        %v2152 = vld [vmem:[%s8 + $0x1] sm:$0x1]
        %v2153 = vld [vmem:[%s9 + $0x1] sm:$0x1]
        %v2154 = vsel %vm693, %v2151, 0.0
        %2155 = vadd.xlane.f32.xlu0 %v2154
        %v2156 = vpop.xlane.xlu0 %2155
        %v2157 = vmul.f32 %v2156, %v697
        %v2158 = vsub.f32 %v2151, %v2157
        %v2159 = vmul.f32 %v2158, %v2158
        %v2160 = vsel %vm693, %v2159, 0.0
        %2161 = vadd.xlane.f32.xlu0 %v2160
        %v2162 = vpop.xlane.xlu0 %2161
        %v2163 = vmul.f32 %v2162, %v697
        %v2164 = vadd.f32 %v2163, 1e-05
        %v2165 = vrsqrt.pop %v2164
        %v2166 = vmul.f32 %v2158, %v2165
        %v2167 = vlaneseq
        %v2168 = vshrl.u32 %v2167, 7
        %v2169 = vsub.s32 0, %v2168
        %v2170 = vrot.slane %v2152, %v2169
        %v2171 = vmul.f32 %v2166, %v2170
        %v2172 = vlaneseq
        %v2173 = vshrl.u32 %v2172, 7
        %v2174 = vsub.s32 0, %v2173
        %v2175 = vrot.slane %v2153, %v2174
        %v2176 = vadd.f32 %v2171, %v2175
        %v2177 = vpack.c.bf16 %v2176, %v2176
        %s2178 = scalar_lea.vmem %s10, 16
        %v2179 = vld [vmem:[%s2178] sm:$0xf]
        %v2180 = vld [vmem:[%s2178 + $0x4] sm:$0xf]
        %v2181 = vld [vmem:[%s2178 + $0x8] sm:$0xf]
        %v2182 = vld [vmem:[%s2178 + $0xc] sm:$0xf]
        %v2183 = vld [vmem:[%s11 + $0x1] sm:$0x1]
        %v2184 = vlaneseq
        %v2185 = vshrl.u32 %v2184, 7
        %v2186 = vsub.s32 0, %v2185
        %v2187 = vrot.slane %v2183, %v2186
        %v2192 = vunpack.c.l.b16 %v2179
        %v2193 = vunpack.c.l.b16 %v2180
        %v2194 = vunpack.c.l.b16 %v2181
        %v2195 = vunpack.c.l.b16 %v2182
        %v2196 = vpack.c.b16 %v2193, %v2192
        %v2197 = vpack.c.b16 %v2195, %v2194
        %v2201 = vsel %vm693, %v2177, 0
        %2203 = vmatprep.subr.bf16.mxu0 0
        %2204 = vmatpush1.bf16.msra.mxu0 0
        %2205 = vmatprep.subr.bf16.mxu0 0
        %2206 = vmatpush1.bf16.msra.mxu0 0
        %2207 = vmatprep.subr.bf16.mxu0 0
        %2208 = vmatpush1.bf16.msra.mxu0 0
        %2209 = vmatprep.subr.bf16.mxu0 0
        %2210 = vmatpush1.bf16.msra.mxu0 0
        %2211 = vmatprep.subr.bf16.mxu0 0
        %2212 = vmatpush1.bf16.msra.mxu0 0
        %2213 = vmatprep.subr.bf16.mxu0 0
        %2214 = vmatpush1.bf16.msra.mxu0 0
        %2215 = vmatprep.subr.bf16.mxu0 0
        %2216 = vmatpush1.bf16.msra.mxu0 %v2197
        %2217 = vmatprep.subr.bf16.mxu0 0
        %2218 = vmatpush1.bf16.msra.mxu0 %v2196
        %2219 = vmatprep.subr.bf16.mxu0 0
        %2220 = vmatpush2.bf16.msra.mxu0 0
        %2221 = vmatprep.subr.bf16.mxu0 0
        %2222 = vmatpush2.bf16.msra.mxu0 0
        %2223 = vmatprep.subr.bf16.mxu0 0
        %2224 = vmatpush2.bf16.msra.mxu0 0
        %2225 = vmatprep.subr.bf16.mxu0 0
        %2226 = vmatpush2.bf16.msra.mxu0 0
        %2227 = vmatprep.subr.bf16.mxu0 0
        %2228 = vmatpush2.bf16.msra.mxu0 0
        %2229 = vmatprep.subr.bf16.mxu0 0
        %2230 = vmatpush2.bf16.msra.mxu0 0
        %2231 = vmatprep.subr.bf16.mxu0 0
        %2232 = vmatpush2.bf16.msra.mxu0 0
        %2233 = vmatprep.subr.bf16.mxu0 0
        %2234 = vmatpush2.bf16.msra.mxu0 0
        %2235 = vmatprep.mubr.bf16.mxu0 0
        %2236 = vmatmul.mubr.bf16.gmra.mxu0 %v2201
        %v2237 = vpop.f32.mrf.mxu0
        %v2238 = vadd.f32 %v2187, %v2237
        %v2239 = vpop.f32.mrf.mxu0
        %v2240 = vpop.f32.mrf.mxu0
        %v2241 = vpop.f32.mrf.mxu0
        %2242 = vdwg.mxu0
        %v2243 = vmax.f32 %v2238, 0.0
        %v2244 = vpack.c.bf16 %v2243, %v2243
        %s2245 = scalar_lea.vmem %s12, 64
        %v2246 = vld [vmem:[%s2245] sm:$0xf]
        %v2247 = vld [vmem:[%s2245 + $0x4] sm:$0xf]
        %v2248 = vld [vmem:[%s2245 + $0x8] sm:$0xf]
        %v2249 = vld [vmem:[%s2245 + $0xc] sm:$0xf]
        %v2250 = vld [vmem:[%s2245 + $0x10] sm:$0xf]
        %v2251 = vld [vmem:[%s2245 + $0x14] sm:$0xf]
        %v2252 = vld [vmem:[%s2245 + $0x18] sm:$0xf]
        %v2253 = vld [vmem:[%s2245 + $0x1c] sm:$0xf]
        %v2254 = vld [vmem:[%s2245 + $0x20] sm:$0xf]
        %v2255 = vld [vmem:[%s2245 + $0x24] sm:$0xf]
        %v2256 = vld [vmem:[%s2245 + $0x28] sm:$0xf]
        %v2257 = vld [vmem:[%s2245 + $0x2c] sm:$0xf]
        %v2258 = vld [vmem:[%s2245 + $0x30] sm:$0xf]
        %v2259 = vld [vmem:[%s2245 + $0x34] sm:$0xf]
        %v2260 = vld [vmem:[%s2245 + $0x38] sm:$0xf]
        %v2261 = vld [vmem:[%s2245 + $0x3c] sm:$0xf]
        %v2278 = vunpack.c.l.b16 %v2246
        %v2279 = vunpack.c.l.b16 %v2247
        %v2280 = vunpack.c.l.b16 %v2248
        %v2281 = vunpack.c.l.b16 %v2249
        %v2282 = vunpack.c.l.b16 %v2250
        %v2283 = vunpack.c.l.b16 %v2251
        %v2284 = vunpack.c.l.b16 %v2252
        %v2285 = vunpack.c.l.b16 %v2253
        %v2286 = vunpack.c.l.b16 %v2254
        %v2287 = vunpack.c.l.b16 %v2255
        %v2288 = vunpack.c.l.b16 %v2256
        %v2289 = vunpack.c.l.b16 %v2257
        %v2290 = vunpack.c.l.b16 %v2258
        %v2291 = vunpack.c.l.b16 %v2259
        %v2292 = vunpack.c.l.b16 %v2260
        %v2293 = vunpack.c.l.b16 %v2261
        %v2294 = vpack.c.b16 %v2279, %v2278
        %v2295 = vpack.c.b16 %v2281, %v2280
        %v2296 = vpack.c.b16 %v2283, %v2282
        %v2297 = vpack.c.b16 %v2285, %v2284
        %v2298 = vpack.c.b16 %v2287, %v2286
        %v2299 = vpack.c.b16 %v2289, %v2288
        %v2300 = vpack.c.b16 %v2291, %v2290
        %v2301 = vpack.c.b16 %v2293, %v2292
        %2310 = vmatprep.subr.bf16.mxu0 0
        %2311 = vmatpush1.bf16.msra.mxu0 %v2301
        %2312 = vmatprep.subr.bf16.mxu0 0
        %2313 = vmatpush1.bf16.msra.mxu0 %v2300
        %2314 = vmatprep.subr.bf16.mxu0 0
        %2315 = vmatpush1.bf16.msra.mxu0 %v2299
        %2316 = vmatprep.subr.bf16.mxu0 0
        %2317 = vmatpush1.bf16.msra.mxu0 %v2298
        %2318 = vmatprep.subr.bf16.mxu0 0
        %2319 = vmatpush1.bf16.msra.mxu0 %v2297
        %2320 = vmatprep.subr.bf16.mxu0 0
        %2321 = vmatpush1.bf16.msra.mxu0 %v2296
        %2322 = vmatprep.subr.bf16.mxu0 0
        %2323 = vmatpush1.bf16.msra.mxu0 %v2295
        %2324 = vmatprep.subr.bf16.mxu0 0
        %2325 = vmatpush1.bf16.msra.mxu0 %v2294
        %2326 = vmatprep.subr.bf16.mxu0 0
        %2327 = vmatpush2.bf16.msra.mxu0 0
        %2328 = vmatprep.subr.bf16.mxu0 0
        %2329 = vmatpush2.bf16.msra.mxu0 0
        %2330 = vmatprep.subr.bf16.mxu0 0
        %2331 = vmatpush2.bf16.msra.mxu0 0
        %2332 = vmatprep.subr.bf16.mxu0 0
        %2333 = vmatpush2.bf16.msra.mxu0 0
        %2334 = vmatprep.subr.bf16.mxu0 0
        %2335 = vmatpush2.bf16.msra.mxu0 0
        %2336 = vmatprep.subr.bf16.mxu0 0
        %2337 = vmatpush2.bf16.msra.mxu0 0
        %2338 = vmatprep.subr.bf16.mxu0 0
        %2339 = vmatpush2.bf16.msra.mxu0 0
        %2340 = vmatprep.subr.bf16.mxu0 0
        %2341 = vmatpush2.bf16.msra.mxu0 0
        %2342 = vmatprep.mubr.bf16.mxu0 0
        %2343 = vmatmul.mubr.bf16.gmra.mxu0 %v2244
        %v2344 = vpop.f32.mrf.mxu0
        %v2345 = vadd.f32 0.0, %v2344
        %v2346 = vpop.f32.mrf.mxu0
        %v2347 = vpop.f32.mrf.mxu0
        %v2348 = vpop.f32.mrf.mxu0
        %2349 = vdwg.mxu0
        %v2350 = vadd.f32 %v2151, %v2345
        %v2351 = vld [vmem:[%s13 + $0x1] sm:$0x1]
        %v2352 = vlaneseq
        %v2353 = vshrl.u32 %v2352, 7
        %v2354 = vsub.s32 0, %v2353
        %v2355 = vrot.slane %v2351, %v2354
        %v2356 = vadd.f32 %v2350, %v2355
        %v2357 = vld [vmem:[%s14] sm:$0x1]
        %v2358 = vld [vmem:[%s15] sm:$0x1]
        %v2359 = vsel %vm693, %v2356, 0.0
        %2360 = vadd.xlane.f32.xlu0 %v2359
        %v2361 = vpop.xlane.xlu0 %2360
        %v2362 = vmul.f32 %v2361, %v697
        %v2363 = vsub.f32 %v2356, %v2362
        %v2364 = vmul.f32 %v2363, %v2363
        %v2365 = vsel %vm693, %v2364, 0.0
        %2366 = vadd.xlane.f32.xlu0 %v2365
        %v2367 = vpop.xlane.xlu0 %2366
        %v2368 = vmul.f32 %v2367, %v697
        %v2369 = vadd.f32 %v2368, 1e-05
        %v2370 = vrsqrt.pop %v2369
        %v2371 = vmul.f32 %v2363, %v2370
        %v2373 = vlaneseq
        %v2374 = vshrl.u32 %v2373, 7
        %v2375 = vsub.s32 0, %v2374
        %v2376 = vrot.slane %v2357, %v2375
        %v2378 = vmul.f32 %v2371, %v2376
        %v2380 = vlaneseq
        %v2381 = vshrl.u32 %v2380, 7
        %v2382 = vsub.s32 0, %v2381
        %v2383 = vrot.slane %v2358, %v2382
        %v2385 = vadd.f32 %v2378, %v2383
        %v2386 = vpack.c.bf16 %v2385, %v2385
        %v2387 = vld [vmem:[%s16] sm:$0xf]
        %v2388 = vld [vmem:[%s16 + $0x4] sm:$0xf]
        %v2389 = vld [vmem:[%s16 + $0x8] sm:$0xf]
        %v2390 = vld [vmem:[%s16 + $0xc] sm:$0xf]
        %v2391 = vld [vmem:[%s17] sm:$0x1]
        %v2393 = vlaneseq
        %v2394 = vshrl.u32 %v2393, 7
        %v2395 = vsub.s32 0, %v2394
        %v2396 = vrot.slane %v2391, %v2395
        %v2402 = vunpack.c.l.b16 %v2387
        %v2403 = vunpack.c.l.b16 %v2388
        %v2404 = vunpack.c.l.b16 %v2389
        %v2405 = vunpack.c.l.b16 %v2390
        %v2406 = vpack.c.b16 %v2403, %v2402
        %v2407 = vpack.c.b16 %v2405, %v2404
        %v2411 = vsel %vm693, %v2386, 0
        %2413 = vmatprep.subr.bf16.mxu0 0
        %2414 = vmatpush1.bf16.msra.mxu0 0
        %2415 = vmatprep.subr.bf16.mxu0 0
        %2416 = vmatpush1.bf16.msra.mxu0 0
        %2417 = vmatprep.subr.bf16.mxu0 0
        %2418 = vmatpush1.bf16.msra.mxu0 0
        %2419 = vmatprep.subr.bf16.mxu0 0
        %2420 = vmatpush1.bf16.msra.mxu0 0
        %2421 = vmatprep.subr.bf16.mxu0 0
        %2422 = vmatpush1.bf16.msra.mxu0 0
        %2423 = vmatprep.subr.bf16.mxu0 0
        %2424 = vmatpush1.bf16.msra.mxu0 0
        %2425 = vmatprep.subr.bf16.mxu0 0
        %2426 = vmatpush1.bf16.msra.mxu0 %v2407
        %2427 = vmatprep.subr.bf16.mxu0 0
        %2428 = vmatpush1.bf16.msra.mxu0 %v2406
        %2429 = vmatprep.subr.bf16.mxu0 0
        %2430 = vmatpush2.bf16.msra.mxu0 0
        %2431 = vmatprep.subr.bf16.mxu0 0
        %2432 = vmatpush2.bf16.msra.mxu0 0
        %2433 = vmatprep.subr.bf16.mxu0 0
        %2434 = vmatpush2.bf16.msra.mxu0 0
        %2435 = vmatprep.subr.bf16.mxu0 0
        %2436 = vmatpush2.bf16.msra.mxu0 0
        %2437 = vmatprep.subr.bf16.mxu0 0
        %2438 = vmatpush2.bf16.msra.mxu0 0
        %2439 = vmatprep.subr.bf16.mxu0 0
        %2440 = vmatpush2.bf16.msra.mxu0 0
        %2441 = vmatprep.subr.bf16.mxu0 0
        %2442 = vmatpush2.bf16.msra.mxu0 0
        %2443 = vmatprep.subr.bf16.mxu0 0
        %2444 = vmatpush2.bf16.msra.mxu0 0
        %2445 = vmatprep.mubr.bf16.mxu0 0
        %2446 = vmatmul.mubr.bf16.gmra.mxu0 %v2411
        %v2447 = vpop.f32.mrf.mxu0
        %v2448 = vadd.f32 %v2396, %v2447
        %v2449 = vpop.f32.mrf.mxu0
        %v2450 = vpop.f32.mrf.mxu0
        %v2451 = vpop.f32.mrf.mxu0
        %2452 = vdwg.mxu0
        %2453 = vst [vmem:[%s566] sm:$0xff] %v2448
        %s2454 = sand.u32 %s423, 1
        %s2455 = scalar_lea.sflag [#allocation3], %s2454
        %s2456 = sand.u32 %s423, 1
        %s2457 = smul.addr %s2456, 8
        %s2458 = scalar_lea.vmem [#allocation2], %s2457
        // Predicated region
        $region93: #{tpu_custom_call.1} parent=91 // pred_check
          %p2459 = pneg %p433
        $region94: #{tpu_custom_call.1} parent=91 // pred_check_branch
          %2461 = sbr.rel (%p2459) target = $region96
        $region95: #{tpu_custom_call.1} parent=91 // pred_region
          %s2463 = ssub.s32 128, 128
          %2464 = vsyncadd %s2455, %s2463
          %s2465 = smul.addr %s32, 128
          %s2466 = scalar_lea.hbm %s18, %s2465
          %s2468 = sshll.u32 %s2458, 4
          %s2469 = int_to_ptr.vmem [resolvable:$true] %s2468
          %2471 = dma.vmem_to_hbm [thread:$0]  %s2469, 128, %s2466, %s2455
        $region96: #{tpu_custom_call.1} parent=91 // pred_fallthru
          _
      $region92: #{tpu_custom_call.1} parent=5 // pred_fallthru
        _
      %p2472 = scmp.le.s32.totalorder 2, %s27
      // Predicated region
      $region97: #{tpu_custom_call.1} parent=5 // pred_check
        %p2473 = pneg %p2472
      $region98: #{tpu_custom_call.1} parent=5 // pred_check_branch
        %2475 = sbr.rel (%p2473) target = $region100
      $region99: #{tpu_custom_call.1} parent=5 // pred_region
        %s2476 = ssub.s32 %s27, 2
        // Predicated region
        $region101: #{tpu_custom_call.1} parent=99 // pred_check
          %p2477 = pneg %p439
        $region102: #{tpu_custom_call.1} parent=99 // pred_check_branch
          %2479 = sbr.rel (%p2477) target = $region104
        $region103: #{tpu_custom_call.1} parent=99 // pred_region
          %s2480 = sand.u32 %s424, 1
          %s2481 = scalar_lea.sflag [#allocation3], %s2480
          %s2482 = sand.u32 %s424, 1
          %s2483 = smul.addr %s2482, 8
          %s2484 = scalar_lea.vmem [#allocation2], %s2483
          %2485 = dma.done %s2481, 128
        $region104: #{tpu_custom_call.1} parent=99 // pred_fallthru
          _
      $region100: #{tpu_custom_call.1} parent=5 // pred_fallthru
        _
    $region6: #{tpu_custom_call.1} parent=1 // loop_footer
      %s31 = sadd.s32 1, %s27
    $region7: #{tpu_custom_call.1} parent=1 // loop_footer_branch
      %26 = sbr.rel target = $region3
    $region8: #{tpu_custom_call.1} parent=1 // loop_exit
      _
    %2486 = vsyncpa [#allocation3], 1
    %s2487 = scalar_lea.sflag [#allocation3], 1
    %2488 = vsyncpa %s2487, 1

</llo_original>
